<compile_context>
chip_gen: v6e
topology: v6e:2x2x1
jax: 0.10.0
libtpu: 0.0.40
codegen_flags: <defaults>
</compile_context>

<pallas_src>
import functools
import math

import jax
import jax.numpy as jnp
import numpy as np
from jax.experimental import pallas as pl
from jax.experimental.pallas import tpu as pltpu


def _vmem_limit_bytes():
    """Per-generation scoped-VMEM limit: ~85% of physical, 64 MiB fallback."""
    try:
        cap = int(pltpu.get_tpu_info().vmem_capacity_bytes)
    except Exception:
        cap = 64 * 1024 * 1024
    return max(32 * 1024 * 1024, int(cap * 0.85))


def _pick_row_tile(H, W, cin, cout, fixed_bytes, budget_bytes):
    """Largest legal row tile th that fits the VMEM budget.

    Legal: th | H and (th*W) % 8 == 0 (or th == H, full-dim blocks are exempt).
    Prefers leaving >= 2 grid steps so output writeback pipelines with compute.
    """
    per_row = (
        2 * 4 * W * cout * 2      # double-buffered bf16 output block (4 phases)
        + 9 * W * cin * 2         # 9 deduped window copies (transient)
        + 4 * W * cin * 2         # fused-LHS channel concat (transient)
        + 2 * W * cout * 4        # f32 accumulator headroom
    )
    avail = budget_bytes - fixed_bytes - (4 << 20)   # slack for internal scratch
    cap_rows = max(avail // per_row, 8) if per_row > 0 else H

    legal = [th for th in range(H, 0, -1)
             if H % th == 0 and ((th * W) % 8 == 0 or th == H)]
    fitting = [th for th in legal if th <= cap_rows]
    for th in fitting:                      # largest fitting tile with T >= 2
        if H // th >= 2:
            return th
    if fitting:
        return fitting[0]
    return legal[-1]                        # nothing fits: smallest legal tile


def _deconv_bn_relu_kernel(x_ref, w_ref, b_ref, o_ref, *, th, W, cin, fused):
    # x_ref: (H+2, W+2, Cin)  bf16  full padded image, VMEM-resident across t.
    # w_ref: (2, 2, 4*Cin, Cout)     bf16 (fused)   BN-folded taps, K-concatenated
    #        (2, 2, 2, 2, Cin, Cout) bf16 (unfused) BN-folded taps [py, px, a, b].
    # b_ref: (1, Cout)        f32   folded conv-bias + BN shift.
    # o_ref: (2, 2, th*W, Cout) bf16 phase-major output, rows [t*th, (t+1)*th).
    t = pl.program_id(1)
    row0 = t * th
    bias = b_ref[...]                                     # (1, Cout) f32

    # 9 unique (row_off, col_off) windows -- NOT free views (rows of length W
    # are strided W+2 apart and column offsets shift sublanes), but deduping
    # them (9 instead of 16 per-tap copies) removes ~44% of the relayout work.
    win = {}
    for r in range(3):
        for c in range(3):
            win[(r, c)] = x_ref[pl.ds(row0 + r, th),
                                pl.ds(c, W), :].reshape(th * W, cin)

    for py in range(2):
        for px in range(2):
            if fused:
                # One matmul per phase with K = 4*Cin (lane-aligned concat).
                lhs = jnp.concatenate(
                    [win[(py, px)],     win[(py, px + 1)],
                     win[(py + 1, px)], win[(py + 1, px + 1)]], axis=-1)
                acc = jnp.dot(lhs, w_ref[py, px],
                              preferred_element_type=jnp.float32)
            else:
                acc = None
                for a in range(2):
                    for b in range(2):
                        d = jnp.dot(win[(py + a, px + b)], w_ref[py, px, a, b],
                                    preferred_element_type=jnp.float32)
                        acc = d if acc is None else acc + d
            y = jnp.maximum(acc + bias, 0.0)              # folded BN + ReLU
            o_ref[py, px] = y.astype(o_ref.dtype)


def deconv_module_forward(x_nchw, weight, conv_bias, gamma, beta,
                          running_mean, running_var, eps=1e-5, *, row_tile=None):
    """Forward of DeconvModule: ConvTranspose2d(4,2,1) -> BN(eval) -> ReLU."""
    N, Cin, H, W = x_nchw.shape
    Cin_w, Cout, Kh, Kw = weight.shape
    assert Cin_w == Cin and Kh == 4 and Kw == 4

    # ---- glue: NHWC + 1-px zero halo, bf16.  XLA fuses transpose + pad + cast
    # into the single input-relayout pass that NCHW -> channel-minor needs anyway.
    x = jnp.transpose(x_nchw, (0, 2, 3, 1))
    x_pad = jnp.pad(x, ((0, 0), (1, 1), (1, 1), (0, 0))).astype(jnp.bfloat16)

    # ---- fold BN (inference) into weights / bias --------------------------
    scale = gamma / jnp.sqrt(running_var + eps)                      # (Cout,)
    bias_eff = (beta + (conv_bias - running_mean) * scale)
    bias_eff = bias_eff.reshape(1, Cout).astype(jnp.float32)

    w_sc = weight * scale[None, :, None, None]                       # (Cin,Cout,4,4)
    # w_taps[py, px, a, b, ci, co] = w_sc[ci, co, 3 - py - 2a, 3 - px - 2b]
    w_taps = jnp.stack([
        jnp.stack([
            jnp.stack([
                jnp.stack([w_sc[:, :, 3 - py - 2 * a, 3 - px - 2 * b]
                           for b in range(2)], axis=0)
                for a in range(2)], axis=0)
            for px in range(2)], axis=0)
        for py in range(2)], axis=0).astype(jnp.bfloat16)            # (2,2,2,2,Cin,Cout)

    # ---- tap K-fusion (lane-aligned Cin only, <= 256-wide contraction) ----
    fuse_taps = (Cin % 128 == 0) and (Cin <= 128)
    if fuse_taps:
        w_kern = w_taps.reshape(2, 2, 4 * Cin, Cout)   # (a,b,ci) merged: a*2Cin+b*Cin+ci
        w_block = (2, 2, 4 * Cin, Cout)
        w_imap = lambda n, t: (0, 0, 0, 0)
    else:
        w_kern = w_taps
        w_block = (2, 2, 2, 2, Cin, Cout)
        w_imap = lambda n, t: (0, 0, 0, 0, 0, 0)

    # ---- VMEM budgeting / tile selection ----------------------------------
    vmem_limit = _vmem_limit_bytes()
    img_bufs = 1 if N == 1 else 2
    image_bytes = img_bufs * (H + 2) * (W + 2) * Cin * 2
    weight_bytes = 16 * Cin * Cout * 2                   # single-buffered
    th = row_tile if row_tile is not None else _pick_row_tile(
        H, W, Cin, Cout, image_bytes + weight_bytes, vmem_limit)
    assert H % th == 0 and ((th * W) % 8 == 0 or th == H)
    T = H // th

    def _spec(shape, imap, single_buffer):
        if single_buffer:
            try:   # constant-index operands: the 2nd pipeline buffer is waste
                return pl.BlockSpec(shape, imap, pipeline_mode=pl.Buffered(1))
            except Exception:
                pass
        return pl.BlockSpec(shape, imap)

    in_specs = [
        # Full padded image per batch element; index constant along t, so it is
        # HBM-fetched once per n and stays VMEM-resident across all row tiles.
        # Single-buffered when N == 1 (there is no next image to prefetch).
        _spec((None, H + 2, W + 2, Cin), lambda n, t: (n, 0, 0, 0), N == 1),
        _spec(w_block, w_imap, True),
        _spec((1, Cout), lambda n, t: (0, 0), True),
    ]

    try:
        cost = pl.CostEstimate(
            flops=32 * N * H * W * Cin * Cout,
            transcendentals=0,
            bytes_accessed=(x_pad.size * 2 + w_kern.size * 2 + Cout * 4
                            + N * 4 * H * W * Cout * 2))
    except TypeError:
        cost = None

    kernel = functools.partial(_deconv_bn_relu_kernel,
                               th=th, W=W, cin=Cin, fused=fuse_taps)

    out = pl.pallas_call(
        kernel,
        out_shape=jax.ShapeDtypeStruct((N, 2, 2, H * W, Cout), jnp.bfloat16),
        grid_spec=pltpu.PrefetchScalarGridSpec(
            num_scalar_prefetch=0,
            grid=(N, T),
            in_specs=in_specs,
            out_specs=pl.BlockSpec((None, 2, 2, th * W, Cout),
                                   lambda n, t: (n, 0, 0, t, 0)),
        ),
        compiler_params=pltpu.CompilerParams(
            # Both axes parallel: VMEM is per-TC, so a v7x split on the row-tile
            # axis only re-reads the (small) image from HBM -- cheaper than
            # idling a TensorCore at inference batch N == 1.
            dimension_semantics=("parallel", "parallel"),
            vmem_limit_bytes=vmem_limit),
        cost_estimate=cost,
    )(x_pad, w_kern, bias_eff)

    # ---- glue: phase interleave folded into the single NHWC->NCHW transpose --
    out = out.reshape(N, 2, 2, H, W, Cout)            # (n, py, px, i, j, c)
    out = jnp.transpose(out, (0, 5, 3, 1, 4, 2))      # (n, c, i, py, j, px)
    out = out.reshape(N, Cout, 2 * H, 2 * W)          # (n, c, 2i+py, 2j+px)
    # TODO(synk): activations are rounded to bf16 in the kernel output before
    # this f32 upcast (inference-precision decision; saves half the output HBM).
    return out.astype(jnp.float32)


def _reference(x_nchw, weight, conv_bias, gamma, beta, mean, var, eps=1e-5):
    """Pure-JAX reference: ConvTranspose2d via fractionally-strided conv."""
    Cin, Cout, Kh, Kw = weight.shape
    rhs = jnp.flip(jnp.transpose(weight, (1, 0, 2, 3)), axis=(2, 3))  # (Cout,Cin,Kh,Kw)
    y = jax.lax.conv_general_dilated(
        x_nchw, rhs, window_strides=(1, 1),
        padding=[(Kh - 2, Kh - 2), (Kw - 2, Kw - 2)],
        lhs_dilation=(2, 2), rhs_dilation=(1, 1),
        dimension_numbers=("NCHW", "OIHW", "NCHW"))
    y = y + conv_bias[None, :, None, None]
    y = (y - mean[None, :, None, None]) / jnp.sqrt(var[None, :, None, None] + eps)
    y = y * gamma[None, :, None, None] + beta[None, :, None, None]
    return jnp.maximum(y, 0.0)


def _run_case(key, N, Cin, Cout, H, W, row_tile=None):
    k1, k2, k3, k4, k5, k6, k7 = jax.random.split(key, 7)
    x = jax.random.normal(k1, (N, Cin, H, W), jnp.float32)
    # Fan-in-scaled weights (as in the PyTorch default init) keep bf16 rounding
    # error small relative to activations for any Cin.
    weight = jax.random.normal(k2, (Cin, Cout, 4, 4), jnp.float32) * (0.1 / math.sqrt(Cin))
    conv_bias = jax.random.normal(k3, (Cout,), jnp.float32) * 0.1
    gamma = jax.random.uniform(k4, (Cout,), jnp.float32, 0.5, 1.5)
    beta = jax.random.normal(k5, (Cout,), jnp.float32) * 0.1
    mean = jax.random.normal(k6, (Cout,), jnp.float32) * 0.1
    var = jax.random.uniform(k7, (Cout,), jnp.float32, 0.5, 1.5)

    fwd = jax.jit(functools.partial(deconv_module_forward, row_tile=row_tile))
    out = jax.block_until_ready(fwd(x, weight, conv_bias, gamma, beta, mean, var))
    assert out.shape == (N, Cout, 2 * H, 2 * W)

    ref = _reference(x, weight, conv_bias, gamma, beta, mean, var)
    # bf16 inputs / bf16 kernel output (f32 MXU accumulate) -> bf16-level tol.
    np.testing.assert_allclose(np.asarray(out), np.asarray(ref),
                               rtol=3e-2, atol=3e-2)


if __name__ == "__main__":
    root = jax.random.PRNGKey(0)
    k_small, k_big = jax.random.split(root)
    # Small case (per instructions): per-tap matmul path, lane-masked stores,
    # budget-picked row tile.
    _run_case(k_small, N=2, Cin=4, Cout=8, H=16, W=16)
    # Coverage case (from the review): fused-tap path (Cin % 128 == 0),
    # lane-dense stores (Cout % 128 == 0), multi-row-tile grid (T = 2) so
    # interior tile halos and t > 0 indexing are validated.
    _run_case(k_big, N=1, Cin=128, Cout=128, H=16, W=16, row_tile=8)
    print("KERNEL_OK")
</pallas_src>

<mosaic_0001>
module attributes {stable_mosaic.version = 11 : i64} {
  func.func @_deconv_bn_relu_kernel(%arg0: i32, %arg1: i32, %arg2: memref<1x18x18x4xbf16, #tpu.memory_space<vmem>>, %arg3: memref<2x2x2x2x4x8xbf16, #tpu.memory_space<vmem>>, %arg4: memref<1x8xf32, #tpu.memory_space<vmem>>, %arg5: memref<1x2x2x128x8xbf16, #tpu.memory_space<vmem>>) attributes {dimension_semantics = [#tpu.dimension_semantics<parallel>, #tpu.dimension_semantics<parallel>], iteration_bounds = array<i64: 2, 2>, scalar_prefetch = 0 : i64, scratch_operands = 0 : i64, tpu.core_type = #tpu.core_type<tc>, window_params = [{transform_indices = @transform_0, window_bounds = array<i64: 1, 18, 18, 4>}, {pipeline_mode = #tpu.pipeline_mode<synchronous>, transform_indices = @transform_1, window_bounds = array<i64: 2, 2, 2, 2, 4, 8>}, {pipeline_mode = #tpu.pipeline_mode<synchronous>, transform_indices = @transform_2, window_bounds = array<i64: 1, 8>}, {transform_indices = @transform_3, window_bounds = array<i64: 1, 2, 2, 128, 8>}]} {
    %c8_i32 = arith.constant 8 : i32
    %0 = arith.muli %arg1, %c8_i32 : i32
    %c0 = arith.constant 0 : index
    %c0_0 = arith.constant 0 : index
    %1 = vector.load %arg4[%c0, %c0_0] : memref<1x8xf32, #tpu.memory_space<vmem>>, vector<1x8xf32>
    %c0_i32 = arith.constant 0 : i32
    %2 = arith.addi %0, %c0_i32 : i32
    %c0_1 = arith.constant 0 : index
    %3 = arith.index_cast %2 : i32 to index
    %c0_2 = arith.constant 0 : index
    %c0_3 = arith.constant 0 : index
    %4 = vector.load %arg2[%c0_1, %3, %c0_2, %c0_3] : memref<1x18x18x4xbf16, #tpu.memory_space<vmem>>, vector<1x8x16x4xbf16>
    %5 = vector.shape_cast %4 : vector<1x8x16x4xbf16> to vector<8x16x4xbf16>
    %6 = vector.shape_cast %5 : vector<8x16x4xbf16> to vector<128x4xbf16>
    %c0_i32_4 = arith.constant 0 : i32
    %7 = arith.addi %0, %c0_i32_4 : i32
    %c0_5 = arith.constant 0 : index
    %8 = arith.index_cast %7 : i32 to index
    %c1 = arith.constant 1 : index
    %c0_6 = arith.constant 0 : index
    %9 = vector.load %arg2[%c0_5, %8, %c1, %c0_6] : memref<1x18x18x4xbf16, #tpu.memory_space<vmem>>, vector<1x8x16x4xbf16>
    %10 = vector.shape_cast %9 : vector<1x8x16x4xbf16> to vector<8x16x4xbf16>
    %11 = vector.shape_cast %10 : vector<8x16x4xbf16> to vector<128x4xbf16>
    %c0_i32_7 = arith.constant 0 : i32
    %12 = arith.addi %0, %c0_i32_7 : i32
    %c0_8 = arith.constant 0 : index
    %13 = arith.index_cast %12 : i32 to index
    %c2 = arith.constant 2 : index
    %c0_9 = arith.constant 0 : index
    %14 = vector.load %arg2[%c0_8, %13, %c2, %c0_9] : memref<1x18x18x4xbf16, #tpu.memory_space<vmem>>, vector<1x8x16x4xbf16>
    %15 = vector.shape_cast %14 : vector<1x8x16x4xbf16> to vector<8x16x4xbf16>
    %16 = vector.shape_cast %15 : vector<8x16x4xbf16> to vector<128x4xbf16>
    %c1_i32 = arith.constant 1 : i32
    %17 = arith.addi %0, %c1_i32 : i32
    %c0_10 = arith.constant 0 : index
    %18 = arith.index_cast %17 : i32 to index
    %c0_11 = arith.constant 0 : index
    %c0_12 = arith.constant 0 : index
    %19 = vector.load %arg2[%c0_10, %18, %c0_11, %c0_12] : memref<1x18x18x4xbf16, #tpu.memory_space<vmem>>, vector<1x8x16x4xbf16>
    %20 = vector.shape_cast %19 : vector<1x8x16x4xbf16> to vector<8x16x4xbf16>
    %21 = vector.shape_cast %20 : vector<8x16x4xbf16> to vector<128x4xbf16>
    %c1_i32_13 = arith.constant 1 : i32
    %22 = arith.addi %0, %c1_i32_13 : i32
    %c0_14 = arith.constant 0 : index
    %23 = arith.index_cast %22 : i32 to index
    %c1_15 = arith.constant 1 : index
    %c0_16 = arith.constant 0 : index
    %24 = vector.load %arg2[%c0_14, %23, %c1_15, %c0_16] : memref<1x18x18x4xbf16, #tpu.memory_space<vmem>>, vector<1x8x16x4xbf16>
    %25 = vector.shape_cast %24 : vector<1x8x16x4xbf16> to vector<8x16x4xbf16>
    %26 = vector.shape_cast %25 : vector<8x16x4xbf16> to vector<128x4xbf16>
    %c1_i32_17 = arith.constant 1 : i32
    %27 = arith.addi %0, %c1_i32_17 : i32
    %c0_18 = arith.constant 0 : index
    %28 = arith.index_cast %27 : i32 to index
    %c2_19 = arith.constant 2 : index
    %c0_20 = arith.constant 0 : index
    %29 = vector.load %arg2[%c0_18, %28, %c2_19, %c0_20] : memref<1x18x18x4xbf16, #tpu.memory_space<vmem>>, vector<1x8x16x4xbf16>
    %30 = vector.shape_cast %29 : vector<1x8x16x4xbf16> to vector<8x16x4xbf16>
    %31 = vector.shape_cast %30 : vector<8x16x4xbf16> to vector<128x4xbf16>
    %c2_i32 = arith.constant 2 : i32
    %32 = arith.addi %0, %c2_i32 : i32
    %c0_21 = arith.constant 0 : index
    %33 = arith.index_cast %32 : i32 to index
    %c0_22 = arith.constant 0 : index
    %c0_23 = arith.constant 0 : index
    %34 = vector.load %arg2[%c0_21, %33, %c0_22, %c0_23] : memref<1x18x18x4xbf16, #tpu.memory_space<vmem>>, vector<1x8x16x4xbf16>
    %35 = vector.shape_cast %34 : vector<1x8x16x4xbf16> to vector<8x16x4xbf16>
    %36 = vector.shape_cast %35 : vector<8x16x4xbf16> to vector<128x4xbf16>
    %c2_i32_24 = arith.constant 2 : i32
    %37 = arith.addi %0, %c2_i32_24 : i32
    %c0_25 = arith.constant 0 : index
    %38 = arith.index_cast %37 : i32 to index
    %c1_26 = arith.constant 1 : index
    %c0_27 = arith.constant 0 : index
    %39 = vector.load %arg2[%c0_25, %38, %c1_26, %c0_27] : memref<1x18x18x4xbf16, #tpu.memory_space<vmem>>, vector<1x8x16x4xbf16>
    %40 = vector.shape_cast %39 : vector<1x8x16x4xbf16> to vector<8x16x4xbf16>
    %41 = vector.shape_cast %40 : vector<8x16x4xbf16> to vector<128x4xbf16>
    %c2_i32_28 = arith.constant 2 : i32
    %42 = arith.addi %0, %c2_i32_28 : i32
    %c0_29 = arith.constant 0 : index
    %43 = arith.index_cast %42 : i32 to index
    %c2_30 = arith.constant 2 : index
    %c0_31 = arith.constant 0 : index
    %44 = vector.load %arg2[%c0_29, %43, %c2_30, %c0_31] : memref<1x18x18x4xbf16, #tpu.memory_space<vmem>>, vector<1x8x16x4xbf16>
    %45 = vector.shape_cast %44 : vector<1x8x16x4xbf16> to vector<8x16x4xbf16>
    %46 = vector.shape_cast %45 : vector<8x16x4xbf16> to vector<128x4xbf16>
    %c0_32 = arith.constant 0 : index
    %c0_33 = arith.constant 0 : index
    %c0_34 = arith.constant 0 : index
    %c0_35 = arith.constant 0 : index
    %c0_36 = arith.constant 0 : index
    %c0_37 = arith.constant 0 : index
    %47 = vector.load %arg3[%c0_32, %c0_33, %c0_34, %c0_35, %c0_36, %c0_37] : memref<2x2x2x2x4x8xbf16, #tpu.memory_space<vmem>>, vector<1x1x1x1x4x8xbf16>
    %48 = vector.shape_cast %47 : vector<1x1x1x1x4x8xbf16> to vector<4x8xbf16>
    %cst = arith.constant dense<0.000000e+00> : vector<128x8xf32>
    %49 = tpu.matmul %6, %48, %cst {dimension_numbers = #tpu.dot_dimension_numbers<[1], [0], [0], [1], [0, 0, 1, 1], [], []>} : vector<128x4xbf16>, vector<4x8xbf16>, vector<128x8xf32> -> vector<128x8xf32>
    %c0_38 = arith.constant 0 : index
    %c0_39 = arith.constant 0 : index
    %c0_40 = arith.constant 0 : index
    %c1_41 = arith.constant 1 : index
    %c0_42 = arith.constant 0 : index
    %c0_43 = arith.constant 0 : index
    %50 = vector.load %arg3[%c0_38, %c0_39, %c0_40, %c1_41, %c0_42, %c0_43] : memref<2x2x2x2x4x8xbf16, #tpu.memory_space<vmem>>, vector<1x1x1x1x4x8xbf16>
    %51 = vector.shape_cast %50 : vector<1x1x1x1x4x8xbf16> to vector<4x8xbf16>
    %cst_44 = arith.constant dense<0.000000e+00> : vector<128x8xf32>
    %52 = tpu.matmul %11, %51, %cst_44 {dimension_numbers = #tpu.dot_dimension_numbers<[1], [0], [0], [1], [0, 0, 1, 1], [], []>} : vector<128x4xbf16>, vector<4x8xbf16>, vector<128x8xf32> -> vector<128x8xf32>
    %53 = arith.addf %49, %52 : vector<128x8xf32>
    %c0_45 = arith.constant 0 : index
    %c0_46 = arith.constant 0 : index
    %c1_47 = arith.constant 1 : index
    %c0_48 = arith.constant 0 : index
    %c0_49 = arith.constant 0 : index
    %c0_50 = arith.constant 0 : index
    %54 = vector.load %arg3[%c0_45, %c0_46, %c1_47, %c0_48, %c0_49, %c0_50] : memref<2x2x2x2x4x8xbf16, #tpu.memory_space<vmem>>, vector<1x1x1x1x4x8xbf16>
    %55 = vector.shape_cast %54 : vector<1x1x1x1x4x8xbf16> to vector<4x8xbf16>
    %cst_51 = arith.constant dense<0.000000e+00> : vector<128x8xf32>
    %56 = tpu.matmul %21, %55, %cst_51 {dimension_numbers = #tpu.dot_dimension_numbers<[1], [0], [0], [1], [0, 0, 1, 1], [], []>} : vector<128x4xbf16>, vector<4x8xbf16>, vector<128x8xf32> -> vector<128x8xf32>
    %57 = arith.addf %53, %56 : vector<128x8xf32>
    %c0_52 = arith.constant 0 : index
    %c0_53 = arith.constant 0 : index
    %c1_54 = arith.constant 1 : index
    %c1_55 = arith.constant 1 : index
    %c0_56 = arith.constant 0 : index
    %c0_57 = arith.constant 0 : index
    %58 = vector.load %arg3[%c0_52, %c0_53, %c1_54, %c1_55, %c0_56, %c0_57] : memref<2x2x2x2x4x8xbf16, #tpu.memory_space<vmem>>, vector<1x1x1x1x4x8xbf16>
    %59 = vector.shape_cast %58 : vector<1x1x1x1x4x8xbf16> to vector<4x8xbf16>
    %cst_58 = arith.constant dense<0.000000e+00> : vector<128x8xf32>
    %60 = tpu.matmul %26, %59, %cst_58 {dimension_numbers = #tpu.dot_dimension_numbers<[1], [0], [0], [1], [0, 0, 1, 1], [], []>} : vector<128x4xbf16>, vector<4x8xbf16>, vector<128x8xf32> -> vector<128x8xf32>
    %61 = arith.addf %57, %60 : vector<128x8xf32>
    %62 = vector.broadcast %1 : vector<1x8xf32> to vector<128x8xf32>
    %63 = arith.addf %61, %62 : vector<128x8xf32>
    %cst_59 = arith.constant 0.000000e+00 : f32
    %64 = vector.broadcast %cst_59 : f32 to vector<128x8xf32>
    %65 = arith.maximumf %63, %64 : vector<128x8xf32>
    %66 = arith.truncf %65 : vector<128x8xf32> to vector<128x8xbf16>
    %c0_60 = arith.constant 0 : index
    %c0_61 = arith.constant 0 : index
    %c0_62 = arith.constant 0 : index
    %c0_63 = arith.constant 0 : index
    %c0_64 = arith.constant 0 : index
    %67 = vector.load %arg5[%c0_60, %c0_61, %c0_62, %c0_63, %c0_64] : memref<1x2x2x128x8xbf16, #tpu.memory_space<vmem>>, vector<1x1x1x128x8xbf16>
    %68 = vector.shape_cast %67 : vector<1x1x1x128x8xbf16> to vector<128x8xbf16>
    %69 = vector.shape_cast %66 : vector<128x8xbf16> to vector<1x1x1x128x8xbf16>
    tpu.vector_store %arg5[%c0_60, %c0_61, %c0_62, %c0_63, %c0_64], %69 {strides = array<i32>} : memref<1x2x2x128x8xbf16, #tpu.memory_space<vmem>>, vector<1x1x1x128x8xbf16>,
    %c0_65 = arith.constant 0 : index
    %c1_66 = arith.constant 1 : index
    %c0_67 = arith.constant 0 : index
    %c0_68 = arith.constant 0 : index
    %c0_69 = arith.constant 0 : index
    %c0_70 = arith.constant 0 : index
    %70 = vector.load %arg3[%c0_65, %c1_66, %c0_67, %c0_68, %c0_69, %c0_70] : memref<2x2x2x2x4x8xbf16, #tpu.memory_space<vmem>>, vector<1x1x1x1x4x8xbf16>
    %71 = vector.shape_cast %70 : vector<1x1x1x1x4x8xbf16> to vector<4x8xbf16>
    %cst_71 = arith.constant dense<0.000000e+00> : vector<128x8xf32>
    %72 = tpu.matmul %11, %71, %cst_71 {dimension_numbers = #tpu.dot_dimension_numbers<[1], [0], [0], [1], [0, 0, 1, 1], [], []>} : vector<128x4xbf16>, vector<4x8xbf16>, vector<128x8xf32> -> vector<128x8xf32>
    %c0_72 = arith.constant 0 : index
    %c1_73 = arith.constant 1 : index
    %c0_74 = arith.constant 0 : index
    %c1_75 = arith.constant 1 : index
    %c0_76 = arith.constant 0 : index
    %c0_77 = arith.constant 0 : index
    %73 = vector.load %arg3[%c0_72, %c1_73, %c0_74, %c1_75, %c0_76, %c0_77] : memref<2x2x2x2x4x8xbf16, #tpu.memory_space<vmem>>, vector<1x1x1x1x4x8xbf16>
    %74 = vector.shape_cast %73 : vector<1x1x1x1x4x8xbf16> to vector<4x8xbf16>
    %cst_78 = arith.constant dense<0.000000e+00> : vector<128x8xf32>
    %75 = tpu.matmul %16, %74, %cst_78 {dimension_numbers = #tpu.dot_dimension_numbers<[1], [0], [0], [1], [0, 0, 1, 1], [], []>} : vector<128x4xbf16>, vector<4x8xbf16>, vector<128x8xf32> -> vector<128x8xf32>
    %76 = arith.addf %72, %75 : vector<128x8xf32>
    %c0_79 = arith.constant 0 : index
    %c1_80 = arith.constant 1 : index
    %c1_81 = arith.constant 1 : index
    %c0_82 = arith.constant 0 : index
    %c0_83 = arith.constant 0 : index
    %c0_84 = arith.constant 0 : index
    %77 = vector.load %arg3[%c0_79, %c1_80, %c1_81, %c0_82, %c0_83, %c0_84] : memref<2x2x2x2x4x8xbf16, #tpu.memory_space<vmem>>, vector<1x1x1x1x4x8xbf16>
    %78 = vector.shape_cast %77 : vector<1x1x1x1x4x8xbf16> to vector<4x8xbf16>
    %cst_85 = arith.constant dense<0.000000e+00> : vector<128x8xf32>
    %79 = tpu.matmul %26, %78, %cst_85 {dimension_numbers = #tpu.dot_dimension_numbers<[1], [0], [0], [1], [0, 0, 1, 1], [], []>} : vector<128x4xbf16>, vector<4x8xbf16>, vector<128x8xf32> -> vector<128x8xf32>
    %80 = arith.addf %76, %79 : vector<128x8xf32>
    %c0_86 = arith.constant 0 : index
    %c1_87 = arith.constant 1 : index
    %c1_88 = arith.constant 1 : index
    %c1_89 = arith.constant 1 : index
    %c0_90 = arith.constant 0 : index
    %c0_91 = arith.constant 0 : index
    %81 = vector.load %arg3[%c0_86, %c1_87, %c1_88, %c1_89, %c0_90, %c0_91] : memref<2x2x2x2x4x8xbf16, #tpu.memory_space<vmem>>, vector<1x1x1x1x4x8xbf16>
    %82 = vector.shape_cast %81 : vector<1x1x1x1x4x8xbf16> to vector<4x8xbf16>
    %cst_92 = arith.constant dense<0.000000e+00> : vector<128x8xf32>
    %83 = tpu.matmul %31, %82, %cst_92 {dimension_numbers = #tpu.dot_dimension_numbers<[1], [0], [0], [1], [0, 0, 1, 1], [], []>} : vector<128x4xbf16>, vector<4x8xbf16>, vector<128x8xf32> -> vector<128x8xf32>
    %84 = arith.addf %80, %83 : vector<128x8xf32>
    %85 = vector.broadcast %1 : vector<1x8xf32> to vector<128x8xf32>
    %86 = arith.addf %84, %85 : vector<128x8xf32>
    %cst_93 = arith.constant 0.000000e+00 : f32
    %87 = vector.broadcast %cst_93 : f32 to vector<128x8xf32>
    %88 = arith.maximumf %86, %87 : vector<128x8xf32>
    %89 = arith.truncf %88 : vector<128x8xf32> to vector<128x8xbf16>
    %c0_94 = arith.constant 0 : index
    %c0_95 = arith.constant 0 : index
    %c1_96 = arith.constant 1 : index
    %c0_97 = arith.constant 0 : index
    %c0_98 = arith.constant 0 : index
    %90 = vector.load %arg5[%c0_94, %c0_95, %c1_96, %c0_97, %c0_98] : memref<1x2x2x128x8xbf16, #tpu.memory_space<vmem>>, vector<1x1x1x128x8xbf16>
    %91 = vector.shape_cast %90 : vector<1x1x1x128x8xbf16> to vector<128x8xbf16>
    %92 = vector.shape_cast %89 : vector<128x8xbf16> to vector<1x1x1x128x8xbf16>
    tpu.vector_store %arg5[%c0_94, %c0_95, %c1_96, %c0_97, %c0_98], %92 {strides = array<i32>} : memref<1x2x2x128x8xbf16, #tpu.memory_space<vmem>>, vector<1x1x1x128x8xbf16>,
    %c1_99 = arith.constant 1 : index
    %c0_100 = arith.constant 0 : index
    %c0_101 = arith.constant 0 : index
    %c0_102 = arith.constant 0 : index
    %c0_103 = arith.constant 0 : index
    %c0_104 = arith.constant 0 : index
    %93 = vector.load %arg3[%c1_99, %c0_100, %c0_101, %c0_102, %c0_103, %c0_104] : memref<2x2x2x2x4x8xbf16, #tpu.memory_space<vmem>>, vector<1x1x1x1x4x8xbf16>
    %94 = vector.shape_cast %93 : vector<1x1x1x1x4x8xbf16> to vector<4x8xbf16>
    %cst_105 = arith.constant dense<0.000000e+00> : vector<128x8xf32>
    %95 = tpu.matmul %21, %94, %cst_105 {dimension_numbers = #tpu.dot_dimension_numbers<[1], [0], [0], [1], [0, 0, 1, 1], [], []>} : vector<128x4xbf16>, vector<4x8xbf16>, vector<128x8xf32> -> vector<128x8xf32>
    %c1_106 = arith.constant 1 : index
    %c0_107 = arith.constant 0 : index
    %c0_108 = arith.constant 0 : index
    %c1_109 = arith.constant 1 : index
    %c0_110 = arith.constant 0 : index
    %c0_111 = arith.constant 0 : index
    %96 = vector.load %arg3[%c1_106, %c0_107, %c0_108, %c1_109, %c0_110, %c0_111] : memref<2x2x2x2x4x8xbf16, #tpu.memory_space<vmem>>, vector<1x1x1x1x4x8xbf16>
    %97 = vector.shape_cast %96 : vector<1x1x1x1x4x8xbf16> to vector<4x8xbf16>
    %cst_112 = arith.constant dense<0.000000e+00> : vector<128x8xf32>
    %98 = tpu.matmul %26, %97, %cst_112 {dimension_numbers = #tpu.dot_dimension_numbers<[1], [0], [0], [1], [0, 0, 1, 1], [], []>} : vector<128x4xbf16>, vector<4x8xbf16>, vector<128x8xf32> -> vector<128x8xf32>
    %99 = arith.addf %95, %98 : vector<128x8xf32>
    %c1_113 = arith.constant 1 : index
    %c0_114 = arith.constant 0 : index
    %c1_115 = arith.constant 1 : index
    %c0_116 = arith.constant 0 : index
    %c0_117 = arith.constant 0 : index
    %c0_118 = arith.constant 0 : index
    %100 = vector.load %arg3[%c1_113, %c0_114, %c1_115, %c0_116, %c0_117, %c0_118] : memref<2x2x2x2x4x8xbf16, #tpu.memory_space<vmem>>, vector<1x1x1x1x4x8xbf16>
    %101 = vector.shape_cast %100 : vector<1x1x1x1x4x8xbf16> to vector<4x8xbf16>
    %cst_119 = arith.constant dense<0.000000e+00> : vector<128x8xf32>
    %102 = tpu.matmul %36, %101, %cst_119 {dimension_numbers = #tpu.dot_dimension_numbers<[1], [0], [0], [1], [0, 0, 1, 1], [], []>} : vector<128x4xbf16>, vector<4x8xbf16>, vector<128x8xf32> -> vector<128x8xf32>
    %103 = arith.addf %99, %102 : vector<128x8xf32>
    %c1_120 = arith.constant 1 : index
    %c0_121 = arith.constant 0 : index
    %c1_122 = arith.constant 1 : index
    %c1_123 = arith.constant 1 : index
    %c0_124 = arith.constant 0 : index
    %c0_125 = arith.constant 0 : index
    %104 = vector.load %arg3[%c1_120, %c0_121, %c1_122, %c1_123, %c0_124, %c0_125] : memref<2x2x2x2x4x8xbf16, #tpu.memory_space<vmem>>, vector<1x1x1x1x4x8xbf16>
    %105 = vector.shape_cast %104 : vector<1x1x1x1x4x8xbf16> to vector<4x8xbf16>
    %cst_126 = arith.constant dense<0.000000e+00> : vector<128x8xf32>
    %106 = tpu.matmul %41, %105, %cst_126 {dimension_numbers = #tpu.dot_dimension_numbers<[1], [0], [0], [1], [0, 0, 1, 1], [], []>} : vector<128x4xbf16>, vector<4x8xbf16>, vector<128x8xf32> -> vector<128x8xf32>
    %107 = arith.addf %103, %106 : vector<128x8xf32>
    %108 = vector.broadcast %1 : vector<1x8xf32> to vector<128x8xf32>
    %109 = arith.addf %107, %108 : vector<128x8xf32>
    %cst_127 = arith.constant 0.000000e+00 : f32
    %110 = vector.broadcast %cst_127 : f32 to vector<128x8xf32>
    %111 = arith.maximumf %109, %110 : vector<128x8xf32>
    %112 = arith.truncf %111 : vector<128x8xf32> to vector<128x8xbf16>
    %c0_128 = arith.constant 0 : index
    %c1_129 = arith.constant 1 : index
    %c0_130 = arith.constant 0 : index
    %c0_131 = arith.constant 0 : index
    %c0_132 = arith.constant 0 : index
    %113 = vector.load %arg5[%c0_128, %c1_129, %c0_130, %c0_131, %c0_132] : memref<1x2x2x128x8xbf16, #tpu.memory_space<vmem>>, vector<1x1x1x128x8xbf16>
    %114 = vector.shape_cast %113 : vector<1x1x1x128x8xbf16> to vector<128x8xbf16>
    %115 = vector.shape_cast %112 : vector<128x8xbf16> to vector<1x1x1x128x8xbf16>
    tpu.vector_store %arg5[%c0_128, %c1_129, %c0_130, %c0_131, %c0_132], %115 {strides = array<i32>} : memref<1x2x2x128x8xbf16, #tpu.memory_space<vmem>>, vector<1x1x1x128x8xbf16>,
    %c1_133 = arith.constant 1 : index
    %c1_134 = arith.constant 1 : index
    %c0_135 = arith.constant 0 : index
    %c0_136 = arith.constant 0 : index
    %c0_137 = arith.constant 0 : index
    %c0_138 = arith.constant 0 : index
    %116 = vector.load %arg3[%c1_133, %c1_134, %c0_135, %c0_136, %c0_137, %c0_138] : memref<2x2x2x2x4x8xbf16, #tpu.memory_space<vmem>>, vector<1x1x1x1x4x8xbf16>
    %117 = vector.shape_cast %116 : vector<1x1x1x1x4x8xbf16> to vector<4x8xbf16>
    %cst_139 = arith.constant dense<0.000000e+00> : vector<128x8xf32>
    %118 = tpu.matmul %26, %117, %cst_139 {dimension_numbers = #tpu.dot_dimension_numbers<[1], [0], [0], [1], [0, 0, 1, 1], [], []>} : vector<128x4xbf16>, vector<4x8xbf16>, vector<128x8xf32> -> vector<128x8xf32>
    %c1_140 = arith.constant 1 : index
    %c1_141 = arith.constant 1 : index
    %c0_142 = arith.constant 0 : index
    %c1_143 = arith.constant 1 : index
    %c0_144 = arith.constant 0 : index
    %c0_145 = arith.constant 0 : index
    %119 = vector.load %arg3[%c1_140, %c1_141, %c0_142, %c1_143, %c0_144, %c0_145] : memref<2x2x2x2x4x8xbf16, #tpu.memory_space<vmem>>, vector<1x1x1x1x4x8xbf16>
    %120 = vector.shape_cast %119 : vector<1x1x1x1x4x8xbf16> to vector<4x8xbf16>
    %cst_146 = arith.constant dense<0.000000e+00> : vector<128x8xf32>
    %121 = tpu.matmul %31, %120, %cst_146 {dimension_numbers = #tpu.dot_dimension_numbers<[1], [0], [0], [1], [0, 0, 1, 1], [], []>} : vector<128x4xbf16>, vector<4x8xbf16>, vector<128x8xf32> -> vector<128x8xf32>
    %122 = arith.addf %118, %121 : vector<128x8xf32>
    %c1_147 = arith.constant 1 : index
    %c1_148 = arith.constant 1 : index
    %c1_149 = arith.constant 1 : index
    %c0_150 = arith.constant 0 : index
    %c0_151 = arith.constant 0 : index
    %c0_152 = arith.constant 0 : index
    %123 = vector.load %arg3[%c1_147, %c1_148, %c1_149, %c0_150, %c0_151, %c0_152] : memref<2x2x2x2x4x8xbf16, #tpu.memory_space<vmem>>, vector<1x1x1x1x4x8xbf16>
    %124 = vector.shape_cast %123 : vector<1x1x1x1x4x8xbf16> to vector<4x8xbf16>
    %cst_153 = arith.constant dense<0.000000e+00> : vector<128x8xf32>
    %125 = tpu.matmul %41, %124, %cst_153 {dimension_numbers = #tpu.dot_dimension_numbers<[1], [0], [0], [1], [0, 0, 1, 1], [], []>} : vector<128x4xbf16>, vector<4x8xbf16>, vector<128x8xf32> -> vector<128x8xf32>
    %126 = arith.addf %122, %125 : vector<128x8xf32>
    %c1_154 = arith.constant 1 : index
    %c1_155 = arith.constant 1 : index
    %c1_156 = arith.constant 1 : index
    %c1_157 = arith.constant 1 : index
    %c0_158 = arith.constant 0 : index
    %c0_159 = arith.constant 0 : index
    %127 = vector.load %arg3[%c1_154, %c1_155, %c1_156, %c1_157, %c0_158, %c0_159] : memref<2x2x2x2x4x8xbf16, #tpu.memory_space<vmem>>, vector<1x1x1x1x4x8xbf16>
    %128 = vector.shape_cast %127 : vector<1x1x1x1x4x8xbf16> to vector<4x8xbf16>
    %cst_160 = arith.constant dense<0.000000e+00> : vector<128x8xf32>
    %129 = tpu.matmul %46, %128, %cst_160 {dimension_numbers = #tpu.dot_dimension_numbers<[1], [0], [0], [1], [0, 0, 1, 1], [], []>} : vector<128x4xbf16>, vector<4x8xbf16>, vector<128x8xf32> -> vector<128x8xf32>
    %130 = arith.addf %126, %129 : vector<128x8xf32>
    %131 = vector.broadcast %1 : vector<1x8xf32> to vector<128x8xf32>
    %132 = arith.addf %130, %131 : vector<128x8xf32>
    %cst_161 = arith.constant 0.000000e+00 : f32
    %133 = vector.broadcast %cst_161 : f32 to vector<128x8xf32>
    %134 = arith.maximumf %132, %133 : vector<128x8xf32>
    %135 = arith.truncf %134 : vector<128x8xf32> to vector<128x8xbf16>
    %c0_162 = arith.constant 0 : index
    %c1_163 = arith.constant 1 : index
    %c1_164 = arith.constant 1 : index
    %c0_165 = arith.constant 0 : index
    %c0_166 = arith.constant 0 : index
    %136 = vector.load %arg5[%c0_162, %c1_163, %c1_164, %c0_165, %c0_166] : memref<1x2x2x128x8xbf16, #tpu.memory_space<vmem>>, vector<1x1x1x128x8xbf16>
    %137 = vector.shape_cast %136 : vector<1x1x1x128x8xbf16> to vector<128x8xbf16>
    %138 = vector.shape_cast %135 : vector<128x8xbf16> to vector<1x1x1x128x8xbf16>
    tpu.vector_store %arg5[%c0_162, %c1_163, %c1_164, %c0_165, %c0_166], %138 {strides = array<i32>} : memref<1x2x2x128x8xbf16, #tpu.memory_space<vmem>>, vector<1x1x1x128x8xbf16>,
    return
  }
  func.func @transform_0(%arg0: i32, %arg1: i32) -> (i32, i32, i32, i32) {
    %c0_i32 = arith.constant 0 : i32
    %c0_i32_0 = arith.constant 0 : i32
    %c0_i32_1 = arith.constant 0 : i32
    %c0_i32_2 = arith.constant 0 : i32
    return %arg0, %c0_i32, %c0_i32_0, %c0_i32_1 : i32, i32, i32, i32
  }
  func.func @transform_1(%arg0: i32, %arg1: i32) -> (i32, i32, i32, i32, i32, i32) {
    %c0_i32 = arith.constant 0 : i32
    %c0_i32_0 = arith.constant 0 : i32
    %c0_i32_1 = arith.constant 0 : i32
    %c0_i32_2 = arith.constant 0 : i32
    %c0_i32_3 = arith.constant 0 : i32
    %c0_i32_4 = arith.constant 0 : i32
    %c0_i32_5 = arith.constant 0 : i32
    return %c0_i32, %c0_i32_0, %c0_i32_1, %c0_i32_2, %c0_i32_3, %c0_i32_4 : i32, i32, i32, i32, i32, i32
  }
  func.func @transform_2(%arg0: i32, %arg1: i32) -> (i32, i32) {
    %c0_i32 = arith.constant 0 : i32
    %c0_i32_0 = arith.constant 0 : i32
    %c0_i32_1 = arith.constant 0 : i32
    return %c0_i32, %c0_i32_0 : i32, i32
  }
  func.func @transform_3(%arg0: i32, %arg1: i32) -> (i32, i32, i32, i32, i32) {
    %c0_i32 = arith.constant 0 : i32
    %c0_i32_0 = arith.constant 0 : i32
    %c0_i32_1 = arith.constant 0 : i32
    %c0_i32_2 = arith.constant 0 : i32
    return %arg0, %c0_i32, %c0_i32_0, %arg1, %c0_i32_1 : i32, i32, i32, i32, i32
  }
}

</mosaic_0001>

<llo_original>
// kernel: deconv_module_forward.1
$region0: #{deconv_module_forward.1}
  #allocation0 [shape = 'u32[]', space=smem, size = 0x4, offset = 0x4, fixed_abs, tag = 'smem constant byte address 0x4 - core index']
  #allocation1 [shape = 'u32[144,128]{1,0:T(1,128)}', space=vmem, size = 0x12000, scoped, tag = 'internal scratch']
  %s0 = inlined_call_operand.vmem [shape: bf16[2,18,18,4], index: 0, kind: input, shape index: {}]
  %s1 = inlined_call_operand.vmem [shape: bf16[2,2,2,2,4,8], index: 1, kind: input, shape index: {}]
  %s2 = inlined_call_operand.vmem [shape: f32[1,8], index: 2, kind: input, shape index: {}]
  %s3 = inlined_call_operand.vmem [shape: bf16[2,2,2,256,8], index: 3, kind: output, shape index: {}]
  %s4 = sld [smem:[#allocation0]]
  $region82: #{deconv_module_forward.1} parent=0
    _
  %s6 = ssub.s32 1, %s4
  %s7 = scalar_select 0, %s6, %s4
  $region1: #{deconv_module_forward.1} parent=0
    #allocation2 [shape = 'u8[262144]{0}', space=vmem, size = 0x40000, scoped, tag = 'output window, operand 0']
    loop: start=0, step=1, limit=6
    $region2: #{deconv_module_forward.1} parent=1 // loop_pre_header
      _
    $region3: #{deconv_module_forward.1} parent=1 // loop_header
      %s9 = sphi 0, %s13
      %p10 = scmp.ge.s32.totalorder %s9, 6
      %s16 = sphi 0, %s28
      %s17 = sphi 0, %s24
      %s18 = sphi 0, %s16
      %s19 = sphi 0, %s17
      %s20 = sphi 0, %s18
      %s21 = sphi 0, %s19
      %s31 = sphi 0, %s33
      %s34 = sphi 0, %s31
      %s35 = sphi 0, %s34
      %s51 = sphi 0, %s35
      %s55 = sphi 0, %s55
      %s57 = sphi 0, %s55
      %s58 = sphi 0, %s57
      %s72 = sphi 0, %s58
      %s76 = sphi 0, %s76
      %s78 = sphi 0, %s76
      %s79 = sphi 0, %s78
      %s93 = sphi 0, %s79
      %s101 = sphi 0, %s103
      %s104 = sphi 0, %s101
      %s105 = sphi 0, %s104
      %s121 = sphi 0, %s105
    $region4: #{deconv_module_forward.1} parent=1 // loop_header_branch
      %12 = sbr.rel (%p10) target = $region8
    $region5: #{deconv_module_forward.1} parent=1 // loop_body
      %s14 = ssub.s32 %s9, 1
      %s15 = ssub.s32 %s9, 2
      %s22 = sadd.s32 1, %s17
      %p23 = scmp.ge.s32.totalorder %s22, 2
      %s24 = scalar_select %p23, 0, %s22
      %s25 = sadd.s32 1, %s16
      %s26 = scalar_select %p23, %s25, %s16
      %p27 = scmp.ge.s32.totalorder %s26, 2
      %s28 = scalar_select %p27, 0, %s26
      %s29 = ssub.s32 %s16, %s28
      %p30 = scmp.eq.s32.totalorder %s29, 0
      %s32 = sadd.s32 %s31, 1
      %s33 = scalar_select %p30, %s31, %s32
      %p36 = pneg %p30
      %p37 = scmp.eq.s32.totalorder %s9, 3
      %p38 = por %p36, %p37
      %p39 = scmp.ne.s32.totalorder %s31, %s34
      %p40 = scmp.eq.s32.totalorder %s9, 0
      %p41 = por %p39, %p40
      %p42 = scmp.ne.s32.totalorder %s31, %s34
      %p43 = scmp.eq.s32.totalorder %s14, 3
      %p44 = por %p42, %p43
      %p45 = scmp.ne.s32.totalorder %s34, %s35
      %p46 = scmp.eq.s32.totalorder %s14, 0
      %p47 = por %p45, %p46
      %p48 = scmp.ne.s32.totalorder %s34, %s35
      %p49 = scmp.eq.s32.totalorder %s15, 3
      %p50 = por %p48, %p49
      %p52 = scmp.ne.s32.totalorder %s35, %s51
      %p53 = scmp.eq.s32.totalorder %s15, 0
      %p54 = por %p52, %p53
      %s56 = sadd.s32 %s55, 1
      %p59 = scmp.eq.s32.totalorder %s9, 3
      %p60 = scmp.ne.s32.totalorder %s55, %s57
      %p61 = scmp.eq.s32.totalorder %s9, 0
      %p62 = por %p60, %p61
      %p63 = scmp.ne.s32.totalorder %s55, %s57
      %p64 = scmp.eq.s32.totalorder %s14, 3
      %p65 = por %p63, %p64
      %p66 = scmp.ne.s32.totalorder %s57, %s58
      %p67 = scmp.eq.s32.totalorder %s14, 0
      %p68 = por %p66, %p67
      %p69 = scmp.ne.s32.totalorder %s57, %s58
      %p70 = scmp.eq.s32.totalorder %s15, 3
      %p71 = por %p69, %p70
      %p73 = scmp.ne.s32.totalorder %s58, %s72
      %p74 = scmp.eq.s32.totalorder %s15, 0
      %p75 = por %p73, %p74
      %s77 = sadd.s32 %s76, 1
      %p80 = scmp.eq.s32.totalorder %s9, 3
      %p81 = scmp.ne.s32.totalorder %s76, %s78
      %p82 = scmp.eq.s32.totalorder %s9, 0
      %p83 = por %p81, %p82
      %p84 = scmp.ne.s32.totalorder %s76, %s78
      %p85 = scmp.eq.s32.totalorder %s14, 3
      %p86 = por %p84, %p85
      %p87 = scmp.ne.s32.totalorder %s78, %s79
      %p88 = scmp.eq.s32.totalorder %s14, 0
      %p89 = por %p87, %p88
      %p90 = scmp.ne.s32.totalorder %s78, %s79
      %p91 = scmp.eq.s32.totalorder %s15, 3
      %p92 = por %p90, %p91
      %p94 = scmp.ne.s32.totalorder %s79, %s93
      %p95 = scmp.eq.s32.totalorder %s15, 0
      %p96 = por %p94, %p95
      %s97 = ssub.s32 %s16, %s28
      %s98 = ssub.s32 %s17, %s24
      %s99 = sor.u32 %s97, %s98
      %p100 = scmp.eq.s32.totalorder %s99, 0
      %s102 = sadd.s32 %s101, 1
      %s103 = scalar_select %p100, %s101, %s102
      %p106 = pneg %p100
      %p107 = scmp.eq.s32.totalorder %s9, 3
      %p108 = por %p106, %p107
      %p109 = scmp.ne.s32.totalorder %s101, %s104
      %p110 = scmp.eq.s32.totalorder %s9, 0
      %p111 = por %p109, %p110
      %p112 = scmp.ne.s32.totalorder %s101, %s104
      %p113 = scmp.eq.s32.totalorder %s14, 3
      %p114 = por %p112, %p113
      %p115 = scmp.ne.s32.totalorder %s104, %s105
      %p116 = scmp.eq.s32.totalorder %s14, 0
      %p117 = por %p115, %p116
      %p118 = scmp.ne.s32.totalorder %s104, %s105
      %p119 = scmp.eq.s32.totalorder %s15, 3
      %p120 = por %p118, %p119
      %p122 = scmp.ne.s32.totalorder %s105, %s121
      %p123 = scmp.eq.s32.totalorder %s15, 0
      %p124 = por %p122, %p123
      %p125 = scmp.le.s32.totalorder 1, %s9
      %p126 = scmp.lt.s32.totalorder %s9, 5
      %p127 = pnand %p125, %p126
      %p128 = pneg %p127
      // Predicated region
      $region9: #{deconv_module_forward.1} parent=5 // pred_check
        _
      $region10: #{deconv_module_forward.1} parent=5 // pred_check_branch
        %130 = sbr.rel (%p127) target = $region12
      $region11: #{deconv_module_forward.1} parent=5 // pred_region
        %s131 = ssub.s32 %s9, 1
        // Predicated region
        $region13: #{deconv_module_forward.1} parent=11 // pred_check
          %p132 = pneg %p68
        $region14: #{deconv_module_forward.1} parent=11 // pred_check_branch
          %134 = sbr.rel (%p132) target = $region16
        $region15: #{deconv_module_forward.1} parent=11 // pred_region
          _
        $region16: #{deconv_module_forward.1} parent=11 // pred_fallthru
          _
        // Predicated region
        $region17: #{deconv_module_forward.1} parent=11 // pred_check
          %p135 = pneg %p89
        $region18: #{deconv_module_forward.1} parent=11 // pred_check_branch
          %137 = sbr.rel (%p135) target = $region20
        $region19: #{deconv_module_forward.1} parent=11 // pred_region
          _
        $region20: #{deconv_module_forward.1} parent=11 // pred_fallthru
          _
      $region12: #{deconv_module_forward.1} parent=5 // pred_fallthru
        _
      %p138 = scmp.lt.s32.totalorder %s9, 4
      // Predicated region
      $region21: #{deconv_module_forward.1} parent=5 // pred_check
        %p139 = pneg %p138
      $region22: #{deconv_module_forward.1} parent=5 // pred_check_branch
        %141 = sbr.rel (%p139) target = $region24
      $region23: #{deconv_module_forward.1} parent=5 // pred_region
        // Predicated region
        $region25: #{deconv_module_forward.1} parent=23 // pred_check
          %p142 = pneg %p41
        $region26: #{deconv_module_forward.1} parent=23 // pred_check_branch
          %144 = sbr.rel (%p142) target = $region28
        $region27: #{deconv_module_forward.1} parent=23 // pred_region
          %p145 = scmp.lt.s32.totalorder %s16, 1
          %s146 = scalar_select %p145, %s16, 1
          %s147 = smul.addr %s146, 54
          %s148 = smul.addr %s147, 4
          %s149 = scalar_lea.vmem %s0, %s148
        $region28: #{deconv_module_forward.1} parent=23 // pred_fallthru
          _
      $region24: #{deconv_module_forward.1} parent=5 // pred_fallthru
        _
      %p150 = scmp.le.s32.totalorder 1, %s9
      %p151 = scmp.lt.s32.totalorder %s9, 5
      %p152 = pnand %p150, %p151
      %p153 = pneg %p152
      // Predicated region
      $region29: #{deconv_module_forward.1} parent=5 // pred_check
        _
      $region30: #{deconv_module_forward.1} parent=5 // pred_check_branch
        %155 = sbr.rel (%p152) target = $region32
      $region31: #{deconv_module_forward.1} parent=5 // pred_region
        %s156 = ssub.s32 %s9, 1
        %p157 = scmp.lt.s32.totalorder %s18, 1
        %s158 = scalar_select %p157, %s18, 1
        %s159 = smul.addr %s158, 54
        %s160 = smul.addr %s159, 4
        %s161 = scalar_lea.vmem %s0, %s160
        %p162 = pneg %p47
        %p163 = pneg %p44
        %p164 = pneg %p68
        %p165 = pneg %p65
        %p166 = pneg %p89
        %p167 = pneg %p86
        %p168 = pneg %p117
        %p169 = pneg %p114
        %s170 = sand.u32 %s104, 1
        %s171 = sand.u32 %s104, 1
        %s172 = smul.addr %s171, 256
        %s173 = scalar_lea.vmem [#allocation2], %s172
        %p174 = scmp.lt.s32.totalorder %s18, 1
        %s175 = scalar_select %p174, %s18, 1
        %s176 = smul.addr %s175, 54
        %s177 = smul.addr %s176, 4
        %s178 = scalar_lea.vmem %s0, %s177
        %s179 = smul.u32 16, %s19
        %s181 = smul.u32 %s19, 8
        %v182 = vld [vmem:[%s2] sm:$0x1]
        %s183 = smul.u32 %s181, 3
        %s184 = smul.addr %s183, 4
        %s185 = scalar_lea.vmem %s178, %s184
        %v186 = vld [vmem:[%s185] sm:$0xf]
        %v187 = vld [vmem:[%s185 + $0x4] sm:$0xf]
        %v188 = vld [vmem:[%s185 + $0xc] sm:$0xf]
        %v189 = vld [vmem:[%s185 + $0x10] sm:$0xf]
        %v190 = vld [vmem:[%s185 + $0x18] sm:$0xf]
        %v191 = vld [vmem:[%s185 + $0x1c] sm:$0xf]
        %v192 = vld [vmem:[%s185 + $0x24] sm:$0xf]
        %v193 = vld [vmem:[%s185 + $0x28] sm:$0xf]
        %v194 = vld [vmem:[%s185 + $0x30] sm:$0xf]
        %v195 = vld [vmem:[%s185 + $0x34] sm:$0xf]
        %v196 = vld [vmem:[%s185 + $0x3c] sm:$0xf]
        %v197 = vld [vmem:[%s185 + $0x40] sm:$0xf]
        %v198 = vld [vmem:[%s185 + $0x48] sm:$0xf]
        %v199 = vld [vmem:[%s185 + $0x4c] sm:$0xf]
        %v200 = vld [vmem:[%s185 + $0x54] sm:$0xf]
        %v201 = vld [vmem:[%s185 + $0x58] sm:$0xf]
        %v202 = vld [vmem:[%s185 + $0x8] sm:$0x1]
        %v203 = vld [vmem:[%s185 + $0x14] sm:$0x1]
        %v204 = vld [vmem:[%s185 + $0x20] sm:$0x1]
        %v205 = vld [vmem:[%s185 + $0x2c] sm:$0x1]
        %v206 = vld [vmem:[%s185 + $0x38] sm:$0x1]
        %v207 = vld [vmem:[%s185 + $0x44] sm:$0x1]
        %v208 = vld [vmem:[%s185 + $0x50] sm:$0x1]
        %v209 = vld [vmem:[%s185 + $0x5c] sm:$0x1]
        %vm210 = vsmask.f32 3328
        %vm211 = vsmask.f32 7440
        %vm212 = vmor %vm210, %vm211
        %v214 = vshrl.u32 %v186, 16
        %v216 = vrot.slane %v214, 4
        %v217 = vshll.u32 %v186, 16
        %v219 = vrot.slane %v217, 5
        %v220 = vor.u32 %v216, %v219
        %v221 = vrot.slane %v220, 4
        %v223 = vshll.u32 %v187, 16
        %v225 = vrot.slane %v223, 5
        %v226 = vsel %vm212, %v221, %v225
        %v227 = vshrl.u32 %v187, 16
        %v229 = vrot.slane %v227, 4
        %v230 = vor.u32 %v229, %v225
        %v231 = vrot.slane %v230, 4
        %v233 = vshll.u32 %v202, 16
        %v235 = vrot.slane %v233, 5
        %v236 = vsel %vm212, %v231, %v235
        %v238 = vshrl.u32 %v188, 16
        %v240 = vrot.slane %v238, 4
        %v241 = vshll.u32 %v188, 16
        %v243 = vrot.slane %v241, 5
        %v244 = vor.u32 %v240, %v243
        %v245 = vrot.slane %v244, 4
        %v247 = vshll.u32 %v189, 16
        %v249 = vrot.slane %v247, 5
        %v250 = vsel %vm212, %v245, %v249
        %v251 = vshrl.u32 %v189, 16
        %v253 = vrot.slane %v251, 4
        %v254 = vor.u32 %v253, %v249
        %v255 = vrot.slane %v254, 4
        %v257 = vshll.u32 %v203, 16
        %v259 = vrot.slane %v257, 5
        %v260 = vsel %vm212, %v255, %v259
        %v262 = vshrl.u32 %v190, 16
        %v264 = vrot.slane %v262, 4
        %v265 = vshll.u32 %v190, 16
        %v267 = vrot.slane %v265, 5
        %v268 = vor.u32 %v264, %v267
        %v269 = vrot.slane %v268, 4
        %v271 = vshll.u32 %v191, 16
        %v273 = vrot.slane %v271, 5
        %v274 = vsel %vm212, %v269, %v273
        %v275 = vshrl.u32 %v191, 16
        %v277 = vrot.slane %v275, 4
        %v278 = vor.u32 %v277, %v273
        %v279 = vrot.slane %v278, 4
        %v281 = vshll.u32 %v204, 16
        %v283 = vrot.slane %v281, 5
        %v284 = vsel %vm212, %v279, %v283
        %v286 = vshrl.u32 %v192, 16
        %v288 = vrot.slane %v286, 4
        %v289 = vshll.u32 %v192, 16
        %v291 = vrot.slane %v289, 5
        %v292 = vor.u32 %v288, %v291
        %v293 = vrot.slane %v292, 4
        %v295 = vshll.u32 %v193, 16
        %v297 = vrot.slane %v295, 5
        %v298 = vsel %vm212, %v293, %v297
        %v299 = vshrl.u32 %v193, 16
        %v301 = vrot.slane %v299, 4
        %v302 = vor.u32 %v301, %v297
        %v303 = vrot.slane %v302, 4
        %v305 = vshll.u32 %v205, 16
        %v307 = vrot.slane %v305, 5
        %v308 = vsel %vm212, %v303, %v307
        %v310 = vshrl.u32 %v194, 16
        %v312 = vrot.slane %v310, 4
        %v313 = vshll.u32 %v194, 16
        %v315 = vrot.slane %v313, 5
        %v316 = vor.u32 %v312, %v315
        %v317 = vrot.slane %v316, 4
        %v319 = vshll.u32 %v195, 16
        %v321 = vrot.slane %v319, 5
        %v322 = vsel %vm212, %v317, %v321
        %v323 = vshrl.u32 %v195, 16
        %v325 = vrot.slane %v323, 4
        %v326 = vor.u32 %v325, %v321
        %v327 = vrot.slane %v326, 4
        %v329 = vshll.u32 %v206, 16
        %v331 = vrot.slane %v329, 5
        %v332 = vsel %vm212, %v327, %v331
        %v334 = vshrl.u32 %v196, 16
        %v336 = vrot.slane %v334, 4
        %v337 = vshll.u32 %v196, 16
        %v339 = vrot.slane %v337, 5
        %v340 = vor.u32 %v336, %v339
        %v341 = vrot.slane %v340, 4
        %v343 = vshll.u32 %v197, 16
        %v345 = vrot.slane %v343, 5
        %v346 = vsel %vm212, %v341, %v345
        %v347 = vshrl.u32 %v197, 16
        %v349 = vrot.slane %v347, 4
        %v350 = vor.u32 %v349, %v345
        %v351 = vrot.slane %v350, 4
        %v353 = vshll.u32 %v207, 16
        %v355 = vrot.slane %v353, 5
        %v356 = vsel %vm212, %v351, %v355
        %v358 = vshrl.u32 %v198, 16
        %v360 = vrot.slane %v358, 4
        %v361 = vshll.u32 %v198, 16
        %v363 = vrot.slane %v361, 5
        %v364 = vor.u32 %v360, %v363
        %v365 = vrot.slane %v364, 4
        %v367 = vshll.u32 %v199, 16
        %v369 = vrot.slane %v367, 5
        %v370 = vsel %vm212, %v365, %v369
        %v371 = vshrl.u32 %v199, 16
        %v373 = vrot.slane %v371, 4
        %v374 = vor.u32 %v373, %v369
        %v375 = vrot.slane %v374, 4
        %v377 = vshll.u32 %v208, 16
        %v379 = vrot.slane %v377, 5
        %v380 = vsel %vm212, %v375, %v379
        %v382 = vshrl.u32 %v200, 16
        %v384 = vrot.slane %v382, 4
        %v385 = vshll.u32 %v200, 16
        %v387 = vrot.slane %v385, 5
        %v388 = vor.u32 %v384, %v387
        %v389 = vrot.slane %v388, 4
        %v391 = vshll.u32 %v201, 16
        %v393 = vrot.slane %v391, 5
        %v394 = vsel %vm212, %v389, %v393
        %v395 = vshrl.u32 %v201, 16
        %v397 = vrot.slane %v395, 4
        %v398 = vor.u32 %v397, %v393
        %v399 = vrot.slane %v398, 4
        %v401 = vshll.u32 %v209, 16
        %v403 = vrot.slane %v401, 5
        %v404 = vsel %vm212, %v399, %v403
        %v405 = vld [vmem:[%s185] sm:$0xe]
        %v406 = vld [vmem:[%s185 + $0xc] sm:$0xe]
        %v407 = vld [vmem:[%s185 + $0x18] sm:$0xe]
        %v408 = vld [vmem:[%s185 + $0x24] sm:$0xe]
        %v409 = vld [vmem:[%s185 + $0x30] sm:$0xe]
        %v410 = vld [vmem:[%s185 + $0x3c] sm:$0xe]
        %v411 = vld [vmem:[%s185 + $0x48] sm:$0xe]
        %v412 = vld [vmem:[%s185 + $0x54] sm:$0xe]
        %vm437 = vcmask 1042432
        %vm438 = vcmask 1046532
        %vm439 = vmor %vm437, %vm438
        %v440 = vrot.slane %v405, 5
        %v441 = vrot.slane %v440, 4
        %v442 = vrot.slane %v187, 5
        %v443 = vsel %vm439, %v441, %v442
        %v444 = vrot.slane %v442, 4
        %v445 = vrot.slane %v202, 5
        %v446 = vsel %vm439, %v444, %v445
        %v447 = vrot.slane %v406, 5
        %v448 = vrot.slane %v447, 4
        %v449 = vrot.slane %v189, 5
        %v450 = vsel %vm439, %v448, %v449
        %v451 = vrot.slane %v449, 4
        %v452 = vrot.slane %v203, 5
        %v453 = vsel %vm439, %v451, %v452
        %v454 = vrot.slane %v407, 5
        %v455 = vrot.slane %v454, 4
        %v456 = vrot.slane %v191, 5
        %v457 = vsel %vm439, %v455, %v456
        %v458 = vrot.slane %v456, 4
        %v459 = vrot.slane %v204, 5
        %v460 = vsel %vm439, %v458, %v459
        %v461 = vrot.slane %v408, 5
        %v462 = vrot.slane %v461, 4
        %v463 = vrot.slane %v193, 5
        %v464 = vsel %vm439, %v462, %v463
        %v465 = vrot.slane %v463, 4
        %v466 = vrot.slane %v205, 5
        %v467 = vsel %vm439, %v465, %v466
        %v468 = vrot.slane %v409, 5
        %v469 = vrot.slane %v468, 4
        %v470 = vrot.slane %v195, 5
        %v471 = vsel %vm439, %v469, %v470
        %v472 = vrot.slane %v470, 4
        %v473 = vrot.slane %v206, 5
        %v474 = vsel %vm439, %v472, %v473
        %v475 = vrot.slane %v410, 5
        %v476 = vrot.slane %v475, 4
        %v477 = vrot.slane %v197, 5
        %v478 = vsel %vm439, %v476, %v477
        %v479 = vrot.slane %v477, 4
        %v480 = vrot.slane %v207, 5
        %v481 = vsel %vm439, %v479, %v480
        %v482 = vrot.slane %v411, 5
        %v483 = vrot.slane %v482, 4
        %v484 = vrot.slane %v199, 5
        %v485 = vsel %vm439, %v483, %v484
        %v486 = vrot.slane %v484, 4
        %v487 = vrot.slane %v208, 5
        %v488 = vsel %vm439, %v486, %v487
        %v489 = vrot.slane %v412, 5
        %v490 = vrot.slane %v489, 4
        %v491 = vrot.slane %v201, 5
        %v492 = vsel %vm439, %v490, %v491
        %v493 = vrot.slane %v491, 4
        %v494 = vrot.slane %v209, 5
        %v495 = vsel %vm439, %v493, %v494
        %s496 = sadd.s32 %s181, 1
        %s497 = smul.u32 %s496, 3
        %s498 = smul.addr %s497, 4
        %s499 = scalar_lea.vmem %s178, %s498
        %v500 = vld [vmem:[%s499] sm:$0xf]
        %v501 = vld [vmem:[%s499 + $0x4] sm:$0xf]
        %v502 = vld [vmem:[%s499 + $0xc] sm:$0xf]
        %v503 = vld [vmem:[%s499 + $0x10] sm:$0xf]
        %v504 = vld [vmem:[%s499 + $0x18] sm:$0xf]
        %v505 = vld [vmem:[%s499 + $0x1c] sm:$0xf]
        %v506 = vld [vmem:[%s499 + $0x24] sm:$0xf]
        %v507 = vld [vmem:[%s499 + $0x28] sm:$0xf]
        %v508 = vld [vmem:[%s499 + $0x30] sm:$0xf]
        %v509 = vld [vmem:[%s499 + $0x34] sm:$0xf]
        %v510 = vld [vmem:[%s499 + $0x3c] sm:$0xf]
        %v511 = vld [vmem:[%s499 + $0x40] sm:$0xf]
        %v512 = vld [vmem:[%s499 + $0x48] sm:$0xf]
        %v513 = vld [vmem:[%s499 + $0x4c] sm:$0xf]
        %v514 = vld [vmem:[%s499 + $0x54] sm:$0xf]
        %v515 = vld [vmem:[%s499 + $0x58] sm:$0xf]
        %v516 = vld [vmem:[%s499 + $0x8] sm:$0x1]
        %v517 = vld [vmem:[%s499 + $0x14] sm:$0x1]
        %v518 = vld [vmem:[%s499 + $0x20] sm:$0x1]
        %v519 = vld [vmem:[%s499 + $0x2c] sm:$0x1]
        %v520 = vld [vmem:[%s499 + $0x38] sm:$0x1]
        %v521 = vld [vmem:[%s499 + $0x44] sm:$0x1]
        %v522 = vld [vmem:[%s499 + $0x50] sm:$0x1]
        %v523 = vld [vmem:[%s499 + $0x5c] sm:$0x1]
        %v525 = vshrl.u32 %v500, 16
        %v527 = vrot.slane %v525, 4
        %v528 = vshll.u32 %v500, 16
        %v530 = vrot.slane %v528, 5
        %v531 = vor.u32 %v527, %v530
        %v532 = vrot.slane %v531, 4
        %v534 = vshll.u32 %v501, 16
        %v536 = vrot.slane %v534, 5
        %v537 = vsel %vm212, %v532, %v536
        %v538 = vshrl.u32 %v501, 16
        %v540 = vrot.slane %v538, 4
        %v541 = vor.u32 %v540, %v536
        %v542 = vrot.slane %v541, 4
        %v544 = vshll.u32 %v516, 16
        %v546 = vrot.slane %v544, 5
        %v547 = vsel %vm212, %v542, %v546
        %v549 = vshrl.u32 %v502, 16
        %v551 = vrot.slane %v549, 4
        %v552 = vshll.u32 %v502, 16
        %v554 = vrot.slane %v552, 5
        %v555 = vor.u32 %v551, %v554
        %v556 = vrot.slane %v555, 4
        %v558 = vshll.u32 %v503, 16
        %v560 = vrot.slane %v558, 5
        %v561 = vsel %vm212, %v556, %v560
        %v562 = vshrl.u32 %v503, 16
        %v564 = vrot.slane %v562, 4
        %v565 = vor.u32 %v564, %v560
        %v566 = vrot.slane %v565, 4
        %v568 = vshll.u32 %v517, 16
        %v570 = vrot.slane %v568, 5
        %v571 = vsel %vm212, %v566, %v570
        %v573 = vshrl.u32 %v504, 16
        %v575 = vrot.slane %v573, 4
        %v576 = vshll.u32 %v504, 16
        %v578 = vrot.slane %v576, 5
        %v579 = vor.u32 %v575, %v578
        %v580 = vrot.slane %v579, 4
        %v582 = vshll.u32 %v505, 16
        %v584 = vrot.slane %v582, 5
        %v585 = vsel %vm212, %v580, %v584
        %v586 = vshrl.u32 %v505, 16
        %v588 = vrot.slane %v586, 4
        %v589 = vor.u32 %v588, %v584
        %v590 = vrot.slane %v589, 4
        %v592 = vshll.u32 %v518, 16
        %v594 = vrot.slane %v592, 5
        %v595 = vsel %vm212, %v590, %v594
        %v597 = vshrl.u32 %v506, 16
        %v599 = vrot.slane %v597, 4
        %v600 = vshll.u32 %v506, 16
        %v602 = vrot.slane %v600, 5
        %v603 = vor.u32 %v599, %v602
        %v604 = vrot.slane %v603, 4
        %v606 = vshll.u32 %v507, 16
        %v608 = vrot.slane %v606, 5
        %v609 = vsel %vm212, %v604, %v608
        %v610 = vshrl.u32 %v507, 16
        %v612 = vrot.slane %v610, 4
        %v613 = vor.u32 %v612, %v608
        %v614 = vrot.slane %v613, 4
        %v616 = vshll.u32 %v519, 16
        %v618 = vrot.slane %v616, 5
        %v619 = vsel %vm212, %v614, %v618
        %v621 = vshrl.u32 %v508, 16
        %v623 = vrot.slane %v621, 4
        %v624 = vshll.u32 %v508, 16
        %v626 = vrot.slane %v624, 5
        %v627 = vor.u32 %v623, %v626
        %v628 = vrot.slane %v627, 4
        %v630 = vshll.u32 %v509, 16
        %v632 = vrot.slane %v630, 5
        %v633 = vsel %vm212, %v628, %v632
        %v634 = vshrl.u32 %v509, 16
        %v636 = vrot.slane %v634, 4
        %v637 = vor.u32 %v636, %v632
        %v638 = vrot.slane %v637, 4
        %v640 = vshll.u32 %v520, 16
        %v642 = vrot.slane %v640, 5
        %v643 = vsel %vm212, %v638, %v642
        %v645 = vshrl.u32 %v510, 16
        %v647 = vrot.slane %v645, 4
        %v648 = vshll.u32 %v510, 16
        %v650 = vrot.slane %v648, 5
        %v651 = vor.u32 %v647, %v650
        %v652 = vrot.slane %v651, 4
        %v654 = vshll.u32 %v511, 16
        %v656 = vrot.slane %v654, 5
        %v657 = vsel %vm212, %v652, %v656
        %v658 = vshrl.u32 %v511, 16
        %v660 = vrot.slane %v658, 4
        %v661 = vor.u32 %v660, %v656
        %v662 = vrot.slane %v661, 4
        %v664 = vshll.u32 %v521, 16
        %v666 = vrot.slane %v664, 5
        %v667 = vsel %vm212, %v662, %v666
        %v669 = vshrl.u32 %v512, 16
        %v671 = vrot.slane %v669, 4
        %v672 = vshll.u32 %v512, 16
        %v674 = vrot.slane %v672, 5
        %v675 = vor.u32 %v671, %v674
        %v676 = vrot.slane %v675, 4
        %v678 = vshll.u32 %v513, 16
        %v680 = vrot.slane %v678, 5
        %v681 = vsel %vm212, %v676, %v680
        %v682 = vshrl.u32 %v513, 16
        %v684 = vrot.slane %v682, 4
        %v685 = vor.u32 %v684, %v680
        %v686 = vrot.slane %v685, 4
        %v688 = vshll.u32 %v522, 16
        %v690 = vrot.slane %v688, 5
        %v691 = vsel %vm212, %v686, %v690
        %v693 = vshrl.u32 %v514, 16
        %v695 = vrot.slane %v693, 4
        %v696 = vshll.u32 %v514, 16
        %v698 = vrot.slane %v696, 5
        %v699 = vor.u32 %v695, %v698
        %v700 = vrot.slane %v699, 4
        %v702 = vshll.u32 %v515, 16
        %v704 = vrot.slane %v702, 5
        %v705 = vsel %vm212, %v700, %v704
        %v706 = vshrl.u32 %v515, 16
        %v708 = vrot.slane %v706, 4
        %v709 = vor.u32 %v708, %v704
        %v710 = vrot.slane %v709, 4
        %v712 = vshll.u32 %v523, 16
        %v714 = vrot.slane %v712, 5
        %v715 = vsel %vm212, %v710, %v714
        %v716 = vld [vmem:[%s499] sm:$0xe]
        %v717 = vld [vmem:[%s499 + $0xc] sm:$0xe]
        %v718 = vld [vmem:[%s499 + $0x18] sm:$0xe]
        %v719 = vld [vmem:[%s499 + $0x24] sm:$0xe]
        %v720 = vld [vmem:[%s499 + $0x30] sm:$0xe]
        %v721 = vld [vmem:[%s499 + $0x3c] sm:$0xe]
        %v722 = vld [vmem:[%s499 + $0x48] sm:$0xe]
        %v723 = vld [vmem:[%s499 + $0x54] sm:$0xe]
        %v748 = vrot.slane %v716, 5
        %v749 = vrot.slane %v748, 4
        %v750 = vrot.slane %v501, 5
        %v751 = vsel %vm439, %v749, %v750
        %v752 = vrot.slane %v750, 4
        %v753 = vrot.slane %v516, 5
        %v754 = vsel %vm439, %v752, %v753
        %v755 = vrot.slane %v717, 5
        %v756 = vrot.slane %v755, 4
        %v757 = vrot.slane %v503, 5
        %v758 = vsel %vm439, %v756, %v757
        %v759 = vrot.slane %v757, 4
        %v760 = vrot.slane %v517, 5
        %v761 = vsel %vm439, %v759, %v760
        %v762 = vrot.slane %v718, 5
        %v763 = vrot.slane %v762, 4
        %v764 = vrot.slane %v505, 5
        %v765 = vsel %vm439, %v763, %v764
        %v766 = vrot.slane %v764, 4
        %v767 = vrot.slane %v518, 5
        %v768 = vsel %vm439, %v766, %v767
        %v769 = vrot.slane %v719, 5
        %v770 = vrot.slane %v769, 4
        %v771 = vrot.slane %v507, 5
        %v772 = vsel %vm439, %v770, %v771
        %v773 = vrot.slane %v771, 4
        %v774 = vrot.slane %v519, 5
        %v775 = vsel %vm439, %v773, %v774
        %v776 = vrot.slane %v720, 5
        %v777 = vrot.slane %v776, 4
        %v778 = vrot.slane %v509, 5
        %v779 = vsel %vm439, %v777, %v778
        %v780 = vrot.slane %v778, 4
        %v781 = vrot.slane %v520, 5
        %v782 = vsel %vm439, %v780, %v781
        %v783 = vrot.slane %v721, 5
        %v784 = vrot.slane %v783, 4
        %v785 = vrot.slane %v511, 5
        %v786 = vsel %vm439, %v784, %v785
        %v787 = vrot.slane %v785, 4
        %v788 = vrot.slane %v521, 5
        %v789 = vsel %vm439, %v787, %v788
        %v790 = vrot.slane %v722, 5
        %v791 = vrot.slane %v790, 4
        %v792 = vrot.slane %v513, 5
        %v793 = vsel %vm439, %v791, %v792
        %v794 = vrot.slane %v792, 4
        %v795 = vrot.slane %v522, 5
        %v796 = vsel %vm439, %v794, %v795
        %v797 = vrot.slane %v723, 5
        %v798 = vrot.slane %v797, 4
        %v799 = vrot.slane %v515, 5
        %v800 = vsel %vm439, %v798, %v799
        %v801 = vrot.slane %v799, 4
        %v802 = vrot.slane %v523, 5
        %v803 = vsel %vm439, %v801, %v802
        %s804 = sadd.s32 %s181, 2
        %s805 = smul.u32 %s804, 3
        %s806 = smul.addr %s805, 4
        %s807 = scalar_lea.vmem %s178, %s806
        %v808 = vld [vmem:[%s807] sm:$0xf]
        %v809 = vld [vmem:[%s807 + $0x4] sm:$0xf]
        %v810 = vld [vmem:[%s807 + $0xc] sm:$0xf]
        %v811 = vld [vmem:[%s807 + $0x10] sm:$0xf]
        %v812 = vld [vmem:[%s807 + $0x18] sm:$0xf]
        %v813 = vld [vmem:[%s807 + $0x1c] sm:$0xf]
        %v814 = vld [vmem:[%s807 + $0x24] sm:$0xf]
        %v815 = vld [vmem:[%s807 + $0x28] sm:$0xf]
        %v816 = vld [vmem:[%s807 + $0x30] sm:$0xf]
        %v817 = vld [vmem:[%s807 + $0x34] sm:$0xf]
        %v818 = vld [vmem:[%s807 + $0x3c] sm:$0xf]
        %v819 = vld [vmem:[%s807 + $0x40] sm:$0xf]
        %v820 = vld [vmem:[%s807 + $0x48] sm:$0xf]
        %v821 = vld [vmem:[%s807 + $0x4c] sm:$0xf]
        %v822 = vld [vmem:[%s807 + $0x54] sm:$0xf]
        %v823 = vld [vmem:[%s807 + $0x58] sm:$0xf]
        %v824 = vld [vmem:[%s807 + $0x8] sm:$0x1]
        %v825 = vld [vmem:[%s807 + $0x14] sm:$0x1]
        %v826 = vld [vmem:[%s807 + $0x20] sm:$0x1]
        %v827 = vld [vmem:[%s807 + $0x2c] sm:$0x1]
        %v828 = vld [vmem:[%s807 + $0x38] sm:$0x1]
        %v829 = vld [vmem:[%s807 + $0x44] sm:$0x1]
        %v830 = vld [vmem:[%s807 + $0x50] sm:$0x1]
        %v831 = vld [vmem:[%s807 + $0x5c] sm:$0x1]
        %v833 = vshrl.u32 %v808, 16
        %v835 = vrot.slane %v833, 4
        %v836 = vshll.u32 %v808, 16
        %v838 = vrot.slane %v836, 5
        %v839 = vor.u32 %v835, %v838
        %v840 = vrot.slane %v839, 4
        %v842 = vshll.u32 %v809, 16
        %v844 = vrot.slane %v842, 5
        %v845 = vsel %vm212, %v840, %v844
        %v846 = vshrl.u32 %v809, 16
        %v848 = vrot.slane %v846, 4
        %v849 = vor.u32 %v848, %v844
        %v850 = vrot.slane %v849, 4
        %v852 = vshll.u32 %v824, 16
        %v854 = vrot.slane %v852, 5
        %v855 = vsel %vm212, %v850, %v854
        %v857 = vshrl.u32 %v810, 16
        %v859 = vrot.slane %v857, 4
        %v860 = vshll.u32 %v810, 16
        %v862 = vrot.slane %v860, 5
        %v863 = vor.u32 %v859, %v862
        %v864 = vrot.slane %v863, 4
        %v866 = vshll.u32 %v811, 16
        %v868 = vrot.slane %v866, 5
        %v869 = vsel %vm212, %v864, %v868
        %v870 = vshrl.u32 %v811, 16
        %v872 = vrot.slane %v870, 4
        %v873 = vor.u32 %v872, %v868
        %v874 = vrot.slane %v873, 4
        %v876 = vshll.u32 %v825, 16
        %v878 = vrot.slane %v876, 5
        %v879 = vsel %vm212, %v874, %v878
        %v881 = vshrl.u32 %v812, 16
        %v883 = vrot.slane %v881, 4
        %v884 = vshll.u32 %v812, 16
        %v886 = vrot.slane %v884, 5
        %v887 = vor.u32 %v883, %v886
        %v888 = vrot.slane %v887, 4
        %v890 = vshll.u32 %v813, 16
        %v892 = vrot.slane %v890, 5
        %v893 = vsel %vm212, %v888, %v892
        %v894 = vshrl.u32 %v813, 16
        %v896 = vrot.slane %v894, 4
        %v897 = vor.u32 %v896, %v892
        %v898 = vrot.slane %v897, 4
        %v900 = vshll.u32 %v826, 16
        %v902 = vrot.slane %v900, 5
        %v903 = vsel %vm212, %v898, %v902
        %v905 = vshrl.u32 %v814, 16
        %v907 = vrot.slane %v905, 4
        %v908 = vshll.u32 %v814, 16
        %v910 = vrot.slane %v908, 5
        %v911 = vor.u32 %v907, %v910
        %v912 = vrot.slane %v911, 4
        %v914 = vshll.u32 %v815, 16
        %v916 = vrot.slane %v914, 5
        %v917 = vsel %vm212, %v912, %v916
        %v918 = vshrl.u32 %v815, 16
        %v920 = vrot.slane %v918, 4
        %v921 = vor.u32 %v920, %v916
        %v922 = vrot.slane %v921, 4
        %v924 = vshll.u32 %v827, 16
        %v926 = vrot.slane %v924, 5
        %v927 = vsel %vm212, %v922, %v926
        %v929 = vshrl.u32 %v816, 16
        %v931 = vrot.slane %v929, 4
        %v932 = vshll.u32 %v816, 16
        %v934 = vrot.slane %v932, 5
        %v935 = vor.u32 %v931, %v934
        %v936 = vrot.slane %v935, 4
        %v938 = vshll.u32 %v817, 16
        %v940 = vrot.slane %v938, 5
        %v941 = vsel %vm212, %v936, %v940
        %v942 = vshrl.u32 %v817, 16
        %v944 = vrot.slane %v942, 4
        %v945 = vor.u32 %v944, %v940
        %v946 = vrot.slane %v945, 4
        %v948 = vshll.u32 %v828, 16
        %v950 = vrot.slane %v948, 5
        %v951 = vsel %vm212, %v946, %v950
        %v953 = vshrl.u32 %v818, 16
        %v955 = vrot.slane %v953, 4
        %v956 = vshll.u32 %v818, 16
        %v958 = vrot.slane %v956, 5
        %v959 = vor.u32 %v955, %v958
        %v960 = vrot.slane %v959, 4
        %v962 = vshll.u32 %v819, 16
        %v964 = vrot.slane %v962, 5
        %v965 = vsel %vm212, %v960, %v964
        %v966 = vshrl.u32 %v819, 16
        %v968 = vrot.slane %v966, 4
        %v969 = vor.u32 %v968, %v964
        %v970 = vrot.slane %v969, 4
        %v972 = vshll.u32 %v829, 16
        %v974 = vrot.slane %v972, 5
        %v975 = vsel %vm212, %v970, %v974
        %v977 = vshrl.u32 %v820, 16
        %v979 = vrot.slane %v977, 4
        %v980 = vshll.u32 %v820, 16
        %v982 = vrot.slane %v980, 5
        %v983 = vor.u32 %v979, %v982
        %v984 = vrot.slane %v983, 4
        %v986 = vshll.u32 %v821, 16
        %v988 = vrot.slane %v986, 5
        %v989 = vsel %vm212, %v984, %v988
        %v990 = vshrl.u32 %v821, 16
        %v992 = vrot.slane %v990, 4
        %v993 = vor.u32 %v992, %v988
        %v994 = vrot.slane %v993, 4
        %v996 = vshll.u32 %v830, 16
        %v998 = vrot.slane %v996, 5
        %v999 = vsel %vm212, %v994, %v998
        %v1001 = vshrl.u32 %v822, 16
        %v1003 = vrot.slane %v1001, 4
        %v1004 = vshll.u32 %v822, 16
        %v1006 = vrot.slane %v1004, 5
        %v1007 = vor.u32 %v1003, %v1006
        %v1008 = vrot.slane %v1007, 4
        %v1010 = vshll.u32 %v823, 16
        %v1012 = vrot.slane %v1010, 5
        %v1013 = vsel %vm212, %v1008, %v1012
        %v1014 = vshrl.u32 %v823, 16
        %v1016 = vrot.slane %v1014, 4
        %v1017 = vor.u32 %v1016, %v1012
        %v1018 = vrot.slane %v1017, 4
        %v1020 = vshll.u32 %v831, 16
        %v1022 = vrot.slane %v1020, 5
        %v1023 = vsel %vm212, %v1018, %v1022
        %v1024 = vld [vmem:[%s807] sm:$0xe]
        %v1025 = vld [vmem:[%s807 + $0xc] sm:$0xe]
        %v1026 = vld [vmem:[%s807 + $0x18] sm:$0xe]
        %v1027 = vld [vmem:[%s807 + $0x24] sm:$0xe]
        %v1028 = vld [vmem:[%s807 + $0x30] sm:$0xe]
        %v1029 = vld [vmem:[%s807 + $0x3c] sm:$0xe]
        %v1030 = vld [vmem:[%s807 + $0x48] sm:$0xe]
        %v1031 = vld [vmem:[%s807 + $0x54] sm:$0xe]
        %v1056 = vrot.slane %v1024, 5
        %v1057 = vrot.slane %v1056, 4
        %v1058 = vrot.slane %v809, 5
        %v1059 = vsel %vm439, %v1057, %v1058
        %v1060 = vrot.slane %v1058, 4
        %v1061 = vrot.slane %v824, 5
        %v1062 = vsel %vm439, %v1060, %v1061
        %v1063 = vrot.slane %v1025, 5
        %v1064 = vrot.slane %v1063, 4
        %v1065 = vrot.slane %v811, 5
        %v1066 = vsel %vm439, %v1064, %v1065
        %v1067 = vrot.slane %v1065, 4
        %v1068 = vrot.slane %v825, 5
        %v1069 = vsel %vm439, %v1067, %v1068
        %v1070 = vrot.slane %v1026, 5
        %v1071 = vrot.slane %v1070, 4
        %v1072 = vrot.slane %v813, 5
        %v1073 = vsel %vm439, %v1071, %v1072
        %v1074 = vrot.slane %v1072, 4
        %v1075 = vrot.slane %v826, 5
        %v1076 = vsel %vm439, %v1074, %v1075
        %v1077 = vrot.slane %v1027, 5
        %v1078 = vrot.slane %v1077, 4
        %v1079 = vrot.slane %v815, 5
        %v1080 = vsel %vm439, %v1078, %v1079
        %v1081 = vrot.slane %v1079, 4
        %v1082 = vrot.slane %v827, 5
        %v1083 = vsel %vm439, %v1081, %v1082
        %v1084 = vrot.slane %v1028, 5
        %v1085 = vrot.slane %v1084, 4
        %v1086 = vrot.slane %v817, 5
        %v1087 = vsel %vm439, %v1085, %v1086
        %v1088 = vrot.slane %v1086, 4
        %v1089 = vrot.slane %v828, 5
        %v1090 = vsel %vm439, %v1088, %v1089
        %v1091 = vrot.slane %v1029, 5
        %v1092 = vrot.slane %v1091, 4
        %v1093 = vrot.slane %v819, 5
        %v1094 = vsel %vm439, %v1092, %v1093
        %v1095 = vrot.slane %v1093, 4
        %v1096 = vrot.slane %v829, 5
        %v1097 = vsel %vm439, %v1095, %v1096
        %v1098 = vrot.slane %v1030, 5
        %v1099 = vrot.slane %v1098, 4
        %v1100 = vrot.slane %v821, 5
        %v1101 = vsel %vm439, %v1099, %v1100
        %v1102 = vrot.slane %v1100, 4
        %v1103 = vrot.slane %v830, 5
        %v1104 = vsel %vm439, %v1102, %v1103
        %v1105 = vrot.slane %v1031, 5
        %v1106 = vrot.slane %v1105, 4
        %v1107 = vrot.slane %v823, 5
        %v1108 = vsel %vm439, %v1106, %v1107
        %v1109 = vrot.slane %v1107, 4
        %v1110 = vrot.slane %v831, 5
        %v1111 = vsel %vm439, %v1109, %v1110
        %v1112 = vld [vmem:[%s1] sm:$0x3]
        %s1113 = scalar_lea.vmem %s1, 2
        %v1114 = vld [vmem:[%s1113] sm:$0x3]
        %v1115 = vunpack.c.l.b16 %v226
        %v1116 = vunpack.c.l.b16 %v236
        %v1117 = vunpack.c.l.b16 %v250
        %v1118 = vunpack.c.l.b16 %v260
        %v1119 = vunpack.c.l.b16 %v274
        %v1120 = vunpack.c.l.b16 %v284
        %v1121 = vunpack.c.l.b16 %v298
        %v1122 = vunpack.c.l.b16 %v308
        %v1123 = vunpack.c.l.b16 %v322
        %v1124 = vunpack.c.l.b16 %v332
        %v1125 = vunpack.c.l.b16 %v346
        %v1126 = vunpack.c.l.b16 %v356
        %v1127 = vunpack.c.l.b16 %v370
        %v1128 = vunpack.c.l.b16 %v380
        %v1129 = vunpack.c.l.b16 %v394
        %v1130 = vunpack.c.l.b16 %v404
        %v1131 = vpack.c.b16 %v1116, %v1115
        %v1132 = vpack.c.b16 %v1118, %v1117
        %v1133 = vpack.c.b16 %v1120, %v1119
        %v1134 = vpack.c.b16 %v1122, %v1121
        %v1135 = vpack.c.b16 %v1124, %v1123
        %v1136 = vpack.c.b16 %v1126, %v1125
        %v1137 = vpack.c.b16 %v1128, %v1127
        %v1138 = vpack.c.b16 %v1130, %v1129
        %vm1139 = vcmask 31744
        %v1141 = vsel %vm1139, %v1131, 0
        %v1144 = vsel %vm1139, %v1132, 0
        %v1147 = vsel %vm1139, %v1133, 0
        %v1150 = vsel %vm1139, %v1134, 0
        %v1153 = vsel %vm1139, %v1135, 0
        %v1156 = vsel %vm1139, %v1136, 0
        %v1159 = vsel %vm1139, %v1137, 0
        %v1162 = vsel %vm1139, %v1138, 0
        %vm1164 = vcmask 1041408
        %v1166 = vsel %vm1164, %v1114, 0
        %1168 = vmatprep.subr.bf16.mxu0 0
        %1169 = vmatpush1.bf16.msra.mxu0 0
        %1170 = vmatprep.subr.bf16.mxu0 0
        %1171 = vmatpush1.bf16.msra.mxu0 0
        %1172 = vmatprep.subr.bf16.mxu0 0
        %1173 = vmatpush1.bf16.msra.mxu0 0
        %1174 = vmatprep.subr.bf16.mxu0 0
        %1175 = vmatpush1.bf16.msra.mxu0 0
        %1176 = vmatprep.subr.bf16.mxu0 0
        %1177 = vmatpush1.bf16.msra.mxu0 0
        %1178 = vmatprep.subr.bf16.mxu0 0
        %1179 = vmatpush1.bf16.msra.mxu0 0
        %1180 = vmatprep.subr.bf16.mxu0 0
        %1181 = vmatpush1.bf16.msra.mxu0 0
        %1182 = vmatprep.subr.bf16.mxu0 0
        %1183 = vmatpush1.bf16.msra.mxu0 %v1166
        %1184 = vmatprep.subr.bf16.mxu0 0
        %1185 = vmatpush2.bf16.msra.mxu0 0
        %1186 = vmatprep.subr.bf16.mxu0 0
        %1187 = vmatpush2.bf16.msra.mxu0 0
        %1188 = vmatprep.subr.bf16.mxu0 0
        %1189 = vmatpush2.bf16.msra.mxu0 0
        %1190 = vmatprep.subr.bf16.mxu0 0
        %1191 = vmatpush2.bf16.msra.mxu0 0
        %1192 = vmatprep.subr.bf16.mxu0 0
        %1193 = vmatpush2.bf16.msra.mxu0 0
        %1194 = vmatprep.subr.bf16.mxu0 0
        %1195 = vmatpush2.bf16.msra.mxu0 0
        %1196 = vmatprep.subr.bf16.mxu0 0
        %1197 = vmatpush2.bf16.msra.mxu0 0
        %1198 = vmatprep.subr.bf16.mxu0 0
        %1199 = vmatpush2.bf16.msra.mxu0 0
        %1200 = vmatprep.mubr.bf16.mxu0 0
        %1201 = vmatmul.mubr.bf16.gmra.mxu0 %v1141
        %v1202 = vpop.f32.mrf.mxu0
        %v1203 = vadd.f32 0.0, %v1202
        %v1204 = vpop.f32.mrf.mxu0
        %v1205 = vpop.f32.mrf.mxu0
        %v1206 = vadd.f32 0.0, %v1205
        %v1207 = vpop.f32.mrf.mxu0
        %1208 = vmatprep.mubr.bf16.mxu0 0
        %1209 = vmatmul.mubr.bf16.gmra.mxu0 %v1144
        %v1210 = vpop.f32.mrf.mxu0
        %v1211 = vadd.f32 0.0, %v1210
        %v1212 = vpop.f32.mrf.mxu0
        %v1213 = vpop.f32.mrf.mxu0
        %v1214 = vadd.f32 0.0, %v1213
        %v1215 = vpop.f32.mrf.mxu0
        %1216 = vmatprep.mubr.bf16.mxu0 0
        %1217 = vmatmul.mubr.bf16.gmra.mxu0 %v1147
        %v1218 = vpop.f32.mrf.mxu0
        %v1219 = vadd.f32 0.0, %v1218
        %v1220 = vpop.f32.mrf.mxu0
        %v1221 = vpop.f32.mrf.mxu0
        %v1222 = vadd.f32 0.0, %v1221
        %v1223 = vpop.f32.mrf.mxu0
        %1224 = vmatprep.mubr.bf16.mxu0 0
        %1225 = vmatmul.mubr.bf16.gmra.mxu0 %v1150
        %v1226 = vpop.f32.mrf.mxu0
        %v1227 = vadd.f32 0.0, %v1226
        %v1228 = vpop.f32.mrf.mxu0
        %v1229 = vpop.f32.mrf.mxu0
        %v1230 = vadd.f32 0.0, %v1229
        %v1231 = vpop.f32.mrf.mxu0
        %1232 = vmatprep.mubr.bf16.mxu0 0
        %1233 = vmatmul.mubr.bf16.gmra.mxu0 %v1153
        %v1234 = vpop.f32.mrf.mxu0
        %v1235 = vadd.f32 0.0, %v1234
        %v1236 = vpop.f32.mrf.mxu0
        %v1237 = vpop.f32.mrf.mxu0
        %v1238 = vadd.f32 0.0, %v1237
        %v1239 = vpop.f32.mrf.mxu0
        %1240 = vmatprep.mubr.bf16.mxu0 0
        %1241 = vmatmul.mubr.bf16.gmra.mxu0 %v1156
        %v1242 = vpop.f32.mrf.mxu0
        %v1243 = vadd.f32 0.0, %v1242
        %v1244 = vpop.f32.mrf.mxu0
        %v1245 = vpop.f32.mrf.mxu0
        %v1246 = vadd.f32 0.0, %v1245
        %v1247 = vpop.f32.mrf.mxu0
        %1248 = vmatprep.mubr.bf16.mxu0 0
        %1249 = vmatmul.mubr.bf16.gmra.mxu0 %v1159
        %v1250 = vpop.f32.mrf.mxu0
        %v1251 = vadd.f32 0.0, %v1250
        %v1252 = vpop.f32.mrf.mxu0
        %v1253 = vpop.f32.mrf.mxu0
        %v1254 = vadd.f32 0.0, %v1253
        %v1255 = vpop.f32.mrf.mxu0
        %1256 = vmatprep.mubr.bf16.mxu0 0
        %1257 = vmatmul.mubr.bf16.gmra.mxu0 %v1162
        %v1258 = vpop.f32.mrf.mxu0
        %v1259 = vadd.f32 0.0, %v1258
        %v1260 = vpop.f32.mrf.mxu0
        %v1261 = vpop.f32.mrf.mxu0
        %v1262 = vadd.f32 0.0, %v1261
        %v1263 = vpop.f32.mrf.mxu0
        %1264 = vdwg.mxu0
        %v1273 = vunpack.c.l.b16 %v186
        %v1274 = vunpack.c.l.b16 %v187
        %v1275 = vunpack.c.l.b16 %v188
        %v1276 = vunpack.c.l.b16 %v189
        %v1277 = vunpack.c.l.b16 %v190
        %v1278 = vunpack.c.l.b16 %v191
        %v1279 = vunpack.c.l.b16 %v192
        %v1280 = vunpack.c.l.b16 %v193
        %v1281 = vunpack.c.l.b16 %v194
        %v1282 = vunpack.c.l.b16 %v195
        %v1283 = vunpack.c.l.b16 %v196
        %v1284 = vunpack.c.l.b16 %v197
        %v1285 = vunpack.c.l.b16 %v198
        %v1286 = vunpack.c.l.b16 %v199
        %v1287 = vunpack.c.l.b16 %v200
        %v1288 = vunpack.c.l.b16 %v201
        %v1289 = vpack.c.b16 %v1274, %v1273
        %v1290 = vpack.c.b16 %v1276, %v1275
        %v1291 = vpack.c.b16 %v1278, %v1277
        %v1292 = vpack.c.b16 %v1280, %v1279
        %v1293 = vpack.c.b16 %v1282, %v1281
        %v1294 = vpack.c.b16 %v1284, %v1283
        %v1295 = vpack.c.b16 %v1286, %v1285
        %v1296 = vpack.c.b16 %v1288, %v1287
        %v1298 = vsel %vm1139, %v1289, 0
        %v1301 = vsel %vm1139, %v1290, 0
        %v1304 = vsel %vm1139, %v1291, 0
        %v1307 = vsel %vm1139, %v1292, 0
        %v1310 = vsel %vm1139, %v1293, 0
        %v1313 = vsel %vm1139, %v1294, 0
        %v1316 = vsel %vm1139, %v1295, 0
        %v1319 = vsel %vm1139, %v1296, 0
        %v1322 = vsel %vm1164, %v1112, 0
        %1324 = vmatprep.subr.bf16.mxu0 0
        %1325 = vmatpush1.bf16.msra.mxu0 0
        %1326 = vmatprep.subr.bf16.mxu0 0
        %1327 = vmatpush1.bf16.msra.mxu0 0
        %1328 = vmatprep.subr.bf16.mxu0 0
        %1329 = vmatpush1.bf16.msra.mxu0 0
        %1330 = vmatprep.subr.bf16.mxu0 0
        %1331 = vmatpush1.bf16.msra.mxu0 0
        %1332 = vmatprep.subr.bf16.mxu0 0
        %1333 = vmatpush1.bf16.msra.mxu0 0
        %1334 = vmatprep.subr.bf16.mxu0 0
        %1335 = vmatpush1.bf16.msra.mxu0 0
        %1336 = vmatprep.subr.bf16.mxu0 0
        %1337 = vmatpush1.bf16.msra.mxu0 0
        %1338 = vmatprep.subr.bf16.mxu0 0
        %1339 = vmatpush1.bf16.msra.mxu0 %v1322
        %1340 = vmatprep.subr.bf16.mxu0 0
        %1341 = vmatpush2.bf16.msra.mxu0 0
        %1342 = vmatprep.subr.bf16.mxu0 0
        %1343 = vmatpush2.bf16.msra.mxu0 0
        %1344 = vmatprep.subr.bf16.mxu0 0
        %1345 = vmatpush2.bf16.msra.mxu0 0
        %1346 = vmatprep.subr.bf16.mxu0 0
        %1347 = vmatpush2.bf16.msra.mxu0 0
        %1348 = vmatprep.subr.bf16.mxu0 0
        %1349 = vmatpush2.bf16.msra.mxu0 0
        %1350 = vmatprep.subr.bf16.mxu0 0
        %1351 = vmatpush2.bf16.msra.mxu0 0
        %1352 = vmatprep.subr.bf16.mxu0 0
        %1353 = vmatpush2.bf16.msra.mxu0 0
        %1354 = vmatprep.subr.bf16.mxu0 0
        %1355 = vmatpush2.bf16.msra.mxu0 0
        %1356 = vmatprep.mubr.bf16.mxu0 0
        %1357 = vmatmul.mubr.bf16.gmra.mxu0 %v1298
        %v1358 = vpop.f32.mrf.mxu0
        %v1359 = vadd.f32 %v1203, %v1358
        %v1360 = vpop.f32.mrf.mxu0
        %v1361 = vpop.f32.mrf.mxu0
        %v1362 = vadd.f32 %v1206, %v1361
        %v1363 = vpop.f32.mrf.mxu0
        %1364 = vmatprep.mubr.bf16.mxu0 0
        %1365 = vmatmul.mubr.bf16.gmra.mxu0 %v1301
        %v1366 = vpop.f32.mrf.mxu0
        %v1367 = vadd.f32 %v1211, %v1366
        %v1368 = vpop.f32.mrf.mxu0
        %v1369 = vpop.f32.mrf.mxu0
        %v1370 = vadd.f32 %v1214, %v1369
        %v1371 = vpop.f32.mrf.mxu0
        %1372 = vmatprep.mubr.bf16.mxu0 0
        %1373 = vmatmul.mubr.bf16.gmra.mxu0 %v1304
        %v1374 = vpop.f32.mrf.mxu0
        %v1375 = vadd.f32 %v1219, %v1374
        %v1376 = vpop.f32.mrf.mxu0
        %v1377 = vpop.f32.mrf.mxu0
        %v1378 = vadd.f32 %v1222, %v1377
        %v1379 = vpop.f32.mrf.mxu0
        %1380 = vmatprep.mubr.bf16.mxu0 0
        %1381 = vmatmul.mubr.bf16.gmra.mxu0 %v1307
        %v1382 = vpop.f32.mrf.mxu0
        %v1383 = vadd.f32 %v1227, %v1382
        %v1384 = vpop.f32.mrf.mxu0
        %v1385 = vpop.f32.mrf.mxu0
        %v1386 = vadd.f32 %v1230, %v1385
        %v1387 = vpop.f32.mrf.mxu0
        %1388 = vmatprep.mubr.bf16.mxu0 0
        %1389 = vmatmul.mubr.bf16.gmra.mxu0 %v1310
        %v1390 = vpop.f32.mrf.mxu0
        %v1391 = vadd.f32 %v1235, %v1390
        %v1392 = vpop.f32.mrf.mxu0
        %v1393 = vpop.f32.mrf.mxu0
        %v1394 = vadd.f32 %v1238, %v1393
        %v1395 = vpop.f32.mrf.mxu0
        %1396 = vmatprep.mubr.bf16.mxu0 0
        %1397 = vmatmul.mubr.bf16.gmra.mxu0 %v1313
        %v1398 = vpop.f32.mrf.mxu0
        %v1399 = vadd.f32 %v1243, %v1398
        %v1400 = vpop.f32.mrf.mxu0
        %v1401 = vpop.f32.mrf.mxu0
        %v1402 = vadd.f32 %v1246, %v1401
        %v1403 = vpop.f32.mrf.mxu0
        %1404 = vmatprep.mubr.bf16.mxu0 0
        %1405 = vmatmul.mubr.bf16.gmra.mxu0 %v1316
        %v1406 = vpop.f32.mrf.mxu0
        %v1407 = vadd.f32 %v1251, %v1406
        %v1408 = vpop.f32.mrf.mxu0
        %v1409 = vpop.f32.mrf.mxu0
        %v1410 = vadd.f32 %v1254, %v1409
        %v1411 = vpop.f32.mrf.mxu0
        %1412 = vmatprep.mubr.bf16.mxu0 0
        %1413 = vmatmul.mubr.bf16.gmra.mxu0 %v1319
        %v1414 = vpop.f32.mrf.mxu0
        %v1415 = vadd.f32 %v1259, %v1414
        %v1416 = vpop.f32.mrf.mxu0
        %v1417 = vpop.f32.mrf.mxu0
        %v1418 = vadd.f32 %v1262, %v1417
        %v1419 = vpop.f32.mrf.mxu0
        %1420 = vdwg.mxu0
        %s1421 = scalar_lea.vmem %s1, 4
        %v1422 = vld [vmem:[%s1421] sm:$0x3]
        %v1431 = vunpack.c.l.b16 %v500
        %v1432 = vunpack.c.l.b16 %v501
        %v1433 = vunpack.c.l.b16 %v502
        %v1434 = vunpack.c.l.b16 %v503
        %v1435 = vunpack.c.l.b16 %v504
        %v1436 = vunpack.c.l.b16 %v505
        %v1437 = vunpack.c.l.b16 %v506
        %v1438 = vunpack.c.l.b16 %v507
        %v1439 = vunpack.c.l.b16 %v508
        %v1440 = vunpack.c.l.b16 %v509
        %v1441 = vunpack.c.l.b16 %v510
        %v1442 = vunpack.c.l.b16 %v511
        %v1443 = vunpack.c.l.b16 %v512
        %v1444 = vunpack.c.l.b16 %v513
        %v1445 = vunpack.c.l.b16 %v514
        %v1446 = vunpack.c.l.b16 %v515
        %v1447 = vpack.c.b16 %v1432, %v1431
        %v1448 = vpack.c.b16 %v1434, %v1433
        %v1449 = vpack.c.b16 %v1436, %v1435
        %v1450 = vpack.c.b16 %v1438, %v1437
        %v1451 = vpack.c.b16 %v1440, %v1439
        %v1452 = vpack.c.b16 %v1442, %v1441
        %v1453 = vpack.c.b16 %v1444, %v1443
        %v1454 = vpack.c.b16 %v1446, %v1445
        %v1456 = vsel %vm1139, %v1447, 0
        %v1459 = vsel %vm1139, %v1448, 0
        %v1462 = vsel %vm1139, %v1449, 0
        %v1465 = vsel %vm1139, %v1450, 0
        %v1468 = vsel %vm1139, %v1451, 0
        %v1471 = vsel %vm1139, %v1452, 0
        %v1474 = vsel %vm1139, %v1453, 0
        %v1477 = vsel %vm1139, %v1454, 0
        %v1480 = vsel %vm1164, %v1422, 0
        %1482 = vmatprep.subr.bf16.mxu0 0
        %1483 = vmatpush1.bf16.msra.mxu0 0
        %1484 = vmatprep.subr.bf16.mxu0 0
        %1485 = vmatpush1.bf16.msra.mxu0 0
        %1486 = vmatprep.subr.bf16.mxu0 0
        %1487 = vmatpush1.bf16.msra.mxu0 0
        %1488 = vmatprep.subr.bf16.mxu0 0
        %1489 = vmatpush1.bf16.msra.mxu0 0
        %1490 = vmatprep.subr.bf16.mxu0 0
        %1491 = vmatpush1.bf16.msra.mxu0 0
        %1492 = vmatprep.subr.bf16.mxu0 0
        %1493 = vmatpush1.bf16.msra.mxu0 0
        %1494 = vmatprep.subr.bf16.mxu0 0
        %1495 = vmatpush1.bf16.msra.mxu0 0
        %1496 = vmatprep.subr.bf16.mxu0 0
        %1497 = vmatpush1.bf16.msra.mxu0 %v1480
        %1498 = vmatprep.subr.bf16.mxu0 0
        %1499 = vmatpush2.bf16.msra.mxu0 0
        %1500 = vmatprep.subr.bf16.mxu0 0
        %1501 = vmatpush2.bf16.msra.mxu0 0
        %1502 = vmatprep.subr.bf16.mxu0 0
        %1503 = vmatpush2.bf16.msra.mxu0 0
        %1504 = vmatprep.subr.bf16.mxu0 0
        %1505 = vmatpush2.bf16.msra.mxu0 0
        %1506 = vmatprep.subr.bf16.mxu0 0
        %1507 = vmatpush2.bf16.msra.mxu0 0
        %1508 = vmatprep.subr.bf16.mxu0 0
        %1509 = vmatpush2.bf16.msra.mxu0 0
        %1510 = vmatprep.subr.bf16.mxu0 0
        %1511 = vmatpush2.bf16.msra.mxu0 0
        %1512 = vmatprep.subr.bf16.mxu0 0
        %1513 = vmatpush2.bf16.msra.mxu0 0
        %1514 = vmatprep.mubr.bf16.mxu0 0
        %1515 = vmatmul.mubr.bf16.gmra.mxu0 %v1456
        %v1516 = vpop.f32.mrf.mxu0
        %v1517 = vadd.f32 0.0, %v1516
        %v1518 = vpop.f32.mrf.mxu0
        %v1519 = vpop.f32.mrf.mxu0
        %v1520 = vadd.f32 0.0, %v1519
        %v1521 = vpop.f32.mrf.mxu0
        %1522 = vmatprep.mubr.bf16.mxu0 0
        %1523 = vmatmul.mubr.bf16.gmra.mxu0 %v1459
        %v1524 = vpop.f32.mrf.mxu0
        %v1525 = vadd.f32 0.0, %v1524
        %v1526 = vpop.f32.mrf.mxu0
        %v1527 = vpop.f32.mrf.mxu0
        %v1528 = vadd.f32 0.0, %v1527
        %v1529 = vpop.f32.mrf.mxu0
        %1530 = vmatprep.mubr.bf16.mxu0 0
        %1531 = vmatmul.mubr.bf16.gmra.mxu0 %v1462
        %v1532 = vpop.f32.mrf.mxu0
        %v1533 = vadd.f32 0.0, %v1532
        %v1534 = vpop.f32.mrf.mxu0
        %v1535 = vpop.f32.mrf.mxu0
        %v1536 = vadd.f32 0.0, %v1535
        %v1537 = vpop.f32.mrf.mxu0
        %1538 = vmatprep.mubr.bf16.mxu0 0
        %1539 = vmatmul.mubr.bf16.gmra.mxu0 %v1465
        %v1540 = vpop.f32.mrf.mxu0
        %v1541 = vadd.f32 0.0, %v1540
        %v1542 = vpop.f32.mrf.mxu0
        %v1543 = vpop.f32.mrf.mxu0
        %v1544 = vadd.f32 0.0, %v1543
        %v1545 = vpop.f32.mrf.mxu0
        %1546 = vmatprep.mubr.bf16.mxu0 0
        %1547 = vmatmul.mubr.bf16.gmra.mxu0 %v1468
        %v1548 = vpop.f32.mrf.mxu0
        %v1549 = vadd.f32 0.0, %v1548
        %v1550 = vpop.f32.mrf.mxu0
        %v1551 = vpop.f32.mrf.mxu0
        %v1552 = vadd.f32 0.0, %v1551
        %v1553 = vpop.f32.mrf.mxu0
        %1554 = vmatprep.mubr.bf16.mxu0 0
        %1555 = vmatmul.mubr.bf16.gmra.mxu0 %v1471
        %v1556 = vpop.f32.mrf.mxu0
        %v1557 = vadd.f32 0.0, %v1556
        %v1558 = vpop.f32.mrf.mxu0
        %v1559 = vpop.f32.mrf.mxu0
        %v1560 = vadd.f32 0.0, %v1559
        %v1561 = vpop.f32.mrf.mxu0
        %1562 = vmatprep.mubr.bf16.mxu0 0
        %1563 = vmatmul.mubr.bf16.gmra.mxu0 %v1474
        %v1564 = vpop.f32.mrf.mxu0
        %v1565 = vadd.f32 0.0, %v1564
        %v1566 = vpop.f32.mrf.mxu0
        %v1567 = vpop.f32.mrf.mxu0
        %v1568 = vadd.f32 0.0, %v1567
        %v1569 = vpop.f32.mrf.mxu0
        %1570 = vmatprep.mubr.bf16.mxu0 0
        %1571 = vmatmul.mubr.bf16.gmra.mxu0 %v1477
        %v1572 = vpop.f32.mrf.mxu0
        %v1573 = vadd.f32 0.0, %v1572
        %v1574 = vpop.f32.mrf.mxu0
        %v1575 = vpop.f32.mrf.mxu0
        %v1576 = vadd.f32 0.0, %v1575
        %v1577 = vpop.f32.mrf.mxu0
        %1578 = vdwg.mxu0
        %v1579 = vadd.f32 %v1359, %v1517
        %v1580 = vadd.f32 %v1362, %v1520
        %v1581 = vadd.f32 %v1367, %v1525
        %v1582 = vadd.f32 %v1370, %v1528
        %v1583 = vadd.f32 %v1375, %v1533
        %v1584 = vadd.f32 %v1378, %v1536
        %v1585 = vadd.f32 %v1383, %v1541
        %v1586 = vadd.f32 %v1386, %v1544
        %v1587 = vadd.f32 %v1391, %v1549
        %v1588 = vadd.f32 %v1394, %v1552
        %v1589 = vadd.f32 %v1399, %v1557
        %v1590 = vadd.f32 %v1402, %v1560
        %v1591 = vadd.f32 %v1407, %v1565
        %v1592 = vadd.f32 %v1410, %v1568
        %v1593 = vadd.f32 %v1415, %v1573
        %v1594 = vadd.f32 %v1418, %v1576
        %s1595 = scalar_lea.vmem %s1, 6
        %v1596 = vld [vmem:[%s1595] sm:$0x3]
        %v1597 = vunpack.c.l.b16 %v537
        %v1598 = vunpack.c.l.b16 %v547
        %v1599 = vunpack.c.l.b16 %v561
        %v1600 = vunpack.c.l.b16 %v571
        %v1601 = vunpack.c.l.b16 %v585
        %v1602 = vunpack.c.l.b16 %v595
        %v1603 = vunpack.c.l.b16 %v609
        %v1604 = vunpack.c.l.b16 %v619
        %v1605 = vunpack.c.l.b16 %v633
        %v1606 = vunpack.c.l.b16 %v643
        %v1607 = vunpack.c.l.b16 %v657
        %v1608 = vunpack.c.l.b16 %v667
        %v1609 = vunpack.c.l.b16 %v681
        %v1610 = vunpack.c.l.b16 %v691
        %v1611 = vunpack.c.l.b16 %v705
        %v1612 = vunpack.c.l.b16 %v715
        %v1613 = vpack.c.b16 %v1598, %v1597
        %v1614 = vpack.c.b16 %v1600, %v1599
        %v1615 = vpack.c.b16 %v1602, %v1601
        %v1616 = vpack.c.b16 %v1604, %v1603
        %v1617 = vpack.c.b16 %v1606, %v1605
        %v1618 = vpack.c.b16 %v1608, %v1607
        %v1619 = vpack.c.b16 %v1610, %v1609
        %v1620 = vpack.c.b16 %v1612, %v1611
        %v1622 = vsel %vm1139, %v1613, 0
        %v1625 = vsel %vm1139, %v1614, 0
        %v1628 = vsel %vm1139, %v1615, 0
        %v1631 = vsel %vm1139, %v1616, 0
        %v1634 = vsel %vm1139, %v1617, 0
        %v1637 = vsel %vm1139, %v1618, 0
        %v1640 = vsel %vm1139, %v1619, 0
        %v1643 = vsel %vm1139, %v1620, 0
        %v1646 = vsel %vm1164, %v1596, 0
        %1648 = vmatprep.subr.bf16.mxu0 0
        %1649 = vmatpush1.bf16.msra.mxu0 0
        %1650 = vmatprep.subr.bf16.mxu0 0
        %1651 = vmatpush1.bf16.msra.mxu0 0
        %1652 = vmatprep.subr.bf16.mxu0 0
        %1653 = vmatpush1.bf16.msra.mxu0 0
        %1654 = vmatprep.subr.bf16.mxu0 0
        %1655 = vmatpush1.bf16.msra.mxu0 0
        %1656 = vmatprep.subr.bf16.mxu0 0
        %1657 = vmatpush1.bf16.msra.mxu0 0
        %1658 = vmatprep.subr.bf16.mxu0 0
        %1659 = vmatpush1.bf16.msra.mxu0 0
        %1660 = vmatprep.subr.bf16.mxu0 0
        %1661 = vmatpush1.bf16.msra.mxu0 0
        %1662 = vmatprep.subr.bf16.mxu0 0
        %1663 = vmatpush1.bf16.msra.mxu0 %v1646
        %1664 = vmatprep.subr.bf16.mxu0 0
        %1665 = vmatpush2.bf16.msra.mxu0 0
        %1666 = vmatprep.subr.bf16.mxu0 0
        %1667 = vmatpush2.bf16.msra.mxu0 0
        %1668 = vmatprep.subr.bf16.mxu0 0
        %1669 = vmatpush2.bf16.msra.mxu0 0
        %1670 = vmatprep.subr.bf16.mxu0 0
        %1671 = vmatpush2.bf16.msra.mxu0 0
        %1672 = vmatprep.subr.bf16.mxu0 0
        %1673 = vmatpush2.bf16.msra.mxu0 0
        %1674 = vmatprep.subr.bf16.mxu0 0
        %1675 = vmatpush2.bf16.msra.mxu0 0
        %1676 = vmatprep.subr.bf16.mxu0 0
        %1677 = vmatpush2.bf16.msra.mxu0 0
        %1678 = vmatprep.subr.bf16.mxu0 0
        %1679 = vmatpush2.bf16.msra.mxu0 0
        %1680 = vmatprep.mubr.bf16.mxu0 0
        %1681 = vmatmul.mubr.bf16.gmra.mxu0 %v1622
        %v1682 = vpop.f32.mrf.mxu0
        %v1683 = vadd.f32 0.0, %v1682
        %v1684 = vpop.f32.mrf.mxu0
        %v1685 = vpop.f32.mrf.mxu0
        %v1686 = vadd.f32 0.0, %v1685
        %v1687 = vpop.f32.mrf.mxu0
        %1688 = vmatprep.mubr.bf16.mxu0 0
        %1689 = vmatmul.mubr.bf16.gmra.mxu0 %v1625
        %v1690 = vpop.f32.mrf.mxu0
        %v1691 = vadd.f32 0.0, %v1690
        %v1692 = vpop.f32.mrf.mxu0
        %v1693 = vpop.f32.mrf.mxu0
        %v1694 = vadd.f32 0.0, %v1693
        %v1695 = vpop.f32.mrf.mxu0
        %1696 = vmatprep.mubr.bf16.mxu0 0
        %1697 = vmatmul.mubr.bf16.gmra.mxu0 %v1628
        %v1698 = vpop.f32.mrf.mxu0
        %v1699 = vadd.f32 0.0, %v1698
        %v1700 = vpop.f32.mrf.mxu0
        %v1701 = vpop.f32.mrf.mxu0
        %v1702 = vadd.f32 0.0, %v1701
        %v1703 = vpop.f32.mrf.mxu0
        %1704 = vmatprep.mubr.bf16.mxu0 0
        %1705 = vmatmul.mubr.bf16.gmra.mxu0 %v1631
        %v1706 = vpop.f32.mrf.mxu0
        %v1707 = vadd.f32 0.0, %v1706
        %v1708 = vpop.f32.mrf.mxu0
        %v1709 = vpop.f32.mrf.mxu0
        %v1710 = vadd.f32 0.0, %v1709
        %v1711 = vpop.f32.mrf.mxu0
        %1712 = vmatprep.mubr.bf16.mxu0 0
        %1713 = vmatmul.mubr.bf16.gmra.mxu0 %v1634
        %v1714 = vpop.f32.mrf.mxu0
        %v1715 = vadd.f32 0.0, %v1714
        %v1716 = vpop.f32.mrf.mxu0
        %v1717 = vpop.f32.mrf.mxu0
        %v1718 = vadd.f32 0.0, %v1717
        %v1719 = vpop.f32.mrf.mxu0
        %1720 = vmatprep.mubr.bf16.mxu0 0
        %1721 = vmatmul.mubr.bf16.gmra.mxu0 %v1637
        %v1722 = vpop.f32.mrf.mxu0
        %v1723 = vadd.f32 0.0, %v1722
        %v1724 = vpop.f32.mrf.mxu0
        %v1725 = vpop.f32.mrf.mxu0
        %v1726 = vadd.f32 0.0, %v1725
        %v1727 = vpop.f32.mrf.mxu0
        %1728 = vmatprep.mubr.bf16.mxu0 0
        %1729 = vmatmul.mubr.bf16.gmra.mxu0 %v1640
        %v1730 = vpop.f32.mrf.mxu0
        %v1731 = vadd.f32 0.0, %v1730
        %v1732 = vpop.f32.mrf.mxu0
        %v1733 = vpop.f32.mrf.mxu0
        %v1734 = vadd.f32 0.0, %v1733
        %v1735 = vpop.f32.mrf.mxu0
        %1736 = vmatprep.mubr.bf16.mxu0 0
        %1737 = vmatmul.mubr.bf16.gmra.mxu0 %v1643
        %v1738 = vpop.f32.mrf.mxu0
        %v1739 = vadd.f32 0.0, %v1738
        %v1740 = vpop.f32.mrf.mxu0
        %v1741 = vpop.f32.mrf.mxu0
        %v1742 = vadd.f32 0.0, %v1741
        %v1743 = vpop.f32.mrf.mxu0
        %1744 = vdwg.mxu0
        %v1745 = vadd.f32 %v1579, %v1683
        %v1746 = vadd.f32 %v1580, %v1686
        %v1747 = vadd.f32 %v1581, %v1691
        %v1748 = vadd.f32 %v1582, %v1694
        %v1749 = vadd.f32 %v1583, %v1699
        %v1750 = vadd.f32 %v1584, %v1702
        %v1751 = vadd.f32 %v1585, %v1707
        %v1752 = vadd.f32 %v1586, %v1710
        %v1753 = vadd.f32 %v1587, %v1715
        %v1754 = vadd.f32 %v1588, %v1718
        %v1755 = vadd.f32 %v1589, %v1723
        %v1756 = vadd.f32 %v1590, %v1726
        %v1757 = vadd.f32 %v1591, %v1731
        %v1758 = vadd.f32 %v1592, %v1734
        %v1759 = vadd.f32 %v1593, %v1739
        %v1760 = vadd.f32 %v1594, %v1742
        %v1762 = vlaneseq
        %v1763 = vshrl.u32 %v1762, 7
        %v1764 = vsub.s32 0, %v1763
        %v1765 = vrot.slane %v182, %v1764
        %v1767 = vadd.f32 %v1745, %v1765
        %v1768 = vadd.f32 %v1746, %v1765
        %v1769 = vadd.f32 %v1747, %v1765
        %v1770 = vadd.f32 %v1748, %v1765
        %v1771 = vadd.f32 %v1749, %v1765
        %v1772 = vadd.f32 %v1750, %v1765
        %v1773 = vadd.f32 %v1751, %v1765
        %v1774 = vadd.f32 %v1752, %v1765
        %v1775 = vadd.f32 %v1753, %v1765
        %v1776 = vadd.f32 %v1754, %v1765
        %v1777 = vadd.f32 %v1755, %v1765
        %v1778 = vadd.f32 %v1756, %v1765
        %v1779 = vadd.f32 %v1757, %v1765
        %v1780 = vadd.f32 %v1758, %v1765
        %v1781 = vadd.f32 %v1759, %v1765
        %v1782 = vadd.f32 %v1760, %v1765
        %v1783 = vmax.f32 %v1767, 0.0
        %v1784 = vmax.f32 %v1768, 0.0
        %v1785 = vmax.f32 %v1769, 0.0
        %v1786 = vmax.f32 %v1770, 0.0
        %v1787 = vmax.f32 %v1771, 0.0
        %v1788 = vmax.f32 %v1772, 0.0
        %v1789 = vmax.f32 %v1773, 0.0
        %v1790 = vmax.f32 %v1774, 0.0
        %v1791 = vmax.f32 %v1775, 0.0
        %v1792 = vmax.f32 %v1776, 0.0
        %v1793 = vmax.f32 %v1777, 0.0
        %v1794 = vmax.f32 %v1778, 0.0
        %v1795 = vmax.f32 %v1779, 0.0
        %v1796 = vmax.f32 %v1780, 0.0
        %v1797 = vmax.f32 %v1781, 0.0
        %v1798 = vmax.f32 %v1782, 0.0
        %v1799 = vpack.c.bf16 %v1784, %v1783
        %v1800 = vpack.c.bf16 %v1786, %v1785
        %v1801 = vpack.c.bf16 %v1788, %v1787
        %v1802 = vpack.c.bf16 %v1790, %v1789
        %v1803 = vpack.c.bf16 %v1792, %v1791
        %v1804 = vpack.c.bf16 %v1794, %v1793
        %v1805 = vpack.c.bf16 %v1796, %v1795
        %v1806 = vpack.c.bf16 %v1798, %v1797
        %v1815 = vunpack.c.l.b16 %v1799
        %v1816 = vunpack.c.h.b16 %v1799
        %v1817 = vunpack.c.l.b16 %v1800
        %v1818 = vunpack.c.h.b16 %v1800
        %v1819 = vunpack.c.l.b16 %v1801
        %v1820 = vunpack.c.h.b16 %v1801
        %v1821 = vunpack.c.l.b16 %v1802
        %v1822 = vunpack.c.h.b16 %v1802
        %v1823 = vunpack.c.l.b16 %v1803
        %v1824 = vunpack.c.h.b16 %v1803
        %v1825 = vunpack.c.l.b16 %v1804
        %v1826 = vunpack.c.h.b16 %v1804
        %v1827 = vunpack.c.l.b16 %v1805
        %v1828 = vunpack.c.h.b16 %v1805
        %v1829 = vunpack.c.l.b16 %v1806
        %v1830 = vunpack.c.h.b16 %v1806
        %v1831 = vpack.c.b16 %v1815, %v1815
        %v1832 = vpack.c.b16 %v1816, %v1816
        %v1833 = vpack.c.b16 %v1817, %v1817
        %v1834 = vpack.c.b16 %v1818, %v1818
        %v1835 = vpack.c.b16 %v1819, %v1819
        %v1836 = vpack.c.b16 %v1820, %v1820
        %v1837 = vpack.c.b16 %v1821, %v1821
        %v1838 = vpack.c.b16 %v1822, %v1822
        %v1839 = vpack.c.b16 %v1823, %v1823
        %v1840 = vpack.c.b16 %v1824, %v1824
        %v1841 = vpack.c.b16 %v1825, %v1825
        %v1842 = vpack.c.b16 %v1826, %v1826
        %v1843 = vpack.c.b16 %v1827, %v1827
        %v1844 = vpack.c.b16 %v1828, %v1828
        %v1845 = vpack.c.b16 %v1829, %v1829
        %v1846 = vpack.c.b16 %v1830, %v1830
        %vm1863 = vcmask 60416
        %1864 = vst.msk [vmem:[%s173] sm:$0xf] %vm1863, %v1831
        %1865 = vst.msk [vmem:[%s173 + $0x4] sm:$0xf] %vm1863, %v1832
        %1866 = vst.msk [vmem:[%s173 + $0x8] sm:$0xf] %vm1863, %v1833
        %1867 = vst.msk [vmem:[%s173 + $0xc] sm:$0xf] %vm1863, %v1834
        %1868 = vst.msk [vmem:[%s173 + $0x10] sm:$0xf] %vm1863, %v1835
        %1869 = vst.msk [vmem:[%s173 + $0x14] sm:$0xf] %vm1863, %v1836
        %1870 = vst.msk [vmem:[%s173 + $0x18] sm:$0xf] %vm1863, %v1837
        %1871 = vst.msk [vmem:[%s173 + $0x1c] sm:$0xf] %vm1863, %v1838
        %1872 = vst.msk [vmem:[%s173 + $0x20] sm:$0xf] %vm1863, %v1839
        %1873 = vst.msk [vmem:[%s173 + $0x24] sm:$0xf] %vm1863, %v1840
        %1874 = vst.msk [vmem:[%s173 + $0x28] sm:$0xf] %vm1863, %v1841
        %1875 = vst.msk [vmem:[%s173 + $0x2c] sm:$0xf] %vm1863, %v1842
        %1876 = vst.msk [vmem:[%s173 + $0x30] sm:$0xf] %vm1863, %v1843
        %1877 = vst.msk [vmem:[%s173 + $0x34] sm:$0xf] %vm1863, %v1844
        %1878 = vst.msk [vmem:[%s173 + $0x38] sm:$0xf] %vm1863, %v1845
        %1879 = vst.msk [vmem:[%s173 + $0x3c] sm:$0xf] %vm1863, %v1846
        %s1880 = scalar_lea.vmem %s1, 8
        %v1881 = vld [vmem:[%s1880] sm:$0x3]
        %s1882 = scalar_lea.vmem %s1, 10
        %v1883 = vld [vmem:[%s1882] sm:$0x3]
        %v1884 = vunpack.c.l.b16 %v443
        %v1885 = vunpack.c.l.b16 %v446
        %v1886 = vunpack.c.l.b16 %v450
        %v1887 = vunpack.c.l.b16 %v453
        %v1888 = vunpack.c.l.b16 %v457
        %v1889 = vunpack.c.l.b16 %v460
        %v1890 = vunpack.c.l.b16 %v464
        %v1891 = vunpack.c.l.b16 %v467
        %v1892 = vunpack.c.l.b16 %v471
        %v1893 = vunpack.c.l.b16 %v474
        %v1894 = vunpack.c.l.b16 %v478
        %v1895 = vunpack.c.l.b16 %v481
        %v1896 = vunpack.c.l.b16 %v485
        %v1897 = vunpack.c.l.b16 %v488
        %v1898 = vunpack.c.l.b16 %v492
        %v1899 = vunpack.c.l.b16 %v495
        %v1900 = vpack.c.b16 %v1885, %v1884
        %v1901 = vpack.c.b16 %v1887, %v1886
        %v1902 = vpack.c.b16 %v1889, %v1888
        %v1903 = vpack.c.b16 %v1891, %v1890
        %v1904 = vpack.c.b16 %v1893, %v1892
        %v1905 = vpack.c.b16 %v1895, %v1894
        %v1906 = vpack.c.b16 %v1897, %v1896
        %v1907 = vpack.c.b16 %v1899, %v1898
        %v1909 = vsel %vm1139, %v1900, 0
        %v1912 = vsel %vm1139, %v1901, 0
        %v1915 = vsel %vm1139, %v1902, 0
        %v1918 = vsel %vm1139, %v1903, 0
        %v1921 = vsel %vm1139, %v1904, 0
        %v1924 = vsel %vm1139, %v1905, 0
        %v1927 = vsel %vm1139, %v1906, 0
        %v1930 = vsel %vm1139, %v1907, 0
        %v1933 = vsel %vm1164, %v1883, 0
        %1935 = vmatprep.subr.bf16.mxu0 0
        %1936 = vmatpush1.bf16.msra.mxu0 0
        %1937 = vmatprep.subr.bf16.mxu0 0
        %1938 = vmatpush1.bf16.msra.mxu0 0
        %1939 = vmatprep.subr.bf16.mxu0 0
        %1940 = vmatpush1.bf16.msra.mxu0 0
        %1941 = vmatprep.subr.bf16.mxu0 0
        %1942 = vmatpush1.bf16.msra.mxu0 0
        %1943 = vmatprep.subr.bf16.mxu0 0
        %1944 = vmatpush1.bf16.msra.mxu0 0
        %1945 = vmatprep.subr.bf16.mxu0 0
        %1946 = vmatpush1.bf16.msra.mxu0 0
        %1947 = vmatprep.subr.bf16.mxu0 0
        %1948 = vmatpush1.bf16.msra.mxu0 0
        %1949 = vmatprep.subr.bf16.mxu0 0
        %1950 = vmatpush1.bf16.msra.mxu0 %v1933
        %1951 = vmatprep.subr.bf16.mxu0 0
        %1952 = vmatpush2.bf16.msra.mxu0 0
        %1953 = vmatprep.subr.bf16.mxu0 0
        %1954 = vmatpush2.bf16.msra.mxu0 0
        %1955 = vmatprep.subr.bf16.mxu0 0
        %1956 = vmatpush2.bf16.msra.mxu0 0
        %1957 = vmatprep.subr.bf16.mxu0 0
        %1958 = vmatpush2.bf16.msra.mxu0 0
        %1959 = vmatprep.subr.bf16.mxu0 0
        %1960 = vmatpush2.bf16.msra.mxu0 0
        %1961 = vmatprep.subr.bf16.mxu0 0
        %1962 = vmatpush2.bf16.msra.mxu0 0
        %1963 = vmatprep.subr.bf16.mxu0 0
        %1964 = vmatpush2.bf16.msra.mxu0 0
        %1965 = vmatprep.subr.bf16.mxu0 0
        %1966 = vmatpush2.bf16.msra.mxu0 0
        %1967 = vmatprep.mubr.bf16.mxu0 0
        %1968 = vmatmul.mubr.bf16.gmra.mxu0 %v1909
        %v1969 = vpop.f32.mrf.mxu0
        %v1970 = vadd.f32 0.0, %v1969
        %v1971 = vpop.f32.mrf.mxu0
        %v1972 = vpop.f32.mrf.mxu0
        %v1973 = vadd.f32 0.0, %v1972
        %v1974 = vpop.f32.mrf.mxu0
        %1975 = vmatprep.mubr.bf16.mxu0 0
        %1976 = vmatmul.mubr.bf16.gmra.mxu0 %v1912
        %v1977 = vpop.f32.mrf.mxu0
        %v1978 = vadd.f32 0.0, %v1977
        %v1979 = vpop.f32.mrf.mxu0
        %v1980 = vpop.f32.mrf.mxu0
        %v1981 = vadd.f32 0.0, %v1980
        %v1982 = vpop.f32.mrf.mxu0
        %1983 = vmatprep.mubr.bf16.mxu0 0
        %1984 = vmatmul.mubr.bf16.gmra.mxu0 %v1915
        %v1985 = vpop.f32.mrf.mxu0
        %v1986 = vadd.f32 0.0, %v1985
        %v1987 = vpop.f32.mrf.mxu0
        %v1988 = vpop.f32.mrf.mxu0
        %v1989 = vadd.f32 0.0, %v1988
        %v1990 = vpop.f32.mrf.mxu0
        %1991 = vmatprep.mubr.bf16.mxu0 0
        %1992 = vmatmul.mubr.bf16.gmra.mxu0 %v1918
        %v1993 = vpop.f32.mrf.mxu0
        %v1994 = vadd.f32 0.0, %v1993
        %v1995 = vpop.f32.mrf.mxu0
        %v1996 = vpop.f32.mrf.mxu0
        %v1997 = vadd.f32 0.0, %v1996
        %v1998 = vpop.f32.mrf.mxu0
        %1999 = vmatprep.mubr.bf16.mxu0 0
        %2000 = vmatmul.mubr.bf16.gmra.mxu0 %v1921
        %v2001 = vpop.f32.mrf.mxu0
        %v2002 = vadd.f32 0.0, %v2001
        %v2003 = vpop.f32.mrf.mxu0
        %v2004 = vpop.f32.mrf.mxu0
        %v2005 = vadd.f32 0.0, %v2004
        %v2006 = vpop.f32.mrf.mxu0
        %2007 = vmatprep.mubr.bf16.mxu0 0
        %2008 = vmatmul.mubr.bf16.gmra.mxu0 %v1924
        %v2009 = vpop.f32.mrf.mxu0
        %v2010 = vadd.f32 0.0, %v2009
        %v2011 = vpop.f32.mrf.mxu0
        %v2012 = vpop.f32.mrf.mxu0
        %v2013 = vadd.f32 0.0, %v2012
        %v2014 = vpop.f32.mrf.mxu0
        %2015 = vmatprep.mubr.bf16.mxu0 0
        %2016 = vmatmul.mubr.bf16.gmra.mxu0 %v1927
        %v2017 = vpop.f32.mrf.mxu0
        %v2018 = vadd.f32 0.0, %v2017
        %v2019 = vpop.f32.mrf.mxu0
        %v2020 = vpop.f32.mrf.mxu0
        %v2021 = vadd.f32 0.0, %v2020
        %v2022 = vpop.f32.mrf.mxu0
        %2023 = vmatprep.mubr.bf16.mxu0 0
        %2024 = vmatmul.mubr.bf16.gmra.mxu0 %v1930
        %v2025 = vpop.f32.mrf.mxu0
        %v2026 = vadd.f32 0.0, %v2025
        %v2027 = vpop.f32.mrf.mxu0
        %v2028 = vpop.f32.mrf.mxu0
        %v2029 = vadd.f32 0.0, %v2028
        %v2030 = vpop.f32.mrf.mxu0
        %2031 = vdwg.mxu0
        %v2033 = vsel %vm1164, %v1881, 0
        %2035 = vmatprep.subr.bf16.mxu0 0
        %2036 = vmatpush1.bf16.msra.mxu0 0
        %2037 = vmatprep.subr.bf16.mxu0 0
        %2038 = vmatpush1.bf16.msra.mxu0 0
        %2039 = vmatprep.subr.bf16.mxu0 0
        %2040 = vmatpush1.bf16.msra.mxu0 0
        %2041 = vmatprep.subr.bf16.mxu0 0
        %2042 = vmatpush1.bf16.msra.mxu0 0
        %2043 = vmatprep.subr.bf16.mxu0 0
        %2044 = vmatpush1.bf16.msra.mxu0 0
        %2045 = vmatprep.subr.bf16.mxu0 0
        %2046 = vmatpush1.bf16.msra.mxu0 0
        %2047 = vmatprep.subr.bf16.mxu0 0
        %2048 = vmatpush1.bf16.msra.mxu0 0
        %2049 = vmatprep.subr.bf16.mxu0 0
        %2050 = vmatpush1.bf16.msra.mxu0 %v2033
        %2051 = vmatprep.subr.bf16.mxu0 0
        %2052 = vmatpush2.bf16.msra.mxu0 0
        %2053 = vmatprep.subr.bf16.mxu0 0
        %2054 = vmatpush2.bf16.msra.mxu0 0
        %2055 = vmatprep.subr.bf16.mxu0 0
        %2056 = vmatpush2.bf16.msra.mxu0 0
        %2057 = vmatprep.subr.bf16.mxu0 0
        %2058 = vmatpush2.bf16.msra.mxu0 0
        %2059 = vmatprep.subr.bf16.mxu0 0
        %2060 = vmatpush2.bf16.msra.mxu0 0
        %2061 = vmatprep.subr.bf16.mxu0 0
        %2062 = vmatpush2.bf16.msra.mxu0 0
        %2063 = vmatprep.subr.bf16.mxu0 0
        %2064 = vmatpush2.bf16.msra.mxu0 0
        %2065 = vmatprep.subr.bf16.mxu0 0
        %2066 = vmatpush2.bf16.msra.mxu0 0
        %2067 = vmatprep.mubr.bf16.mxu0 0
        %2068 = vmatmul.mubr.bf16.gmra.mxu0 %v1141
        %v2069 = vpop.f32.mrf.mxu0
        %v2070 = vadd.f32 %v1970, %v2069
        %v2071 = vpop.f32.mrf.mxu0
        %v2072 = vpop.f32.mrf.mxu0
        %v2073 = vadd.f32 %v1973, %v2072
        %v2074 = vpop.f32.mrf.mxu0
        %2075 = vmatprep.mubr.bf16.mxu0 0
        %2076 = vmatmul.mubr.bf16.gmra.mxu0 %v1144
        %v2077 = vpop.f32.mrf.mxu0
        %v2078 = vadd.f32 %v1978, %v2077
        %v2079 = vpop.f32.mrf.mxu0
        %v2080 = vpop.f32.mrf.mxu0
        %v2081 = vadd.f32 %v1981, %v2080
        %v2082 = vpop.f32.mrf.mxu0
        %2083 = vmatprep.mubr.bf16.mxu0 0
        %2084 = vmatmul.mubr.bf16.gmra.mxu0 %v1147
        %v2085 = vpop.f32.mrf.mxu0
        %v2086 = vadd.f32 %v1986, %v2085
        %v2087 = vpop.f32.mrf.mxu0
        %v2088 = vpop.f32.mrf.mxu0
        %v2089 = vadd.f32 %v1989, %v2088
        %v2090 = vpop.f32.mrf.mxu0
        %2091 = vmatprep.mubr.bf16.mxu0 0
        %2092 = vmatmul.mubr.bf16.gmra.mxu0 %v1150
        %v2093 = vpop.f32.mrf.mxu0
        %v2094 = vadd.f32 %v1994, %v2093
        %v2095 = vpop.f32.mrf.mxu0
        %v2096 = vpop.f32.mrf.mxu0
        %v2097 = vadd.f32 %v1997, %v2096
        %v2098 = vpop.f32.mrf.mxu0
        %2099 = vmatprep.mubr.bf16.mxu0 0
        %2100 = vmatmul.mubr.bf16.gmra.mxu0 %v1153
        %v2101 = vpop.f32.mrf.mxu0
        %v2102 = vadd.f32 %v2002, %v2101
        %v2103 = vpop.f32.mrf.mxu0
        %v2104 = vpop.f32.mrf.mxu0
        %v2105 = vadd.f32 %v2005, %v2104
        %v2106 = vpop.f32.mrf.mxu0
        %2107 = vmatprep.mubr.bf16.mxu0 0
        %2108 = vmatmul.mubr.bf16.gmra.mxu0 %v1156
        %v2109 = vpop.f32.mrf.mxu0
        %v2110 = vadd.f32 %v2010, %v2109
        %v2111 = vpop.f32.mrf.mxu0
        %v2112 = vpop.f32.mrf.mxu0
        %v2113 = vadd.f32 %v2013, %v2112
        %v2114 = vpop.f32.mrf.mxu0
        %2115 = vmatprep.mubr.bf16.mxu0 0
        %2116 = vmatmul.mubr.bf16.gmra.mxu0 %v1159
        %v2117 = vpop.f32.mrf.mxu0
        %v2118 = vadd.f32 %v2018, %v2117
        %v2119 = vpop.f32.mrf.mxu0
        %v2120 = vpop.f32.mrf.mxu0
        %v2121 = vadd.f32 %v2021, %v2120
        %v2122 = vpop.f32.mrf.mxu0
        %2123 = vmatprep.mubr.bf16.mxu0 0
        %2124 = vmatmul.mubr.bf16.gmra.mxu0 %v1162
        %v2125 = vpop.f32.mrf.mxu0
        %v2126 = vadd.f32 %v2026, %v2125
        %v2127 = vpop.f32.mrf.mxu0
        %v2128 = vpop.f32.mrf.mxu0
        %v2129 = vadd.f32 %v2029, %v2128
        %v2130 = vpop.f32.mrf.mxu0
        %2131 = vdwg.mxu0
        %s2132 = scalar_lea.vmem %s1, 12
        %v2133 = vld [vmem:[%s2132] sm:$0x3]
        %v2135 = vsel %vm1164, %v2133, 0
        %2137 = vmatprep.subr.bf16.mxu0 0
        %2138 = vmatpush1.bf16.msra.mxu0 0
        %2139 = vmatprep.subr.bf16.mxu0 0
        %2140 = vmatpush1.bf16.msra.mxu0 0
        %2141 = vmatprep.subr.bf16.mxu0 0
        %2142 = vmatpush1.bf16.msra.mxu0 0
        %2143 = vmatprep.subr.bf16.mxu0 0
        %2144 = vmatpush1.bf16.msra.mxu0 0
        %2145 = vmatprep.subr.bf16.mxu0 0
        %2146 = vmatpush1.bf16.msra.mxu0 0
        %2147 = vmatprep.subr.bf16.mxu0 0
        %2148 = vmatpush1.bf16.msra.mxu0 0
        %2149 = vmatprep.subr.bf16.mxu0 0
        %2150 = vmatpush1.bf16.msra.mxu0 0
        %2151 = vmatprep.subr.bf16.mxu0 0
        %2152 = vmatpush1.bf16.msra.mxu0 %v2135
        %2153 = vmatprep.subr.bf16.mxu0 0
        %2154 = vmatpush2.bf16.msra.mxu0 0
        %2155 = vmatprep.subr.bf16.mxu0 0
        %2156 = vmatpush2.bf16.msra.mxu0 0
        %2157 = vmatprep.subr.bf16.mxu0 0
        %2158 = vmatpush2.bf16.msra.mxu0 0
        %2159 = vmatprep.subr.bf16.mxu0 0
        %2160 = vmatpush2.bf16.msra.mxu0 0
        %2161 = vmatprep.subr.bf16.mxu0 0
        %2162 = vmatpush2.bf16.msra.mxu0 0
        %2163 = vmatprep.subr.bf16.mxu0 0
        %2164 = vmatpush2.bf16.msra.mxu0 0
        %2165 = vmatprep.subr.bf16.mxu0 0
        %2166 = vmatpush2.bf16.msra.mxu0 0
        %2167 = vmatprep.subr.bf16.mxu0 0
        %2168 = vmatpush2.bf16.msra.mxu0 0
        %2169 = vmatprep.mubr.bf16.mxu0 0
        %2170 = vmatmul.mubr.bf16.gmra.mxu0 %v1622
        %v2171 = vpop.f32.mrf.mxu0
        %v2172 = vadd.f32 0.0, %v2171
        %v2173 = vpop.f32.mrf.mxu0
        %v2174 = vpop.f32.mrf.mxu0
        %v2175 = vadd.f32 0.0, %v2174
        %v2176 = vpop.f32.mrf.mxu0
        %2177 = vmatprep.mubr.bf16.mxu0 0
        %2178 = vmatmul.mubr.bf16.gmra.mxu0 %v1625
        %v2179 = vpop.f32.mrf.mxu0
        %v2180 = vadd.f32 0.0, %v2179
        %v2181 = vpop.f32.mrf.mxu0
        %v2182 = vpop.f32.mrf.mxu0
        %v2183 = vadd.f32 0.0, %v2182
        %v2184 = vpop.f32.mrf.mxu0
        %2185 = vmatprep.mubr.bf16.mxu0 0
        %2186 = vmatmul.mubr.bf16.gmra.mxu0 %v1628
        %v2187 = vpop.f32.mrf.mxu0
        %v2188 = vadd.f32 0.0, %v2187
        %v2189 = vpop.f32.mrf.mxu0
        %v2190 = vpop.f32.mrf.mxu0
        %v2191 = vadd.f32 0.0, %v2190
        %v2192 = vpop.f32.mrf.mxu0
        %2193 = vmatprep.mubr.bf16.mxu0 0
        %2194 = vmatmul.mubr.bf16.gmra.mxu0 %v1631
        %v2195 = vpop.f32.mrf.mxu0
        %v2196 = vadd.f32 0.0, %v2195
        %v2197 = vpop.f32.mrf.mxu0
        %v2198 = vpop.f32.mrf.mxu0
        %v2199 = vadd.f32 0.0, %v2198
        %v2200 = vpop.f32.mrf.mxu0
        %2201 = vmatprep.mubr.bf16.mxu0 0
        %2202 = vmatmul.mubr.bf16.gmra.mxu0 %v1634
        %v2203 = vpop.f32.mrf.mxu0
        %v2204 = vadd.f32 0.0, %v2203
        %v2205 = vpop.f32.mrf.mxu0
        %v2206 = vpop.f32.mrf.mxu0
        %v2207 = vadd.f32 0.0, %v2206
        %v2208 = vpop.f32.mrf.mxu0
        %2209 = vmatprep.mubr.bf16.mxu0 0
        %2210 = vmatmul.mubr.bf16.gmra.mxu0 %v1637
        %v2211 = vpop.f32.mrf.mxu0
        %v2212 = vadd.f32 0.0, %v2211
        %v2213 = vpop.f32.mrf.mxu0
        %v2214 = vpop.f32.mrf.mxu0
        %v2215 = vadd.f32 0.0, %v2214
        %v2216 = vpop.f32.mrf.mxu0
        %2217 = vmatprep.mubr.bf16.mxu0 0
        %2218 = vmatmul.mubr.bf16.gmra.mxu0 %v1640
        %v2219 = vpop.f32.mrf.mxu0
        %v2220 = vadd.f32 0.0, %v2219
        %v2221 = vpop.f32.mrf.mxu0
        %v2222 = vpop.f32.mrf.mxu0
        %v2223 = vadd.f32 0.0, %v2222
        %v2224 = vpop.f32.mrf.mxu0
        %2225 = vmatprep.mubr.bf16.mxu0 0
        %2226 = vmatmul.mubr.bf16.gmra.mxu0 %v1643
        %v2227 = vpop.f32.mrf.mxu0
        %v2228 = vadd.f32 0.0, %v2227
        %v2229 = vpop.f32.mrf.mxu0
        %v2230 = vpop.f32.mrf.mxu0
        %v2231 = vadd.f32 0.0, %v2230
        %v2232 = vpop.f32.mrf.mxu0
        %2233 = vdwg.mxu0
        %v2234 = vadd.f32 %v2070, %v2172
        %v2235 = vadd.f32 %v2073, %v2175
        %v2236 = vadd.f32 %v2078, %v2180
        %v2237 = vadd.f32 %v2081, %v2183
        %v2238 = vadd.f32 %v2086, %v2188
        %v2239 = vadd.f32 %v2089, %v2191
        %v2240 = vadd.f32 %v2094, %v2196
        %v2241 = vadd.f32 %v2097, %v2199
        %v2242 = vadd.f32 %v2102, %v2204
        %v2243 = vadd.f32 %v2105, %v2207
        %v2244 = vadd.f32 %v2110, %v2212
        %v2245 = vadd.f32 %v2113, %v2215
        %v2246 = vadd.f32 %v2118, %v2220
        %v2247 = vadd.f32 %v2121, %v2223
        %v2248 = vadd.f32 %v2126, %v2228
        %v2249 = vadd.f32 %v2129, %v2231
        %s2250 = scalar_lea.vmem %s1, 14
        %v2251 = vld [vmem:[%s2250] sm:$0x3]
        %v2252 = vunpack.c.l.b16 %v751
        %v2253 = vunpack.c.l.b16 %v754
        %v2254 = vunpack.c.l.b16 %v758
        %v2255 = vunpack.c.l.b16 %v761
        %v2256 = vunpack.c.l.b16 %v765
        %v2257 = vunpack.c.l.b16 %v768
        %v2258 = vunpack.c.l.b16 %v772
        %v2259 = vunpack.c.l.b16 %v775
        %v2260 = vunpack.c.l.b16 %v779
        %v2261 = vunpack.c.l.b16 %v782
        %v2262 = vunpack.c.l.b16 %v786
        %v2263 = vunpack.c.l.b16 %v789
        %v2264 = vunpack.c.l.b16 %v793
        %v2265 = vunpack.c.l.b16 %v796
        %v2266 = vunpack.c.l.b16 %v800
        %v2267 = vunpack.c.l.b16 %v803
        %v2268 = vpack.c.b16 %v2253, %v2252
        %v2269 = vpack.c.b16 %v2255, %v2254
        %v2270 = vpack.c.b16 %v2257, %v2256
        %v2271 = vpack.c.b16 %v2259, %v2258
        %v2272 = vpack.c.b16 %v2261, %v2260
        %v2273 = vpack.c.b16 %v2263, %v2262
        %v2274 = vpack.c.b16 %v2265, %v2264
        %v2275 = vpack.c.b16 %v2267, %v2266
        %v2277 = vsel %vm1139, %v2268, 0
        %v2280 = vsel %vm1139, %v2269, 0
        %v2283 = vsel %vm1139, %v2270, 0
        %v2286 = vsel %vm1139, %v2271, 0
        %v2289 = vsel %vm1139, %v2272, 0
        %v2292 = vsel %vm1139, %v2273, 0
        %v2295 = vsel %vm1139, %v2274, 0
        %v2298 = vsel %vm1139, %v2275, 0
        %v2301 = vsel %vm1164, %v2251, 0
        %2303 = vmatprep.subr.bf16.mxu0 0
        %2304 = vmatpush1.bf16.msra.mxu0 0
        %2305 = vmatprep.subr.bf16.mxu0 0
        %2306 = vmatpush1.bf16.msra.mxu0 0
        %2307 = vmatprep.subr.bf16.mxu0 0
        %2308 = vmatpush1.bf16.msra.mxu0 0
        %2309 = vmatprep.subr.bf16.mxu0 0
        %2310 = vmatpush1.bf16.msra.mxu0 0
        %2311 = vmatprep.subr.bf16.mxu0 0
        %2312 = vmatpush1.bf16.msra.mxu0 0
        %2313 = vmatprep.subr.bf16.mxu0 0
        %2314 = vmatpush1.bf16.msra.mxu0 0
        %2315 = vmatprep.subr.bf16.mxu0 0
        %2316 = vmatpush1.bf16.msra.mxu0 0
        %2317 = vmatprep.subr.bf16.mxu0 0
        %2318 = vmatpush1.bf16.msra.mxu0 %v2301
        %2319 = vmatprep.subr.bf16.mxu0 0
        %2320 = vmatpush2.bf16.msra.mxu0 0
        %2321 = vmatprep.subr.bf16.mxu0 0
        %2322 = vmatpush2.bf16.msra.mxu0 0
        %2323 = vmatprep.subr.bf16.mxu0 0
        %2324 = vmatpush2.bf16.msra.mxu0 0
        %2325 = vmatprep.subr.bf16.mxu0 0
        %2326 = vmatpush2.bf16.msra.mxu0 0
        %2327 = vmatprep.subr.bf16.mxu0 0
        %2328 = vmatpush2.bf16.msra.mxu0 0
        %2329 = vmatprep.subr.bf16.mxu0 0
        %2330 = vmatpush2.bf16.msra.mxu0 0
        %2331 = vmatprep.subr.bf16.mxu0 0
        %2332 = vmatpush2.bf16.msra.mxu0 0
        %2333 = vmatprep.subr.bf16.mxu0 0
        %2334 = vmatpush2.bf16.msra.mxu0 0
        %2335 = vmatprep.mubr.bf16.mxu0 0
        %2336 = vmatmul.mubr.bf16.gmra.mxu0 %v2277
        %v2337 = vpop.f32.mrf.mxu0
        %v2338 = vadd.f32 0.0, %v2337
        %v2339 = vpop.f32.mrf.mxu0
        %v2340 = vpop.f32.mrf.mxu0
        %v2341 = vadd.f32 0.0, %v2340
        %v2342 = vpop.f32.mrf.mxu0
        %2343 = vmatprep.mubr.bf16.mxu0 0
        %2344 = vmatmul.mubr.bf16.gmra.mxu0 %v2280
        %v2345 = vpop.f32.mrf.mxu0
        %v2346 = vadd.f32 0.0, %v2345
        %v2347 = vpop.f32.mrf.mxu0
        %v2348 = vpop.f32.mrf.mxu0
        %v2349 = vadd.f32 0.0, %v2348
        %v2350 = vpop.f32.mrf.mxu0
        %2351 = vmatprep.mubr.bf16.mxu0 0
        %2352 = vmatmul.mubr.bf16.gmra.mxu0 %v2283
        %v2353 = vpop.f32.mrf.mxu0
        %v2354 = vadd.f32 0.0, %v2353
        %v2355 = vpop.f32.mrf.mxu0
        %v2356 = vpop.f32.mrf.mxu0
        %v2357 = vadd.f32 0.0, %v2356
        %v2358 = vpop.f32.mrf.mxu0
        %2359 = vmatprep.mubr.bf16.mxu0 0
        %2360 = vmatmul.mubr.bf16.gmra.mxu0 %v2286
        %v2361 = vpop.f32.mrf.mxu0
        %v2362 = vadd.f32 0.0, %v2361
        %v2363 = vpop.f32.mrf.mxu0
        %v2364 = vpop.f32.mrf.mxu0
        %v2365 = vadd.f32 0.0, %v2364
        %v2366 = vpop.f32.mrf.mxu0
        %2367 = vmatprep.mubr.bf16.mxu0 0
        %2368 = vmatmul.mubr.bf16.gmra.mxu0 %v2289
        %v2369 = vpop.f32.mrf.mxu0
        %v2370 = vadd.f32 0.0, %v2369
        %v2371 = vpop.f32.mrf.mxu0
        %v2372 = vpop.f32.mrf.mxu0
        %v2373 = vadd.f32 0.0, %v2372
        %v2374 = vpop.f32.mrf.mxu0
        %2375 = vmatprep.mubr.bf16.mxu0 0
        %2376 = vmatmul.mubr.bf16.gmra.mxu0 %v2292
        %v2377 = vpop.f32.mrf.mxu0
        %v2378 = vadd.f32 0.0, %v2377
        %v2379 = vpop.f32.mrf.mxu0
        %v2380 = vpop.f32.mrf.mxu0
        %v2381 = vadd.f32 0.0, %v2380
        %v2382 = vpop.f32.mrf.mxu0
        %2383 = vmatprep.mubr.bf16.mxu0 0
        %2384 = vmatmul.mubr.bf16.gmra.mxu0 %v2295
        %v2385 = vpop.f32.mrf.mxu0
        %v2386 = vadd.f32 0.0, %v2385
        %v2387 = vpop.f32.mrf.mxu0
        %v2388 = vpop.f32.mrf.mxu0
        %v2389 = vadd.f32 0.0, %v2388
        %v2390 = vpop.f32.mrf.mxu0
        %2391 = vmatprep.mubr.bf16.mxu0 0
        %2392 = vmatmul.mubr.bf16.gmra.mxu0 %v2298
        %v2393 = vpop.f32.mrf.mxu0
        %v2394 = vadd.f32 0.0, %v2393
        %v2395 = vpop.f32.mrf.mxu0
        %v2396 = vpop.f32.mrf.mxu0
        %v2397 = vadd.f32 0.0, %v2396
        %v2398 = vpop.f32.mrf.mxu0
        %2399 = vdwg.mxu0
        %v2400 = vadd.f32 %v2234, %v2338
        %v2401 = vadd.f32 %v2235, %v2341
        %v2402 = vadd.f32 %v2236, %v2346
        %v2403 = vadd.f32 %v2237, %v2349
        %v2404 = vadd.f32 %v2238, %v2354
        %v2405 = vadd.f32 %v2239, %v2357
        %v2406 = vadd.f32 %v2240, %v2362
        %v2407 = vadd.f32 %v2241, %v2365
        %v2408 = vadd.f32 %v2242, %v2370
        %v2409 = vadd.f32 %v2243, %v2373
        %v2410 = vadd.f32 %v2244, %v2378
        %v2411 = vadd.f32 %v2245, %v2381
        %v2412 = vadd.f32 %v2246, %v2386
        %v2413 = vadd.f32 %v2247, %v2389
        %v2414 = vadd.f32 %v2248, %v2394
        %v2415 = vadd.f32 %v2249, %v2397
        %v2416 = vadd.f32 %v2400, %v1765
        %v2417 = vadd.f32 %v2401, %v1765
        %v2418 = vadd.f32 %v2402, %v1765
        %v2419 = vadd.f32 %v2403, %v1765
        %v2420 = vadd.f32 %v2404, %v1765
        %v2421 = vadd.f32 %v2405, %v1765
        %v2422 = vadd.f32 %v2406, %v1765
        %v2423 = vadd.f32 %v2407, %v1765
        %v2424 = vadd.f32 %v2408, %v1765
        %v2425 = vadd.f32 %v2409, %v1765
        %v2426 = vadd.f32 %v2410, %v1765
        %v2427 = vadd.f32 %v2411, %v1765
        %v2428 = vadd.f32 %v2412, %v1765
        %v2429 = vadd.f32 %v2413, %v1765
        %v2430 = vadd.f32 %v2414, %v1765
        %v2431 = vadd.f32 %v2415, %v1765
        %v2432 = vmax.f32 %v2416, 0.0
        %v2433 = vmax.f32 %v2417, 0.0
        %v2434 = vmax.f32 %v2418, 0.0
        %v2435 = vmax.f32 %v2419, 0.0
        %v2436 = vmax.f32 %v2420, 0.0
        %v2437 = vmax.f32 %v2421, 0.0
        %v2438 = vmax.f32 %v2422, 0.0
        %v2439 = vmax.f32 %v2423, 0.0
        %v2440 = vmax.f32 %v2424, 0.0
        %v2441 = vmax.f32 %v2425, 0.0
        %v2442 = vmax.f32 %v2426, 0.0
        %v2443 = vmax.f32 %v2427, 0.0
        %v2444 = vmax.f32 %v2428, 0.0
        %v2445 = vmax.f32 %v2429, 0.0
        %v2446 = vmax.f32 %v2430, 0.0
        %v2447 = vmax.f32 %v2431, 0.0
        %v2448 = vpack.c.bf16 %v2433, %v2432
        %v2449 = vpack.c.bf16 %v2435, %v2434
        %v2450 = vpack.c.bf16 %v2437, %v2436
        %v2451 = vpack.c.bf16 %v2439, %v2438
        %v2452 = vpack.c.bf16 %v2441, %v2440
        %v2453 = vpack.c.bf16 %v2443, %v2442
        %v2454 = vpack.c.bf16 %v2445, %v2444
        %v2455 = vpack.c.bf16 %v2447, %v2446
        %v2464 = vunpack.c.l.b16 %v2448
        %v2465 = vunpack.c.h.b16 %v2448
        %v2466 = vunpack.c.l.b16 %v2449
        %v2467 = vunpack.c.h.b16 %v2449
        %v2468 = vunpack.c.l.b16 %v2450
        %v2469 = vunpack.c.h.b16 %v2450
        %v2470 = vunpack.c.l.b16 %v2451
        %v2471 = vunpack.c.h.b16 %v2451
        %v2472 = vunpack.c.l.b16 %v2452
        %v2473 = vunpack.c.h.b16 %v2452
        %v2474 = vunpack.c.l.b16 %v2453
        %v2475 = vunpack.c.h.b16 %v2453
        %v2476 = vunpack.c.l.b16 %v2454
        %v2477 = vunpack.c.h.b16 %v2454
        %v2478 = vunpack.c.l.b16 %v2455
        %v2479 = vunpack.c.h.b16 %v2455
        %v2480 = vpack.c.b16 %v2464, %v2464
        %v2481 = vpack.c.b16 %v2465, %v2465
        %v2482 = vpack.c.b16 %v2466, %v2466
        %v2483 = vpack.c.b16 %v2467, %v2467
        %v2484 = vpack.c.b16 %v2468, %v2468
        %v2485 = vpack.c.b16 %v2469, %v2469
        %v2486 = vpack.c.b16 %v2470, %v2470
        %v2487 = vpack.c.b16 %v2471, %v2471
        %v2488 = vpack.c.b16 %v2472, %v2472
        %v2489 = vpack.c.b16 %v2473, %v2473
        %v2490 = vpack.c.b16 %v2474, %v2474
        %v2491 = vpack.c.b16 %v2475, %v2475
        %v2492 = vpack.c.b16 %v2476, %v2476
        %v2493 = vpack.c.b16 %v2477, %v2477
        %v2494 = vpack.c.b16 %v2478, %v2478
        %v2495 = vpack.c.b16 %v2479, %v2479
        %s2512 = scalar_lea.vmem %s173, 64 [#allocation2]
        %2513 = vst.msk [vmem:[%s2512] sm:$0xf] %vm1863, %v2480
        %2514 = vst.msk [vmem:[%s2512 + $0x4] sm:$0xf] %vm1863, %v2481
        %2515 = vst.msk [vmem:[%s2512 + $0x8] sm:$0xf] %vm1863, %v2482
        %2516 = vst.msk [vmem:[%s2512 + $0xc] sm:$0xf] %vm1863, %v2483
        %2517 = vst.msk [vmem:[%s2512 + $0x10] sm:$0xf] %vm1863, %v2484
        %2518 = vst.msk [vmem:[%s2512 + $0x14] sm:$0xf] %vm1863, %v2485
        %2519 = vst.msk [vmem:[%s2512 + $0x18] sm:$0xf] %vm1863, %v2486
        %2520 = vst.msk [vmem:[%s2512 + $0x1c] sm:$0xf] %vm1863, %v2487
        %2521 = vst.msk [vmem:[%s2512 + $0x20] sm:$0xf] %vm1863, %v2488
        %2522 = vst.msk [vmem:[%s2512 + $0x24] sm:$0xf] %vm1863, %v2489
        %2523 = vst.msk [vmem:[%s2512 + $0x28] sm:$0xf] %vm1863, %v2490
        %2524 = vst.msk [vmem:[%s2512 + $0x2c] sm:$0xf] %vm1863, %v2491
        %2525 = vst.msk [vmem:[%s2512 + $0x30] sm:$0xf] %vm1863, %v2492
        %2526 = vst.msk [vmem:[%s2512 + $0x34] sm:$0xf] %vm1863, %v2493
        %2527 = vst.msk [vmem:[%s2512 + $0x38] sm:$0xf] %vm1863, %v2494
        %2528 = vst.msk [vmem:[%s2512 + $0x3c] sm:$0xf] %vm1863, %v2495
        %s2529 = scalar_lea.vmem %s1, 16
        %v2530 = vld [vmem:[%s2529] sm:$0x3]
        %s2531 = scalar_lea.vmem %s1, 18
        %v2532 = vld [vmem:[%s2531] sm:$0x3]
        %v2534 = vsel %vm1164, %v2532, 0
        %2536 = vmatprep.subr.bf16.mxu0 0
        %2537 = vmatpush1.bf16.msra.mxu0 0
        %2538 = vmatprep.subr.bf16.mxu0 0
        %2539 = vmatpush1.bf16.msra.mxu0 0
        %2540 = vmatprep.subr.bf16.mxu0 0
        %2541 = vmatpush1.bf16.msra.mxu0 0
        %2542 = vmatprep.subr.bf16.mxu0 0
        %2543 = vmatpush1.bf16.msra.mxu0 0
        %2544 = vmatprep.subr.bf16.mxu0 0
        %2545 = vmatpush1.bf16.msra.mxu0 0
        %2546 = vmatprep.subr.bf16.mxu0 0
        %2547 = vmatpush1.bf16.msra.mxu0 0
        %2548 = vmatprep.subr.bf16.mxu0 0
        %2549 = vmatpush1.bf16.msra.mxu0 0
        %2550 = vmatprep.subr.bf16.mxu0 0
        %2551 = vmatpush1.bf16.msra.mxu0 %v2534
        %2552 = vmatprep.subr.bf16.mxu0 0
        %2553 = vmatpush2.bf16.msra.mxu0 0
        %2554 = vmatprep.subr.bf16.mxu0 0
        %2555 = vmatpush2.bf16.msra.mxu0 0
        %2556 = vmatprep.subr.bf16.mxu0 0
        %2557 = vmatpush2.bf16.msra.mxu0 0
        %2558 = vmatprep.subr.bf16.mxu0 0
        %2559 = vmatpush2.bf16.msra.mxu0 0
        %2560 = vmatprep.subr.bf16.mxu0 0
        %2561 = vmatpush2.bf16.msra.mxu0 0
        %2562 = vmatprep.subr.bf16.mxu0 0
        %2563 = vmatpush2.bf16.msra.mxu0 0
        %2564 = vmatprep.subr.bf16.mxu0 0
        %2565 = vmatpush2.bf16.msra.mxu0 0
        %2566 = vmatprep.subr.bf16.mxu0 0
        %2567 = vmatpush2.bf16.msra.mxu0 0
        %2568 = vmatprep.mubr.bf16.mxu0 0
        %2569 = vmatmul.mubr.bf16.gmra.mxu0 %v1622
        %v2570 = vpop.f32.mrf.mxu0
        %v2571 = vadd.f32 0.0, %v2570
        %v2572 = vpop.f32.mrf.mxu0
        %v2573 = vpop.f32.mrf.mxu0
        %v2574 = vadd.f32 0.0, %v2573
        %v2575 = vpop.f32.mrf.mxu0
        %2576 = vmatprep.mubr.bf16.mxu0 0
        %2577 = vmatmul.mubr.bf16.gmra.mxu0 %v1625
        %v2578 = vpop.f32.mrf.mxu0
        %v2579 = vadd.f32 0.0, %v2578
        %v2580 = vpop.f32.mrf.mxu0
        %v2581 = vpop.f32.mrf.mxu0
        %v2582 = vadd.f32 0.0, %v2581
        %v2583 = vpop.f32.mrf.mxu0
        %2584 = vmatprep.mubr.bf16.mxu0 0
        %2585 = vmatmul.mubr.bf16.gmra.mxu0 %v1628
        %v2586 = vpop.f32.mrf.mxu0
        %v2587 = vadd.f32 0.0, %v2586
        %v2588 = vpop.f32.mrf.mxu0
        %v2589 = vpop.f32.mrf.mxu0
        %v2590 = vadd.f32 0.0, %v2589
        %v2591 = vpop.f32.mrf.mxu0
        %2592 = vmatprep.mubr.bf16.mxu0 0
        %2593 = vmatmul.mubr.bf16.gmra.mxu0 %v1631
        %v2594 = vpop.f32.mrf.mxu0
        %v2595 = vadd.f32 0.0, %v2594
        %v2596 = vpop.f32.mrf.mxu0
        %v2597 = vpop.f32.mrf.mxu0
        %v2598 = vadd.f32 0.0, %v2597
        %v2599 = vpop.f32.mrf.mxu0
        %2600 = vmatprep.mubr.bf16.mxu0 0
        %2601 = vmatmul.mubr.bf16.gmra.mxu0 %v1634
        %v2602 = vpop.f32.mrf.mxu0
        %v2603 = vadd.f32 0.0, %v2602
        %v2604 = vpop.f32.mrf.mxu0
        %v2605 = vpop.f32.mrf.mxu0
        %v2606 = vadd.f32 0.0, %v2605
        %v2607 = vpop.f32.mrf.mxu0
        %2608 = vmatprep.mubr.bf16.mxu0 0
        %2609 = vmatmul.mubr.bf16.gmra.mxu0 %v1637
        %v2610 = vpop.f32.mrf.mxu0
        %v2611 = vadd.f32 0.0, %v2610
        %v2612 = vpop.f32.mrf.mxu0
        %v2613 = vpop.f32.mrf.mxu0
        %v2614 = vadd.f32 0.0, %v2613
        %v2615 = vpop.f32.mrf.mxu0
        %2616 = vmatprep.mubr.bf16.mxu0 0
        %2617 = vmatmul.mubr.bf16.gmra.mxu0 %v1640
        %v2618 = vpop.f32.mrf.mxu0
        %v2619 = vadd.f32 0.0, %v2618
        %v2620 = vpop.f32.mrf.mxu0
        %v2621 = vpop.f32.mrf.mxu0
        %v2622 = vadd.f32 0.0, %v2621
        %v2623 = vpop.f32.mrf.mxu0
        %2624 = vmatprep.mubr.bf16.mxu0 0
        %2625 = vmatmul.mubr.bf16.gmra.mxu0 %v1643
        %v2626 = vpop.f32.mrf.mxu0
        %v2627 = vadd.f32 0.0, %v2626
        %v2628 = vpop.f32.mrf.mxu0
        %v2629 = vpop.f32.mrf.mxu0
        %v2630 = vadd.f32 0.0, %v2629
        %v2631 = vpop.f32.mrf.mxu0
        %2632 = vdwg.mxu0
        %v2634 = vsel %vm1164, %v2530, 0
        %2636 = vmatprep.subr.bf16.mxu0 0
        %2637 = vmatpush1.bf16.msra.mxu0 0
        %2638 = vmatprep.subr.bf16.mxu0 0
        %2639 = vmatpush1.bf16.msra.mxu0 0
        %2640 = vmatprep.subr.bf16.mxu0 0
        %2641 = vmatpush1.bf16.msra.mxu0 0
        %2642 = vmatprep.subr.bf16.mxu0 0
        %2643 = vmatpush1.bf16.msra.mxu0 0
        %2644 = vmatprep.subr.bf16.mxu0 0
        %2645 = vmatpush1.bf16.msra.mxu0 0
        %2646 = vmatprep.subr.bf16.mxu0 0
        %2647 = vmatpush1.bf16.msra.mxu0 0
        %2648 = vmatprep.subr.bf16.mxu0 0
        %2649 = vmatpush1.bf16.msra.mxu0 0
        %2650 = vmatprep.subr.bf16.mxu0 0
        %2651 = vmatpush1.bf16.msra.mxu0 %v2634
        %2652 = vmatprep.subr.bf16.mxu0 0
        %2653 = vmatpush2.bf16.msra.mxu0 0
        %2654 = vmatprep.subr.bf16.mxu0 0
        %2655 = vmatpush2.bf16.msra.mxu0 0
        %2656 = vmatprep.subr.bf16.mxu0 0
        %2657 = vmatpush2.bf16.msra.mxu0 0
        %2658 = vmatprep.subr.bf16.mxu0 0
        %2659 = vmatpush2.bf16.msra.mxu0 0
        %2660 = vmatprep.subr.bf16.mxu0 0
        %2661 = vmatpush2.bf16.msra.mxu0 0
        %2662 = vmatprep.subr.bf16.mxu0 0
        %2663 = vmatpush2.bf16.msra.mxu0 0
        %2664 = vmatprep.subr.bf16.mxu0 0
        %2665 = vmatpush2.bf16.msra.mxu0 0
        %2666 = vmatprep.subr.bf16.mxu0 0
        %2667 = vmatpush2.bf16.msra.mxu0 0
        %2668 = vmatprep.mubr.bf16.mxu0 0
        %2669 = vmatmul.mubr.bf16.gmra.mxu0 %v1456
        %v2670 = vpop.f32.mrf.mxu0
        %v2671 = vadd.f32 %v2571, %v2670
        %v2672 = vpop.f32.mrf.mxu0
        %v2673 = vpop.f32.mrf.mxu0
        %v2674 = vadd.f32 %v2574, %v2673
        %v2675 = vpop.f32.mrf.mxu0
        %2676 = vmatprep.mubr.bf16.mxu0 0
        %2677 = vmatmul.mubr.bf16.gmra.mxu0 %v1459
        %v2678 = vpop.f32.mrf.mxu0
        %v2679 = vadd.f32 %v2579, %v2678
        %v2680 = vpop.f32.mrf.mxu0
        %v2681 = vpop.f32.mrf.mxu0
        %v2682 = vadd.f32 %v2582, %v2681
        %v2683 = vpop.f32.mrf.mxu0
        %2684 = vmatprep.mubr.bf16.mxu0 0
        %2685 = vmatmul.mubr.bf16.gmra.mxu0 %v1462
        %v2686 = vpop.f32.mrf.mxu0
        %v2687 = vadd.f32 %v2587, %v2686
        %v2688 = vpop.f32.mrf.mxu0
        %v2689 = vpop.f32.mrf.mxu0
        %v2690 = vadd.f32 %v2590, %v2689
        %v2691 = vpop.f32.mrf.mxu0
        %2692 = vmatprep.mubr.bf16.mxu0 0
        %2693 = vmatmul.mubr.bf16.gmra.mxu0 %v1465
        %v2694 = vpop.f32.mrf.mxu0
        %v2695 = vadd.f32 %v2595, %v2694
        %v2696 = vpop.f32.mrf.mxu0
        %v2697 = vpop.f32.mrf.mxu0
        %v2698 = vadd.f32 %v2598, %v2697
        %v2699 = vpop.f32.mrf.mxu0
        %2700 = vmatprep.mubr.bf16.mxu0 0
        %2701 = vmatmul.mubr.bf16.gmra.mxu0 %v1468
        %v2702 = vpop.f32.mrf.mxu0
        %v2703 = vadd.f32 %v2603, %v2702
        %v2704 = vpop.f32.mrf.mxu0
        %v2705 = vpop.f32.mrf.mxu0
        %v2706 = vadd.f32 %v2606, %v2705
        %v2707 = vpop.f32.mrf.mxu0
        %2708 = vmatprep.mubr.bf16.mxu0 0
        %2709 = vmatmul.mubr.bf16.gmra.mxu0 %v1471
        %v2710 = vpop.f32.mrf.mxu0
        %v2711 = vadd.f32 %v2611, %v2710
        %v2712 = vpop.f32.mrf.mxu0
        %v2713 = vpop.f32.mrf.mxu0
        %v2714 = vadd.f32 %v2614, %v2713
        %v2715 = vpop.f32.mrf.mxu0
        %2716 = vmatprep.mubr.bf16.mxu0 0
        %2717 = vmatmul.mubr.bf16.gmra.mxu0 %v1474
        %v2718 = vpop.f32.mrf.mxu0
        %v2719 = vadd.f32 %v2619, %v2718
        %v2720 = vpop.f32.mrf.mxu0
        %v2721 = vpop.f32.mrf.mxu0
        %v2722 = vadd.f32 %v2622, %v2721
        %v2723 = vpop.f32.mrf.mxu0
        %2724 = vmatprep.mubr.bf16.mxu0 0
        %2725 = vmatmul.mubr.bf16.gmra.mxu0 %v1477
        %v2726 = vpop.f32.mrf.mxu0
        %v2727 = vadd.f32 %v2627, %v2726
        %v2728 = vpop.f32.mrf.mxu0
        %v2729 = vpop.f32.mrf.mxu0
        %v2730 = vadd.f32 %v2630, %v2729
        %v2731 = vpop.f32.mrf.mxu0
        %2732 = vdwg.mxu0
        %s2733 = scalar_lea.vmem %s1, 20
        %v2734 = vld [vmem:[%s2733] sm:$0x3]
        %v2743 = vunpack.c.l.b16 %v808
        %v2744 = vunpack.c.l.b16 %v809
        %v2745 = vunpack.c.l.b16 %v810
        %v2746 = vunpack.c.l.b16 %v811
        %v2747 = vunpack.c.l.b16 %v812
        %v2748 = vunpack.c.l.b16 %v813
        %v2749 = vunpack.c.l.b16 %v814
        %v2750 = vunpack.c.l.b16 %v815
        %v2751 = vunpack.c.l.b16 %v816
        %v2752 = vunpack.c.l.b16 %v817
        %v2753 = vunpack.c.l.b16 %v818
        %v2754 = vunpack.c.l.b16 %v819
        %v2755 = vunpack.c.l.b16 %v820
        %v2756 = vunpack.c.l.b16 %v821
        %v2757 = vunpack.c.l.b16 %v822
        %v2758 = vunpack.c.l.b16 %v823
        %v2759 = vpack.c.b16 %v2744, %v2743
        %v2760 = vpack.c.b16 %v2746, %v2745
        %v2761 = vpack.c.b16 %v2748, %v2747
        %v2762 = vpack.c.b16 %v2750, %v2749
        %v2763 = vpack.c.b16 %v2752, %v2751
        %v2764 = vpack.c.b16 %v2754, %v2753
        %v2765 = vpack.c.b16 %v2756, %v2755
        %v2766 = vpack.c.b16 %v2758, %v2757
        %v2768 = vsel %vm1139, %v2759, 0
        %v2771 = vsel %vm1139, %v2760, 0
        %v2774 = vsel %vm1139, %v2761, 0
        %v2777 = vsel %vm1139, %v2762, 0
        %v2780 = vsel %vm1139, %v2763, 0
        %v2783 = vsel %vm1139, %v2764, 0
        %v2786 = vsel %vm1139, %v2765, 0
        %v2789 = vsel %vm1139, %v2766, 0
        %v2792 = vsel %vm1164, %v2734, 0
        %2794 = vmatprep.subr.bf16.mxu0 0
        %2795 = vmatpush1.bf16.msra.mxu0 0
        %2796 = vmatprep.subr.bf16.mxu0 0
        %2797 = vmatpush1.bf16.msra.mxu0 0
        %2798 = vmatprep.subr.bf16.mxu0 0
        %2799 = vmatpush1.bf16.msra.mxu0 0
        %2800 = vmatprep.subr.bf16.mxu0 0
        %2801 = vmatpush1.bf16.msra.mxu0 0
        %2802 = vmatprep.subr.bf16.mxu0 0
        %2803 = vmatpush1.bf16.msra.mxu0 0
        %2804 = vmatprep.subr.bf16.mxu0 0
        %2805 = vmatpush1.bf16.msra.mxu0 0
        %2806 = vmatprep.subr.bf16.mxu0 0
        %2807 = vmatpush1.bf16.msra.mxu0 0
        %2808 = vmatprep.subr.bf16.mxu0 0
        %2809 = vmatpush1.bf16.msra.mxu0 %v2792
        %2810 = vmatprep.subr.bf16.mxu0 0
        %2811 = vmatpush2.bf16.msra.mxu0 0
        %2812 = vmatprep.subr.bf16.mxu0 0
        %2813 = vmatpush2.bf16.msra.mxu0 0
        %2814 = vmatprep.subr.bf16.mxu0 0
        %2815 = vmatpush2.bf16.msra.mxu0 0
        %2816 = vmatprep.subr.bf16.mxu0 0
        %2817 = vmatpush2.bf16.msra.mxu0 0
        %2818 = vmatprep.subr.bf16.mxu0 0
        %2819 = vmatpush2.bf16.msra.mxu0 0
        %2820 = vmatprep.subr.bf16.mxu0 0
        %2821 = vmatpush2.bf16.msra.mxu0 0
        %2822 = vmatprep.subr.bf16.mxu0 0
        %2823 = vmatpush2.bf16.msra.mxu0 0
        %2824 = vmatprep.subr.bf16.mxu0 0
        %2825 = vmatpush2.bf16.msra.mxu0 0
        %2826 = vmatprep.mubr.bf16.mxu0 0
        %2827 = vmatmul.mubr.bf16.gmra.mxu0 %v2768
        %v2828 = vpop.f32.mrf.mxu0
        %v2829 = vadd.f32 0.0, %v2828
        %v2830 = vpop.f32.mrf.mxu0
        %v2831 = vpop.f32.mrf.mxu0
        %v2832 = vadd.f32 0.0, %v2831
        %v2833 = vpop.f32.mrf.mxu0
        %2834 = vmatprep.mubr.bf16.mxu0 0
        %2835 = vmatmul.mubr.bf16.gmra.mxu0 %v2771
        %v2836 = vpop.f32.mrf.mxu0
        %v2837 = vadd.f32 0.0, %v2836
        %v2838 = vpop.f32.mrf.mxu0
        %v2839 = vpop.f32.mrf.mxu0
        %v2840 = vadd.f32 0.0, %v2839
        %v2841 = vpop.f32.mrf.mxu0
        %2842 = vmatprep.mubr.bf16.mxu0 0
        %2843 = vmatmul.mubr.bf16.gmra.mxu0 %v2774
        %v2844 = vpop.f32.mrf.mxu0
        %v2845 = vadd.f32 0.0, %v2844
        %v2846 = vpop.f32.mrf.mxu0
        %v2847 = vpop.f32.mrf.mxu0
        %v2848 = vadd.f32 0.0, %v2847
        %v2849 = vpop.f32.mrf.mxu0
        %2850 = vmatprep.mubr.bf16.mxu0 0
        %2851 = vmatmul.mubr.bf16.gmra.mxu0 %v2777
        %v2852 = vpop.f32.mrf.mxu0
        %v2853 = vadd.f32 0.0, %v2852
        %v2854 = vpop.f32.mrf.mxu0
        %v2855 = vpop.f32.mrf.mxu0
        %v2856 = vadd.f32 0.0, %v2855
        %v2857 = vpop.f32.mrf.mxu0
        %2858 = vmatprep.mubr.bf16.mxu0 0
        %2859 = vmatmul.mubr.bf16.gmra.mxu0 %v2780
        %v2860 = vpop.f32.mrf.mxu0
        %v2861 = vadd.f32 0.0, %v2860
        %v2862 = vpop.f32.mrf.mxu0
        %v2863 = vpop.f32.mrf.mxu0
        %v2864 = vadd.f32 0.0, %v2863
        %v2865 = vpop.f32.mrf.mxu0
        %2866 = vmatprep.mubr.bf16.mxu0 0
        %2867 = vmatmul.mubr.bf16.gmra.mxu0 %v2783
        %v2868 = vpop.f32.mrf.mxu0
        %v2869 = vadd.f32 0.0, %v2868
        %v2870 = vpop.f32.mrf.mxu0
        %v2871 = vpop.f32.mrf.mxu0
        %v2872 = vadd.f32 0.0, %v2871
        %v2873 = vpop.f32.mrf.mxu0
        %2874 = vmatprep.mubr.bf16.mxu0 0
        %2875 = vmatmul.mubr.bf16.gmra.mxu0 %v2786
        %v2876 = vpop.f32.mrf.mxu0
        %v2877 = vadd.f32 0.0, %v2876
        %v2878 = vpop.f32.mrf.mxu0
        %v2879 = vpop.f32.mrf.mxu0
        %v2880 = vadd.f32 0.0, %v2879
        %v2881 = vpop.f32.mrf.mxu0
        %2882 = vmatprep.mubr.bf16.mxu0 0
        %2883 = vmatmul.mubr.bf16.gmra.mxu0 %v2789
        %v2884 = vpop.f32.mrf.mxu0
        %v2885 = vadd.f32 0.0, %v2884
        %v2886 = vpop.f32.mrf.mxu0
        %v2887 = vpop.f32.mrf.mxu0
        %v2888 = vadd.f32 0.0, %v2887
        %v2889 = vpop.f32.mrf.mxu0
        %2890 = vdwg.mxu0
        %v2891 = vadd.f32 %v2671, %v2829
        %v2892 = vadd.f32 %v2674, %v2832
        %v2893 = vadd.f32 %v2679, %v2837
        %v2894 = vadd.f32 %v2682, %v2840
        %v2895 = vadd.f32 %v2687, %v2845
        %v2896 = vadd.f32 %v2690, %v2848
        %v2897 = vadd.f32 %v2695, %v2853
        %v2898 = vadd.f32 %v2698, %v2856
        %v2899 = vadd.f32 %v2703, %v2861
        %v2900 = vadd.f32 %v2706, %v2864
        %v2901 = vadd.f32 %v2711, %v2869
        %v2902 = vadd.f32 %v2714, %v2872
        %v2903 = vadd.f32 %v2719, %v2877
        %v2904 = vadd.f32 %v2722, %v2880
        %v2905 = vadd.f32 %v2727, %v2885
        %v2906 = vadd.f32 %v2730, %v2888
        %s2907 = scalar_lea.vmem %s1, 22
        %v2908 = vld [vmem:[%s2907] sm:$0x3]
        %v2909 = vunpack.c.l.b16 %v845
        %v2910 = vunpack.c.l.b16 %v855
        %v2911 = vunpack.c.l.b16 %v869
        %v2912 = vunpack.c.l.b16 %v879
        %v2913 = vunpack.c.l.b16 %v893
        %v2914 = vunpack.c.l.b16 %v903
        %v2915 = vunpack.c.l.b16 %v917
        %v2916 = vunpack.c.l.b16 %v927
        %v2917 = vunpack.c.l.b16 %v941
        %v2918 = vunpack.c.l.b16 %v951
        %v2919 = vunpack.c.l.b16 %v965
        %v2920 = vunpack.c.l.b16 %v975
        %v2921 = vunpack.c.l.b16 %v989
        %v2922 = vunpack.c.l.b16 %v999
        %v2923 = vunpack.c.l.b16 %v1013
        %v2924 = vunpack.c.l.b16 %v1023
        %v2925 = vpack.c.b16 %v2910, %v2909
        %v2926 = vpack.c.b16 %v2912, %v2911
        %v2927 = vpack.c.b16 %v2914, %v2913
        %v2928 = vpack.c.b16 %v2916, %v2915
        %v2929 = vpack.c.b16 %v2918, %v2917
        %v2930 = vpack.c.b16 %v2920, %v2919
        %v2931 = vpack.c.b16 %v2922, %v2921
        %v2932 = vpack.c.b16 %v2924, %v2923
        %v2934 = vsel %vm1139, %v2925, 0
        %v2937 = vsel %vm1139, %v2926, 0
        %v2940 = vsel %vm1139, %v2927, 0
        %v2943 = vsel %vm1139, %v2928, 0
        %v2946 = vsel %vm1139, %v2929, 0
        %v2949 = vsel %vm1139, %v2930, 0
        %v2952 = vsel %vm1139, %v2931, 0
        %v2955 = vsel %vm1139, %v2932, 0
        %v2958 = vsel %vm1164, %v2908, 0
        %2960 = vmatprep.subr.bf16.mxu0 0
        %2961 = vmatpush1.bf16.msra.mxu0 0
        %2962 = vmatprep.subr.bf16.mxu0 0
        %2963 = vmatpush1.bf16.msra.mxu0 0
        %2964 = vmatprep.subr.bf16.mxu0 0
        %2965 = vmatpush1.bf16.msra.mxu0 0
        %2966 = vmatprep.subr.bf16.mxu0 0
        %2967 = vmatpush1.bf16.msra.mxu0 0
        %2968 = vmatprep.subr.bf16.mxu0 0
        %2969 = vmatpush1.bf16.msra.mxu0 0
        %2970 = vmatprep.subr.bf16.mxu0 0
        %2971 = vmatpush1.bf16.msra.mxu0 0
        %2972 = vmatprep.subr.bf16.mxu0 0
        %2973 = vmatpush1.bf16.msra.mxu0 0
        %2974 = vmatprep.subr.bf16.mxu0 0
        %2975 = vmatpush1.bf16.msra.mxu0 %v2958
        %2976 = vmatprep.subr.bf16.mxu0 0
        %2977 = vmatpush2.bf16.msra.mxu0 0
        %2978 = vmatprep.subr.bf16.mxu0 0
        %2979 = vmatpush2.bf16.msra.mxu0 0
        %2980 = vmatprep.subr.bf16.mxu0 0
        %2981 = vmatpush2.bf16.msra.mxu0 0
        %2982 = vmatprep.subr.bf16.mxu0 0
        %2983 = vmatpush2.bf16.msra.mxu0 0
        %2984 = vmatprep.subr.bf16.mxu0 0
        %2985 = vmatpush2.bf16.msra.mxu0 0
        %2986 = vmatprep.subr.bf16.mxu0 0
        %2987 = vmatpush2.bf16.msra.mxu0 0
        %2988 = vmatprep.subr.bf16.mxu0 0
        %2989 = vmatpush2.bf16.msra.mxu0 0
        %2990 = vmatprep.subr.bf16.mxu0 0
        %2991 = vmatpush2.bf16.msra.mxu0 0
        %2992 = vmatprep.mubr.bf16.mxu0 0
        %2993 = vmatmul.mubr.bf16.gmra.mxu0 %v2934
        %v2994 = vpop.f32.mrf.mxu0
        %v2995 = vadd.f32 0.0, %v2994
        %v2996 = vpop.f32.mrf.mxu0
        %v2997 = vpop.f32.mrf.mxu0
        %v2998 = vadd.f32 0.0, %v2997
        %v2999 = vpop.f32.mrf.mxu0
        %3000 = vmatprep.mubr.bf16.mxu0 0
        %3001 = vmatmul.mubr.bf16.gmra.mxu0 %v2937
        %v3002 = vpop.f32.mrf.mxu0
        %v3003 = vadd.f32 0.0, %v3002
        %v3004 = vpop.f32.mrf.mxu0
        %v3005 = vpop.f32.mrf.mxu0
        %v3006 = vadd.f32 0.0, %v3005
        %v3007 = vpop.f32.mrf.mxu0
        %3008 = vmatprep.mubr.bf16.mxu0 0
        %3009 = vmatmul.mubr.bf16.gmra.mxu0 %v2940
        %v3010 = vpop.f32.mrf.mxu0
        %v3011 = vadd.f32 0.0, %v3010
        %v3012 = vpop.f32.mrf.mxu0
        %v3013 = vpop.f32.mrf.mxu0
        %v3014 = vadd.f32 0.0, %v3013
        %v3015 = vpop.f32.mrf.mxu0
        %3016 = vmatprep.mubr.bf16.mxu0 0
        %3017 = vmatmul.mubr.bf16.gmra.mxu0 %v2943
        %v3018 = vpop.f32.mrf.mxu0
        %v3019 = vadd.f32 0.0, %v3018
        %v3020 = vpop.f32.mrf.mxu0
        %v3021 = vpop.f32.mrf.mxu0
        %v3022 = vadd.f32 0.0, %v3021
        %v3023 = vpop.f32.mrf.mxu0
        %3024 = vmatprep.mubr.bf16.mxu0 0
        %3025 = vmatmul.mubr.bf16.gmra.mxu0 %v2946
        %v3026 = vpop.f32.mrf.mxu0
        %v3027 = vadd.f32 0.0, %v3026
        %v3028 = vpop.f32.mrf.mxu0
        %v3029 = vpop.f32.mrf.mxu0
        %v3030 = vadd.f32 0.0, %v3029
        %v3031 = vpop.f32.mrf.mxu0
        %3032 = vmatprep.mubr.bf16.mxu0 0
        %3033 = vmatmul.mubr.bf16.gmra.mxu0 %v2949
        %v3034 = vpop.f32.mrf.mxu0
        %v3035 = vadd.f32 0.0, %v3034
        %v3036 = vpop.f32.mrf.mxu0
        %v3037 = vpop.f32.mrf.mxu0
        %v3038 = vadd.f32 0.0, %v3037
        %v3039 = vpop.f32.mrf.mxu0
        %3040 = vmatprep.mubr.bf16.mxu0 0
        %3041 = vmatmul.mubr.bf16.gmra.mxu0 %v2952
        %v3042 = vpop.f32.mrf.mxu0
        %v3043 = vadd.f32 0.0, %v3042
        %v3044 = vpop.f32.mrf.mxu0
        %v3045 = vpop.f32.mrf.mxu0
        %v3046 = vadd.f32 0.0, %v3045
        %v3047 = vpop.f32.mrf.mxu0
        %3048 = vmatprep.mubr.bf16.mxu0 0
        %3049 = vmatmul.mubr.bf16.gmra.mxu0 %v2955
        %v3050 = vpop.f32.mrf.mxu0
        %v3051 = vadd.f32 0.0, %v3050
        %v3052 = vpop.f32.mrf.mxu0
        %v3053 = vpop.f32.mrf.mxu0
        %v3054 = vadd.f32 0.0, %v3053
        %v3055 = vpop.f32.mrf.mxu0
        %3056 = vdwg.mxu0
        %v3057 = vadd.f32 %v2891, %v2995
        %v3058 = vadd.f32 %v2892, %v2998
        %v3059 = vadd.f32 %v2893, %v3003
        %v3060 = vadd.f32 %v2894, %v3006
        %v3061 = vadd.f32 %v2895, %v3011
        %v3062 = vadd.f32 %v2896, %v3014
        %v3063 = vadd.f32 %v2897, %v3019
        %v3064 = vadd.f32 %v2898, %v3022
        %v3065 = vadd.f32 %v2899, %v3027
        %v3066 = vadd.f32 %v2900, %v3030
        %v3067 = vadd.f32 %v2901, %v3035
        %v3068 = vadd.f32 %v2902, %v3038
        %v3069 = vadd.f32 %v2903, %v3043
        %v3070 = vadd.f32 %v2904, %v3046
        %v3071 = vadd.f32 %v2905, %v3051
        %v3072 = vadd.f32 %v2906, %v3054
        %v3073 = vadd.f32 %v3057, %v1765
        %v3074 = vadd.f32 %v3058, %v1765
        %v3075 = vadd.f32 %v3059, %v1765
        %v3076 = vadd.f32 %v3060, %v1765
        %v3077 = vadd.f32 %v3061, %v1765
        %v3078 = vadd.f32 %v3062, %v1765
        %v3079 = vadd.f32 %v3063, %v1765
        %v3080 = vadd.f32 %v3064, %v1765
        %v3081 = vadd.f32 %v3065, %v1765
        %v3082 = vadd.f32 %v3066, %v1765
        %v3083 = vadd.f32 %v3067, %v1765
        %v3084 = vadd.f32 %v3068, %v1765
        %v3085 = vadd.f32 %v3069, %v1765
        %v3086 = vadd.f32 %v3070, %v1765
        %v3087 = vadd.f32 %v3071, %v1765
        %v3088 = vadd.f32 %v3072, %v1765
        %v3089 = vmax.f32 %v3073, 0.0
        %v3090 = vmax.f32 %v3074, 0.0
        %v3091 = vmax.f32 %v3075, 0.0
        %v3092 = vmax.f32 %v3076, 0.0
        %v3093 = vmax.f32 %v3077, 0.0
        %v3094 = vmax.f32 %v3078, 0.0
        %v3095 = vmax.f32 %v3079, 0.0
        %v3096 = vmax.f32 %v3080, 0.0
        %v3097 = vmax.f32 %v3081, 0.0
        %v3098 = vmax.f32 %v3082, 0.0
        %v3099 = vmax.f32 %v3083, 0.0
        %v3100 = vmax.f32 %v3084, 0.0
        %v3101 = vmax.f32 %v3085, 0.0
        %v3102 = vmax.f32 %v3086, 0.0
        %v3103 = vmax.f32 %v3087, 0.0
        %v3104 = vmax.f32 %v3088, 0.0
        %v3105 = vpack.c.bf16 %v3090, %v3089
        %v3106 = vpack.c.bf16 %v3092, %v3091
        %v3107 = vpack.c.bf16 %v3094, %v3093
        %v3108 = vpack.c.bf16 %v3096, %v3095
        %v3109 = vpack.c.bf16 %v3098, %v3097
        %v3110 = vpack.c.bf16 %v3100, %v3099
        %v3111 = vpack.c.bf16 %v3102, %v3101
        %v3112 = vpack.c.bf16 %v3104, %v3103
        %v3121 = vunpack.c.l.b16 %v3105
        %v3122 = vunpack.c.h.b16 %v3105
        %v3123 = vunpack.c.l.b16 %v3106
        %v3124 = vunpack.c.h.b16 %v3106
        %v3125 = vunpack.c.l.b16 %v3107
        %v3126 = vunpack.c.h.b16 %v3107
        %v3127 = vunpack.c.l.b16 %v3108
        %v3128 = vunpack.c.h.b16 %v3108
        %v3129 = vunpack.c.l.b16 %v3109
        %v3130 = vunpack.c.h.b16 %v3109
        %v3131 = vunpack.c.l.b16 %v3110
        %v3132 = vunpack.c.h.b16 %v3110
        %v3133 = vunpack.c.l.b16 %v3111
        %v3134 = vunpack.c.h.b16 %v3111
        %v3135 = vunpack.c.l.b16 %v3112
        %v3136 = vunpack.c.h.b16 %v3112
        %v3137 = vpack.c.b16 %v3121, %v3121
        %v3138 = vpack.c.b16 %v3122, %v3122
        %v3139 = vpack.c.b16 %v3123, %v3123
        %v3140 = vpack.c.b16 %v3124, %v3124
        %v3141 = vpack.c.b16 %v3125, %v3125
        %v3142 = vpack.c.b16 %v3126, %v3126
        %v3143 = vpack.c.b16 %v3127, %v3127
        %v3144 = vpack.c.b16 %v3128, %v3128
        %v3145 = vpack.c.b16 %v3129, %v3129
        %v3146 = vpack.c.b16 %v3130, %v3130
        %v3147 = vpack.c.b16 %v3131, %v3131
        %v3148 = vpack.c.b16 %v3132, %v3132
        %v3149 = vpack.c.b16 %v3133, %v3133
        %v3150 = vpack.c.b16 %v3134, %v3134
        %v3151 = vpack.c.b16 %v3135, %v3135
        %v3152 = vpack.c.b16 %v3136, %v3136
        %s3169 = scalar_lea.vmem %s173, 128 [#allocation2]
        %3170 = vst.msk [vmem:[%s3169] sm:$0xf] %vm1863, %v3137
        %3171 = vst.msk [vmem:[%s3169 + $0x4] sm:$0xf] %vm1863, %v3138
        %3172 = vst.msk [vmem:[%s3169 + $0x8] sm:$0xf] %vm1863, %v3139
        %3173 = vst.msk [vmem:[%s3169 + $0xc] sm:$0xf] %vm1863, %v3140
        %3174 = vst.msk [vmem:[%s3169 + $0x10] sm:$0xf] %vm1863, %v3141
        %3175 = vst.msk [vmem:[%s3169 + $0x14] sm:$0xf] %vm1863, %v3142
        %3176 = vst.msk [vmem:[%s3169 + $0x18] sm:$0xf] %vm1863, %v3143
        %3177 = vst.msk [vmem:[%s3169 + $0x1c] sm:$0xf] %vm1863, %v3144
        %3178 = vst.msk [vmem:[%s3169 + $0x20] sm:$0xf] %vm1863, %v3145
        %3179 = vst.msk [vmem:[%s3169 + $0x24] sm:$0xf] %vm1863, %v3146
        %3180 = vst.msk [vmem:[%s3169 + $0x28] sm:$0xf] %vm1863, %v3147
        %3181 = vst.msk [vmem:[%s3169 + $0x2c] sm:$0xf] %vm1863, %v3148
        %3182 = vst.msk [vmem:[%s3169 + $0x30] sm:$0xf] %vm1863, %v3149
        %3183 = vst.msk [vmem:[%s3169 + $0x34] sm:$0xf] %vm1863, %v3150
        %3184 = vst.msk [vmem:[%s3169 + $0x38] sm:$0xf] %vm1863, %v3151
        %3185 = vst.msk [vmem:[%s3169 + $0x3c] sm:$0xf] %vm1863, %v3152
        %s3186 = scalar_lea.vmem %s1, 24
        %v3187 = vld [vmem:[%s3186] sm:$0x3]
        %s3188 = scalar_lea.vmem %s1, 26
        %v3189 = vld [vmem:[%s3188] sm:$0x3]
        %v3191 = vsel %vm1164, %v3189, 0
        %3193 = vmatprep.subr.bf16.mxu0 0
        %3194 = vmatpush1.bf16.msra.mxu0 0
        %3195 = vmatprep.subr.bf16.mxu0 0
        %3196 = vmatpush1.bf16.msra.mxu0 0
        %3197 = vmatprep.subr.bf16.mxu0 0
        %3198 = vmatpush1.bf16.msra.mxu0 0
        %3199 = vmatprep.subr.bf16.mxu0 0
        %3200 = vmatpush1.bf16.msra.mxu0 0
        %3201 = vmatprep.subr.bf16.mxu0 0
        %3202 = vmatpush1.bf16.msra.mxu0 0
        %3203 = vmatprep.subr.bf16.mxu0 0
        %3204 = vmatpush1.bf16.msra.mxu0 0
        %3205 = vmatprep.subr.bf16.mxu0 0
        %3206 = vmatpush1.bf16.msra.mxu0 0
        %3207 = vmatprep.subr.bf16.mxu0 0
        %3208 = vmatpush1.bf16.msra.mxu0 %v3191
        %3209 = vmatprep.subr.bf16.mxu0 0
        %3210 = vmatpush2.bf16.msra.mxu0 0
        %3211 = vmatprep.subr.bf16.mxu0 0
        %3212 = vmatpush2.bf16.msra.mxu0 0
        %3213 = vmatprep.subr.bf16.mxu0 0
        %3214 = vmatpush2.bf16.msra.mxu0 0
        %3215 = vmatprep.subr.bf16.mxu0 0
        %3216 = vmatpush2.bf16.msra.mxu0 0
        %3217 = vmatprep.subr.bf16.mxu0 0
        %3218 = vmatpush2.bf16.msra.mxu0 0
        %3219 = vmatprep.subr.bf16.mxu0 0
        %3220 = vmatpush2.bf16.msra.mxu0 0
        %3221 = vmatprep.subr.bf16.mxu0 0
        %3222 = vmatpush2.bf16.msra.mxu0 0
        %3223 = vmatprep.subr.bf16.mxu0 0
        %3224 = vmatpush2.bf16.msra.mxu0 0
        %3225 = vmatprep.mubr.bf16.mxu0 0
        %3226 = vmatmul.mubr.bf16.gmra.mxu0 %v2277
        %v3227 = vpop.f32.mrf.mxu0
        %v3228 = vadd.f32 0.0, %v3227
        %v3229 = vpop.f32.mrf.mxu0
        %v3230 = vpop.f32.mrf.mxu0
        %v3231 = vadd.f32 0.0, %v3230
        %v3232 = vpop.f32.mrf.mxu0
        %3233 = vmatprep.mubr.bf16.mxu0 0
        %3234 = vmatmul.mubr.bf16.gmra.mxu0 %v2280
        %v3235 = vpop.f32.mrf.mxu0
        %v3236 = vadd.f32 0.0, %v3235
        %v3237 = vpop.f32.mrf.mxu0
        %v3238 = vpop.f32.mrf.mxu0
        %v3239 = vadd.f32 0.0, %v3238
        %v3240 = vpop.f32.mrf.mxu0
        %3241 = vmatprep.mubr.bf16.mxu0 0
        %3242 = vmatmul.mubr.bf16.gmra.mxu0 %v2283
        %v3243 = vpop.f32.mrf.mxu0
        %v3244 = vadd.f32 0.0, %v3243
        %v3245 = vpop.f32.mrf.mxu0
        %v3246 = vpop.f32.mrf.mxu0
        %v3247 = vadd.f32 0.0, %v3246
        %v3248 = vpop.f32.mrf.mxu0
        %3249 = vmatprep.mubr.bf16.mxu0 0
        %3250 = vmatmul.mubr.bf16.gmra.mxu0 %v2286
        %v3251 = vpop.f32.mrf.mxu0
        %v3252 = vadd.f32 0.0, %v3251
        %v3253 = vpop.f32.mrf.mxu0
        %v3254 = vpop.f32.mrf.mxu0
        %v3255 = vadd.f32 0.0, %v3254
        %v3256 = vpop.f32.mrf.mxu0
        %3257 = vmatprep.mubr.bf16.mxu0 0
        %3258 = vmatmul.mubr.bf16.gmra.mxu0 %v2289
        %v3259 = vpop.f32.mrf.mxu0
        %v3260 = vadd.f32 0.0, %v3259
        %v3261 = vpop.f32.mrf.mxu0
        %v3262 = vpop.f32.mrf.mxu0
        %v3263 = vadd.f32 0.0, %v3262
        %v3264 = vpop.f32.mrf.mxu0
        %3265 = vmatprep.mubr.bf16.mxu0 0
        %3266 = vmatmul.mubr.bf16.gmra.mxu0 %v2292
        %v3267 = vpop.f32.mrf.mxu0
        %v3268 = vadd.f32 0.0, %v3267
        %v3269 = vpop.f32.mrf.mxu0
        %v3270 = vpop.f32.mrf.mxu0
        %v3271 = vadd.f32 0.0, %v3270
        %v3272 = vpop.f32.mrf.mxu0
        %3273 = vmatprep.mubr.bf16.mxu0 0
        %3274 = vmatmul.mubr.bf16.gmra.mxu0 %v2295
        %v3275 = vpop.f32.mrf.mxu0
        %v3276 = vadd.f32 0.0, %v3275
        %v3277 = vpop.f32.mrf.mxu0
        %v3278 = vpop.f32.mrf.mxu0
        %v3279 = vadd.f32 0.0, %v3278
        %v3280 = vpop.f32.mrf.mxu0
        %3281 = vmatprep.mubr.bf16.mxu0 0
        %3282 = vmatmul.mubr.bf16.gmra.mxu0 %v2298
        %v3283 = vpop.f32.mrf.mxu0
        %v3284 = vadd.f32 0.0, %v3283
        %v3285 = vpop.f32.mrf.mxu0
        %v3286 = vpop.f32.mrf.mxu0
        %v3287 = vadd.f32 0.0, %v3286
        %v3288 = vpop.f32.mrf.mxu0
        %3289 = vdwg.mxu0
        %v3291 = vsel %vm1164, %v3187, 0
        %3293 = vmatprep.subr.bf16.mxu0 0
        %3294 = vmatpush1.bf16.msra.mxu0 0
        %3295 = vmatprep.subr.bf16.mxu0 0
        %3296 = vmatpush1.bf16.msra.mxu0 0
        %3297 = vmatprep.subr.bf16.mxu0 0
        %3298 = vmatpush1.bf16.msra.mxu0 0
        %3299 = vmatprep.subr.bf16.mxu0 0
        %3300 = vmatpush1.bf16.msra.mxu0 0
        %3301 = vmatprep.subr.bf16.mxu0 0
        %3302 = vmatpush1.bf16.msra.mxu0 0
        %3303 = vmatprep.subr.bf16.mxu0 0
        %3304 = vmatpush1.bf16.msra.mxu0 0
        %3305 = vmatprep.subr.bf16.mxu0 0
        %3306 = vmatpush1.bf16.msra.mxu0 0
        %3307 = vmatprep.subr.bf16.mxu0 0
        %3308 = vmatpush1.bf16.msra.mxu0 %v3291
        %3309 = vmatprep.subr.bf16.mxu0 0
        %3310 = vmatpush2.bf16.msra.mxu0 0
        %3311 = vmatprep.subr.bf16.mxu0 0
        %3312 = vmatpush2.bf16.msra.mxu0 0
        %3313 = vmatprep.subr.bf16.mxu0 0
        %3314 = vmatpush2.bf16.msra.mxu0 0
        %3315 = vmatprep.subr.bf16.mxu0 0
        %3316 = vmatpush2.bf16.msra.mxu0 0
        %3317 = vmatprep.subr.bf16.mxu0 0
        %3318 = vmatpush2.bf16.msra.mxu0 0
        %3319 = vmatprep.subr.bf16.mxu0 0
        %3320 = vmatpush2.bf16.msra.mxu0 0
        %3321 = vmatprep.subr.bf16.mxu0 0
        %3322 = vmatpush2.bf16.msra.mxu0 0
        %3323 = vmatprep.subr.bf16.mxu0 0
        %3324 = vmatpush2.bf16.msra.mxu0 0
        %3325 = vmatprep.mubr.bf16.mxu0 0
        %3326 = vmatmul.mubr.bf16.gmra.mxu0 %v1622
        %v3327 = vpop.f32.mrf.mxu0
        %v3328 = vadd.f32 %v3228, %v3327
        %v3329 = vpop.f32.mrf.mxu0
        %v3330 = vpop.f32.mrf.mxu0
        %v3331 = vadd.f32 %v3231, %v3330
        %v3332 = vpop.f32.mrf.mxu0
        %3333 = vmatprep.mubr.bf16.mxu0 0
        %3334 = vmatmul.mubr.bf16.gmra.mxu0 %v1625
        %v3335 = vpop.f32.mrf.mxu0
        %v3336 = vadd.f32 %v3236, %v3335
        %v3337 = vpop.f32.mrf.mxu0
        %v3338 = vpop.f32.mrf.mxu0
        %v3339 = vadd.f32 %v3239, %v3338
        %v3340 = vpop.f32.mrf.mxu0
        %3341 = vmatprep.mubr.bf16.mxu0 0
        %3342 = vmatmul.mubr.bf16.gmra.mxu0 %v1628
        %v3343 = vpop.f32.mrf.mxu0
        %v3344 = vadd.f32 %v3244, %v3343
        %v3345 = vpop.f32.mrf.mxu0
        %v3346 = vpop.f32.mrf.mxu0
        %v3347 = vadd.f32 %v3247, %v3346
        %v3348 = vpop.f32.mrf.mxu0
        %3349 = vmatprep.mubr.bf16.mxu0 0
        %3350 = vmatmul.mubr.bf16.gmra.mxu0 %v1631
        %v3351 = vpop.f32.mrf.mxu0
        %v3352 = vadd.f32 %v3252, %v3351
        %v3353 = vpop.f32.mrf.mxu0
        %v3354 = vpop.f32.mrf.mxu0
        %v3355 = vadd.f32 %v3255, %v3354
        %v3356 = vpop.f32.mrf.mxu0
        %3357 = vmatprep.mubr.bf16.mxu0 0
        %3358 = vmatmul.mubr.bf16.gmra.mxu0 %v1634
        %v3359 = vpop.f32.mrf.mxu0
        %v3360 = vadd.f32 %v3260, %v3359
        %v3361 = vpop.f32.mrf.mxu0
        %v3362 = vpop.f32.mrf.mxu0
        %v3363 = vadd.f32 %v3263, %v3362
        %v3364 = vpop.f32.mrf.mxu0
        %3365 = vmatprep.mubr.bf16.mxu0 0
        %3366 = vmatmul.mubr.bf16.gmra.mxu0 %v1637
        %v3367 = vpop.f32.mrf.mxu0
        %v3368 = vadd.f32 %v3268, %v3367
        %v3369 = vpop.f32.mrf.mxu0
        %v3370 = vpop.f32.mrf.mxu0
        %v3371 = vadd.f32 %v3271, %v3370
        %v3372 = vpop.f32.mrf.mxu0
        %3373 = vmatprep.mubr.bf16.mxu0 0
        %3374 = vmatmul.mubr.bf16.gmra.mxu0 %v1640
        %v3375 = vpop.f32.mrf.mxu0
        %v3376 = vadd.f32 %v3276, %v3375
        %v3377 = vpop.f32.mrf.mxu0
        %v3378 = vpop.f32.mrf.mxu0
        %v3379 = vadd.f32 %v3279, %v3378
        %v3380 = vpop.f32.mrf.mxu0
        %3381 = vmatprep.mubr.bf16.mxu0 0
        %3382 = vmatmul.mubr.bf16.gmra.mxu0 %v1643
        %v3383 = vpop.f32.mrf.mxu0
        %v3384 = vadd.f32 %v3284, %v3383
        %v3385 = vpop.f32.mrf.mxu0
        %v3386 = vpop.f32.mrf.mxu0
        %v3387 = vadd.f32 %v3287, %v3386
        %v3388 = vpop.f32.mrf.mxu0
        %3389 = vdwg.mxu0
        %s3390 = scalar_lea.vmem %s1, 28
        %v3391 = vld [vmem:[%s3390] sm:$0x3]
        %v3393 = vsel %vm1164, %v3391, 0
        %3395 = vmatprep.subr.bf16.mxu0 0
        %3396 = vmatpush1.bf16.msra.mxu0 0
        %3397 = vmatprep.subr.bf16.mxu0 0
        %3398 = vmatpush1.bf16.msra.mxu0 0
        %3399 = vmatprep.subr.bf16.mxu0 0
        %3400 = vmatpush1.bf16.msra.mxu0 0
        %3401 = vmatprep.subr.bf16.mxu0 0
        %3402 = vmatpush1.bf16.msra.mxu0 0
        %3403 = vmatprep.subr.bf16.mxu0 0
        %3404 = vmatpush1.bf16.msra.mxu0 0
        %3405 = vmatprep.subr.bf16.mxu0 0
        %3406 = vmatpush1.bf16.msra.mxu0 0
        %3407 = vmatprep.subr.bf16.mxu0 0
        %3408 = vmatpush1.bf16.msra.mxu0 0
        %3409 = vmatprep.subr.bf16.mxu0 0
        %3410 = vmatpush1.bf16.msra.mxu0 %v3393
        %3411 = vmatprep.subr.bf16.mxu0 0
        %3412 = vmatpush2.bf16.msra.mxu0 0
        %3413 = vmatprep.subr.bf16.mxu0 0
        %3414 = vmatpush2.bf16.msra.mxu0 0
        %3415 = vmatprep.subr.bf16.mxu0 0
        %3416 = vmatpush2.bf16.msra.mxu0 0
        %3417 = vmatprep.subr.bf16.mxu0 0
        %3418 = vmatpush2.bf16.msra.mxu0 0
        %3419 = vmatprep.subr.bf16.mxu0 0
        %3420 = vmatpush2.bf16.msra.mxu0 0
        %3421 = vmatprep.subr.bf16.mxu0 0
        %3422 = vmatpush2.bf16.msra.mxu0 0
        %3423 = vmatprep.subr.bf16.mxu0 0
        %3424 = vmatpush2.bf16.msra.mxu0 0
        %3425 = vmatprep.subr.bf16.mxu0 0
        %3426 = vmatpush2.bf16.msra.mxu0 0
        %3427 = vmatprep.mubr.bf16.mxu0 0
        %3428 = vmatmul.mubr.bf16.gmra.mxu0 %v2934
        %v3429 = vpop.f32.mrf.mxu0
        %v3430 = vadd.f32 0.0, %v3429
        %v3431 = vpop.f32.mrf.mxu0
        %v3432 = vpop.f32.mrf.mxu0
        %v3433 = vadd.f32 0.0, %v3432
        %v3434 = vpop.f32.mrf.mxu0
        %3435 = vmatprep.mubr.bf16.mxu0 0
        %3436 = vmatmul.mubr.bf16.gmra.mxu0 %v2937
        %v3437 = vpop.f32.mrf.mxu0
        %v3438 = vadd.f32 0.0, %v3437
        %v3439 = vpop.f32.mrf.mxu0
        %v3440 = vpop.f32.mrf.mxu0
        %v3441 = vadd.f32 0.0, %v3440
        %v3442 = vpop.f32.mrf.mxu0
        %3443 = vmatprep.mubr.bf16.mxu0 0
        %3444 = vmatmul.mubr.bf16.gmra.mxu0 %v2940
        %v3445 = vpop.f32.mrf.mxu0
        %v3446 = vadd.f32 0.0, %v3445
        %v3447 = vpop.f32.mrf.mxu0
        %v3448 = vpop.f32.mrf.mxu0
        %v3449 = vadd.f32 0.0, %v3448
        %v3450 = vpop.f32.mrf.mxu0
        %3451 = vmatprep.mubr.bf16.mxu0 0
        %3452 = vmatmul.mubr.bf16.gmra.mxu0 %v2943
        %v3453 = vpop.f32.mrf.mxu0
        %v3454 = vadd.f32 0.0, %v3453
        %v3455 = vpop.f32.mrf.mxu0
        %v3456 = vpop.f32.mrf.mxu0
        %v3457 = vadd.f32 0.0, %v3456
        %v3458 = vpop.f32.mrf.mxu0
        %3459 = vmatprep.mubr.bf16.mxu0 0
        %3460 = vmatmul.mubr.bf16.gmra.mxu0 %v2946
        %v3461 = vpop.f32.mrf.mxu0
        %v3462 = vadd.f32 0.0, %v3461
        %v3463 = vpop.f32.mrf.mxu0
        %v3464 = vpop.f32.mrf.mxu0
        %v3465 = vadd.f32 0.0, %v3464
        %v3466 = vpop.f32.mrf.mxu0
        %3467 = vmatprep.mubr.bf16.mxu0 0
        %3468 = vmatmul.mubr.bf16.gmra.mxu0 %v2949
        %v3469 = vpop.f32.mrf.mxu0
        %v3470 = vadd.f32 0.0, %v3469
        %v3471 = vpop.f32.mrf.mxu0
        %v3472 = vpop.f32.mrf.mxu0
        %v3473 = vadd.f32 0.0, %v3472
        %v3474 = vpop.f32.mrf.mxu0
        %3475 = vmatprep.mubr.bf16.mxu0 0
        %3476 = vmatmul.mubr.bf16.gmra.mxu0 %v2952
        %v3477 = vpop.f32.mrf.mxu0
        %v3478 = vadd.f32 0.0, %v3477
        %v3479 = vpop.f32.mrf.mxu0
        %v3480 = vpop.f32.mrf.mxu0
        %v3481 = vadd.f32 0.0, %v3480
        %v3482 = vpop.f32.mrf.mxu0
        %3483 = vmatprep.mubr.bf16.mxu0 0
        %3484 = vmatmul.mubr.bf16.gmra.mxu0 %v2955
        %v3485 = vpop.f32.mrf.mxu0
        %v3486 = vadd.f32 0.0, %v3485
        %v3487 = vpop.f32.mrf.mxu0
        %v3488 = vpop.f32.mrf.mxu0
        %v3489 = vadd.f32 0.0, %v3488
        %v3490 = vpop.f32.mrf.mxu0
        %3491 = vdwg.mxu0
        %v3492 = vadd.f32 %v3328, %v3430
        %v3493 = vadd.f32 %v3331, %v3433
        %v3494 = vadd.f32 %v3336, %v3438
        %v3495 = vadd.f32 %v3339, %v3441
        %v3496 = vadd.f32 %v3344, %v3446
        %v3497 = vadd.f32 %v3347, %v3449
        %v3498 = vadd.f32 %v3352, %v3454
        %v3499 = vadd.f32 %v3355, %v3457
        %v3500 = vadd.f32 %v3360, %v3462
        %v3501 = vadd.f32 %v3363, %v3465
        %v3502 = vadd.f32 %v3368, %v3470
        %v3503 = vadd.f32 %v3371, %v3473
        %v3504 = vadd.f32 %v3376, %v3478
        %v3505 = vadd.f32 %v3379, %v3481
        %v3506 = vadd.f32 %v3384, %v3486
        %v3507 = vadd.f32 %v3387, %v3489
        %s3508 = scalar_lea.vmem %s1, 30
        %v3509 = vld [vmem:[%s3508] sm:$0x3]
        %v3510 = vunpack.c.l.b16 %v1059
        %v3511 = vunpack.c.l.b16 %v1062
        %v3512 = vunpack.c.l.b16 %v1066
        %v3513 = vunpack.c.l.b16 %v1069
        %v3514 = vunpack.c.l.b16 %v1073
        %v3515 = vunpack.c.l.b16 %v1076
        %v3516 = vunpack.c.l.b16 %v1080
        %v3517 = vunpack.c.l.b16 %v1083
        %v3518 = vunpack.c.l.b16 %v1087
        %v3519 = vunpack.c.l.b16 %v1090
        %v3520 = vunpack.c.l.b16 %v1094
        %v3521 = vunpack.c.l.b16 %v1097
        %v3522 = vunpack.c.l.b16 %v1101
        %v3523 = vunpack.c.l.b16 %v1104
        %v3524 = vunpack.c.l.b16 %v1108
        %v3525 = vunpack.c.l.b16 %v1111
        %v3526 = vpack.c.b16 %v3511, %v3510
        %v3527 = vpack.c.b16 %v3513, %v3512
        %v3528 = vpack.c.b16 %v3515, %v3514
        %v3529 = vpack.c.b16 %v3517, %v3516
        %v3530 = vpack.c.b16 %v3519, %v3518
        %v3531 = vpack.c.b16 %v3521, %v3520
        %v3532 = vpack.c.b16 %v3523, %v3522
        %v3533 = vpack.c.b16 %v3525, %v3524
        %v3535 = vsel %vm1139, %v3526, 0
        %v3538 = vsel %vm1139, %v3527, 0
        %v3541 = vsel %vm1139, %v3528, 0
        %v3544 = vsel %vm1139, %v3529, 0
        %v3547 = vsel %vm1139, %v3530, 0
        %v3550 = vsel %vm1139, %v3531, 0
        %v3553 = vsel %vm1139, %v3532, 0
        %v3556 = vsel %vm1139, %v3533, 0
        %v3559 = vsel %vm1164, %v3509, 0
        %3561 = vmatprep.subr.bf16.mxu0 0
        %3562 = vmatpush1.bf16.msra.mxu0 0
        %3563 = vmatprep.subr.bf16.mxu0 0
        %3564 = vmatpush1.bf16.msra.mxu0 0
        %3565 = vmatprep.subr.bf16.mxu0 0
        %3566 = vmatpush1.bf16.msra.mxu0 0
        %3567 = vmatprep.subr.bf16.mxu0 0
        %3568 = vmatpush1.bf16.msra.mxu0 0
        %3569 = vmatprep.subr.bf16.mxu0 0
        %3570 = vmatpush1.bf16.msra.mxu0 0
        %3571 = vmatprep.subr.bf16.mxu0 0
        %3572 = vmatpush1.bf16.msra.mxu0 0
        %3573 = vmatprep.subr.bf16.mxu0 0
        %3574 = vmatpush1.bf16.msra.mxu0 0
        %3575 = vmatprep.subr.bf16.mxu0 0
        %3576 = vmatpush1.bf16.msra.mxu0 %v3559
        %3577 = vmatprep.subr.bf16.mxu0 0
        %3578 = vmatpush2.bf16.msra.mxu0 0
        %3579 = vmatprep.subr.bf16.mxu0 0
        %3580 = vmatpush2.bf16.msra.mxu0 0
        %3581 = vmatprep.subr.bf16.mxu0 0
        %3582 = vmatpush2.bf16.msra.mxu0 0
        %3583 = vmatprep.subr.bf16.mxu0 0
        %3584 = vmatpush2.bf16.msra.mxu0 0
        %3585 = vmatprep.subr.bf16.mxu0 0
        %3586 = vmatpush2.bf16.msra.mxu0 0
        %3587 = vmatprep.subr.bf16.mxu0 0
        %3588 = vmatpush2.bf16.msra.mxu0 0
        %3589 = vmatprep.subr.bf16.mxu0 0
        %3590 = vmatpush2.bf16.msra.mxu0 0
        %3591 = vmatprep.subr.bf16.mxu0 0
        %3592 = vmatpush2.bf16.msra.mxu0 0
        %3593 = vmatprep.mubr.bf16.mxu0 0
        %3594 = vmatmul.mubr.bf16.gmra.mxu0 %v3535
        %v3595 = vpop.f32.mrf.mxu0
        %v3596 = vadd.f32 0.0, %v3595
        %v3597 = vpop.f32.mrf.mxu0
        %v3598 = vpop.f32.mrf.mxu0
        %v3599 = vadd.f32 0.0, %v3598
        %v3600 = vpop.f32.mrf.mxu0
        %3601 = vmatprep.mubr.bf16.mxu0 0
        %3602 = vmatmul.mubr.bf16.gmra.mxu0 %v3538
        %v3603 = vpop.f32.mrf.mxu0
        %v3604 = vadd.f32 0.0, %v3603
        %v3605 = vpop.f32.mrf.mxu0
        %v3606 = vpop.f32.mrf.mxu0
        %v3607 = vadd.f32 0.0, %v3606
        %v3608 = vpop.f32.mrf.mxu0
        %3609 = vmatprep.mubr.bf16.mxu0 0
        %3610 = vmatmul.mubr.bf16.gmra.mxu0 %v3541
        %v3611 = vpop.f32.mrf.mxu0
        %v3612 = vadd.f32 0.0, %v3611
        %v3613 = vpop.f32.mrf.mxu0
        %v3614 = vpop.f32.mrf.mxu0
        %v3615 = vadd.f32 0.0, %v3614
        %v3616 = vpop.f32.mrf.mxu0
        %3617 = vmatprep.mubr.bf16.mxu0 0
        %3618 = vmatmul.mubr.bf16.gmra.mxu0 %v3544
        %v3619 = vpop.f32.mrf.mxu0
        %v3620 = vadd.f32 0.0, %v3619
        %v3621 = vpop.f32.mrf.mxu0
        %v3622 = vpop.f32.mrf.mxu0
        %v3623 = vadd.f32 0.0, %v3622
        %v3624 = vpop.f32.mrf.mxu0
        %3625 = vmatprep.mubr.bf16.mxu0 0
        %3626 = vmatmul.mubr.bf16.gmra.mxu0 %v3547
        %v3627 = vpop.f32.mrf.mxu0
        %v3628 = vadd.f32 0.0, %v3627
        %v3629 = vpop.f32.mrf.mxu0
        %v3630 = vpop.f32.mrf.mxu0
        %v3631 = vadd.f32 0.0, %v3630
        %v3632 = vpop.f32.mrf.mxu0
        %3633 = vmatprep.mubr.bf16.mxu0 0
        %3634 = vmatmul.mubr.bf16.gmra.mxu0 %v3550
        %v3635 = vpop.f32.mrf.mxu0
        %v3636 = vadd.f32 0.0, %v3635
        %v3637 = vpop.f32.mrf.mxu0
        %v3638 = vpop.f32.mrf.mxu0
        %v3639 = vadd.f32 0.0, %v3638
        %v3640 = vpop.f32.mrf.mxu0
        %3641 = vmatprep.mubr.bf16.mxu0 0
        %3642 = vmatmul.mubr.bf16.gmra.mxu0 %v3553
        %v3643 = vpop.f32.mrf.mxu0
        %v3644 = vadd.f32 0.0, %v3643
        %v3645 = vpop.f32.mrf.mxu0
        %v3646 = vpop.f32.mrf.mxu0
        %v3647 = vadd.f32 0.0, %v3646
        %v3648 = vpop.f32.mrf.mxu0
        %3649 = vmatprep.mubr.bf16.mxu0 0
        %3650 = vmatmul.mubr.bf16.gmra.mxu0 %v3556
        %v3651 = vpop.f32.mrf.mxu0
        %v3652 = vadd.f32 0.0, %v3651
        %v3653 = vpop.f32.mrf.mxu0
        %v3654 = vpop.f32.mrf.mxu0
        %v3655 = vadd.f32 0.0, %v3654
        %v3656 = vpop.f32.mrf.mxu0
        %3657 = vdwg.mxu0
        %v3658 = vadd.f32 %v3492, %v3596
        %v3659 = vadd.f32 %v3493, %v3599
        %v3660 = vadd.f32 %v3494, %v3604
        %v3661 = vadd.f32 %v3495, %v3607
        %v3662 = vadd.f32 %v3496, %v3612
        %v3663 = vadd.f32 %v3497, %v3615
        %v3664 = vadd.f32 %v3498, %v3620
        %v3665 = vadd.f32 %v3499, %v3623
        %v3666 = vadd.f32 %v3500, %v3628
        %v3667 = vadd.f32 %v3501, %v3631
        %v3668 = vadd.f32 %v3502, %v3636
        %v3669 = vadd.f32 %v3503, %v3639
        %v3670 = vadd.f32 %v3504, %v3644
        %v3671 = vadd.f32 %v3505, %v3647
        %v3672 = vadd.f32 %v3506, %v3652
        %v3673 = vadd.f32 %v3507, %v3655
        %v3674 = vadd.f32 %v3658, %v1765
        %v3675 = vadd.f32 %v3659, %v1765
        %v3676 = vadd.f32 %v3660, %v1765
        %v3677 = vadd.f32 %v3661, %v1765
        %v3678 = vadd.f32 %v3662, %v1765
        %v3679 = vadd.f32 %v3663, %v1765
        %v3680 = vadd.f32 %v3664, %v1765
        %v3681 = vadd.f32 %v3665, %v1765
        %v3682 = vadd.f32 %v3666, %v1765
        %v3683 = vadd.f32 %v3667, %v1765
        %v3684 = vadd.f32 %v3668, %v1765
        %v3685 = vadd.f32 %v3669, %v1765
        %v3686 = vadd.f32 %v3670, %v1765
        %v3687 = vadd.f32 %v3671, %v1765
        %v3688 = vadd.f32 %v3672, %v1765
        %v3689 = vadd.f32 %v3673, %v1765
        %v3690 = vmax.f32 %v3674, 0.0
        %v3691 = vmax.f32 %v3675, 0.0
        %v3692 = vmax.f32 %v3676, 0.0
        %v3693 = vmax.f32 %v3677, 0.0
        %v3694 = vmax.f32 %v3678, 0.0
        %v3695 = vmax.f32 %v3679, 0.0
        %v3696 = vmax.f32 %v3680, 0.0
        %v3697 = vmax.f32 %v3681, 0.0
        %v3698 = vmax.f32 %v3682, 0.0
        %v3699 = vmax.f32 %v3683, 0.0
        %v3700 = vmax.f32 %v3684, 0.0
        %v3701 = vmax.f32 %v3685, 0.0
        %v3702 = vmax.f32 %v3686, 0.0
        %v3703 = vmax.f32 %v3687, 0.0
        %v3704 = vmax.f32 %v3688, 0.0
        %v3705 = vmax.f32 %v3689, 0.0
        %v3706 = vpack.c.bf16 %v3691, %v3690
        %v3707 = vpack.c.bf16 %v3693, %v3692
        %v3708 = vpack.c.bf16 %v3695, %v3694
        %v3709 = vpack.c.bf16 %v3697, %v3696
        %v3710 = vpack.c.bf16 %v3699, %v3698
        %v3711 = vpack.c.bf16 %v3701, %v3700
        %v3712 = vpack.c.bf16 %v3703, %v3702
        %v3713 = vpack.c.bf16 %v3705, %v3704
        %v3722 = vunpack.c.l.b16 %v3706
        %v3723 = vunpack.c.h.b16 %v3706
        %v3724 = vunpack.c.l.b16 %v3707
        %v3725 = vunpack.c.h.b16 %v3707
        %v3726 = vunpack.c.l.b16 %v3708
        %v3727 = vunpack.c.h.b16 %v3708
        %v3728 = vunpack.c.l.b16 %v3709
        %v3729 = vunpack.c.h.b16 %v3709
        %v3730 = vunpack.c.l.b16 %v3710
        %v3731 = vunpack.c.h.b16 %v3710
        %v3732 = vunpack.c.l.b16 %v3711
        %v3733 = vunpack.c.h.b16 %v3711
        %v3734 = vunpack.c.l.b16 %v3712
        %v3735 = vunpack.c.h.b16 %v3712
        %v3736 = vunpack.c.l.b16 %v3713
        %v3737 = vunpack.c.h.b16 %v3713
        %v3738 = vpack.c.b16 %v3722, %v3722
        %v3739 = vpack.c.b16 %v3723, %v3723
        %v3740 = vpack.c.b16 %v3724, %v3724
        %v3741 = vpack.c.b16 %v3725, %v3725
        %v3742 = vpack.c.b16 %v3726, %v3726
        %v3743 = vpack.c.b16 %v3727, %v3727
        %v3744 = vpack.c.b16 %v3728, %v3728
        %v3745 = vpack.c.b16 %v3729, %v3729
        %v3746 = vpack.c.b16 %v3730, %v3730
        %v3747 = vpack.c.b16 %v3731, %v3731
        %v3748 = vpack.c.b16 %v3732, %v3732
        %v3749 = vpack.c.b16 %v3733, %v3733
        %v3750 = vpack.c.b16 %v3734, %v3734
        %v3751 = vpack.c.b16 %v3735, %v3735
        %v3752 = vpack.c.b16 %v3736, %v3736
        %v3753 = vpack.c.b16 %v3737, %v3737
        %s3770 = scalar_lea.vmem %s173, 192 [#allocation2]
        %3771 = vst.msk [vmem:[%s3770] sm:$0xf] %vm1863, %v3738
        %3772 = vst.msk [vmem:[%s3770 + $0x4] sm:$0xf] %vm1863, %v3739
        %3773 = vst.msk [vmem:[%s3770 + $0x8] sm:$0xf] %vm1863, %v3740
        %3774 = vst.msk [vmem:[%s3770 + $0xc] sm:$0xf] %vm1863, %v3741
        %3775 = vst.msk [vmem:[%s3770 + $0x10] sm:$0xf] %vm1863, %v3742
        %3776 = vst.msk [vmem:[%s3770 + $0x14] sm:$0xf] %vm1863, %v3743
        %3777 = vst.msk [vmem:[%s3770 + $0x18] sm:$0xf] %vm1863, %v3744
        %3778 = vst.msk [vmem:[%s3770 + $0x1c] sm:$0xf] %vm1863, %v3745
        %3779 = vst.msk [vmem:[%s3770 + $0x20] sm:$0xf] %vm1863, %v3746
        %3780 = vst.msk [vmem:[%s3770 + $0x24] sm:$0xf] %vm1863, %v3747
        %3781 = vst.msk [vmem:[%s3770 + $0x28] sm:$0xf] %vm1863, %v3748
        %3782 = vst.msk [vmem:[%s3770 + $0x2c] sm:$0xf] %vm1863, %v3749
        %3783 = vst.msk [vmem:[%s3770 + $0x30] sm:$0xf] %vm1863, %v3750
        %3784 = vst.msk [vmem:[%s3770 + $0x34] sm:$0xf] %vm1863, %v3751
        %3785 = vst.msk [vmem:[%s3770 + $0x38] sm:$0xf] %vm1863, %v3752
        %3786 = vst.msk [vmem:[%s3770 + $0x3c] sm:$0xf] %vm1863, %v3753
        %s3787 = sand.u32 %s104, 1
        %s3788 = sand.u32 %s104, 1
        %s3789 = smul.addr %s3788, 256
        %s3790 = scalar_lea.vmem [#allocation2], %s3789
        // Predicated region
        $region33: #{deconv_module_forward.1} parent=31 // pred_check
          %p3791 = pneg %p114
        $region34: #{deconv_module_forward.1} parent=31 // pred_check_branch
          %3793 = sbr.rel (%p3791) target = $region36
        $region35: #{deconv_module_forward.1} parent=31 // pred_region
          %s3794 = smul.u32 16, %s19
          %s3795 = smul.addr %s18, 128
          %s3796 = sadd.s32 %s3794, %s3795
          %s3797 = smul.addr %s3796, 4
          %s3798 = scalar_lea.vmem %s3, %s3797
          // Predicated region
          $region37: #{deconv_module_forward.1} parent=35 // pred_check
            _
          $region38: #{deconv_module_forward.1} parent=35 // pred_check_branch
            %3800 = sbr.rel (0) target = $region40
          $region39: #{deconv_module_forward.1} parent=35 // pred_region
            // Predicated region
            $region41: #{deconv_module_forward.1} parent=39 // pred_check
              _
            $region42: #{deconv_module_forward.1} parent=39 // pred_check_branch
              %3802 = sbr.rel target = $region44
            $region43: #{deconv_module_forward.1} parent=39 // pred_region
              // Predicated region
              $region56: #{deconv_module_forward.1} parent=43 // pred_check
                _
              $region57: #{deconv_module_forward.1} parent=43 // pred_check_branch
                %3944 = sbr.rel (0) target = $region59
              $region58: #{deconv_module_forward.1} parent=43 // pred_region
                loop: start=0, step=1, limit=1
                $region60: #{deconv_module_forward.1} parent=58 // loop_pre_header
                  _
                $region61: #{deconv_module_forward.1} parent=58 // loop_header
                  %s3946 = sphi 0, %s3950
                  %p3947 = scmp.ge.s32.totalorder %s3946, 1
                  %s3951 = sphi %s3790, %s3790
                  %s3952 = sphi %s3798, %s3798
                $region62: #{deconv_module_forward.1} parent=58 // loop_header_branch
                  %3949 = sbr.rel (%p3947) target = $region66
                $region63: #{deconv_module_forward.1} parent=58 // loop_body
                  _
                $region64: #{deconv_module_forward.1} parent=58 // loop_footer
                  %s3950 = sadd.s32 1, %s3946
                $region65: #{deconv_module_forward.1} parent=58 // loop_footer_branch
                  %3945 = sbr.rel target = $region61
                $region66: #{deconv_module_forward.1} parent=58 // loop_exit
                  _
                %s3954 = ssub.s32 16, 1
                loop: start=0, step=1, limit=1
                $region67: #{deconv_module_forward.1} parent=58 // loop_pre_header
                  _
                $region68: #{deconv_module_forward.1} parent=58 // loop_header
                  %s3956 = sphi 0, %s3960
                  %p3957 = scmp.ge.s32.totalorder %s3956, 1
                  %s3961 = sphi %s3790, %s3790
                  %s3962 = sphi %s3798, %s3798
                $region69: #{deconv_module_forward.1} parent=58 // loop_header_branch
                  %3959 = sbr.rel (%p3957) target = $region73
                $region70: #{deconv_module_forward.1} parent=58 // loop_body
                  %v3963 = vld [vmem:[%s3961] sm:%s3954]
                  %3964 = vst [vmem:[%s3962] sm:%s3954] %v3963
                  %v3965 = vld [vmem:[%s3961 + $0x4] sm:%s3954]
                  %3966 = vst [vmem:[%s3962 + $0x4] sm:%s3954] %v3965
                  %v3967 = vld [vmem:[%s3961 + $0x8] sm:%s3954]
                  %3968 = vst [vmem:[%s3962 + $0x8] sm:%s3954] %v3967
                  %v3969 = vld [vmem:[%s3961 + $0xc] sm:%s3954]
                  %3970 = vst [vmem:[%s3962 + $0xc] sm:%s3954] %v3969
                  %v3971 = vld [vmem:[%s3961 + $0x10] sm:%s3954]
                  %3972 = vst [vmem:[%s3962 + $0x10] sm:%s3954] %v3971
                  %v3973 = vld [vmem:[%s3961 + $0x14] sm:%s3954]
                  %3974 = vst [vmem:[%s3962 + $0x14] sm:%s3954] %v3973
                  %v3975 = vld [vmem:[%s3961 + $0x18] sm:%s3954]
                  %3976 = vst [vmem:[%s3962 + $0x18] sm:%s3954] %v3975
                  %v3977 = vld [vmem:[%s3961 + $0x1c] sm:%s3954]
                  %3978 = vst [vmem:[%s3962 + $0x1c] sm:%s3954] %v3977
                  %v3979 = vld [vmem:[%s3961 + $0x20] sm:%s3954]
                  %3980 = vst [vmem:[%s3962 + $0x20] sm:%s3954] %v3979
                  %v3981 = vld [vmem:[%s3961 + $0x24] sm:%s3954]
                  %3982 = vst [vmem:[%s3962 + $0x24] sm:%s3954] %v3981
                  %v3983 = vld [vmem:[%s3961 + $0x28] sm:%s3954]
                  %3984 = vst [vmem:[%s3962 + $0x28] sm:%s3954] %v3983
                  %v3985 = vld [vmem:[%s3961 + $0x2c] sm:%s3954]
                  %3986 = vst [vmem:[%s3962 + $0x2c] sm:%s3954] %v3985
                  %v3987 = vld [vmem:[%s3961 + $0x30] sm:%s3954]
                  %3988 = vst [vmem:[%s3962 + $0x30] sm:%s3954] %v3987
                  %v3989 = vld [vmem:[%s3961 + $0x34] sm:%s3954]
                  %3990 = vst [vmem:[%s3962 + $0x34] sm:%s3954] %v3989
                  %v3991 = vld [vmem:[%s3961 + $0x38] sm:%s3954]
                  %3992 = vst [vmem:[%s3962 + $0x38] sm:%s3954] %v3991
                  %v3993 = vld [vmem:[%s3961 + $0x3c] sm:%s3954]
                  %3994 = vst [vmem:[%s3962 + $0x3c] sm:%s3954] %v3993
                  %v3995 = vld [vmem:[%s3961 + $0x40] sm:%s3954]
                  %3996 = vst [vmem:[%s3962 + $0x80] sm:%s3954] %v3995
                  %v3997 = vld [vmem:[%s3961 + $0x44] sm:%s3954]
                  %3998 = vst [vmem:[%s3962 + $0x84] sm:%s3954] %v3997
                  %v3999 = vld [vmem:[%s3961 + $0x48] sm:%s3954]
                  %4000 = vst [vmem:[%s3962 + $0x88] sm:%s3954] %v3999
                  %v4001 = vld [vmem:[%s3961 + $0x4c] sm:%s3954]
                  %4002 = vst [vmem:[%s3962 + $0x8c] sm:%s3954] %v4001
                  %v4003 = vld [vmem:[%s3961 + $0x50] sm:%s3954]
                  %4004 = vst [vmem:[%s3962 + $0x90] sm:%s3954] %v4003
                  %v4005 = vld [vmem:[%s3961 + $0x54] sm:%s3954]
                  %4006 = vst [vmem:[%s3962 + $0x94] sm:%s3954] %v4005
                  %v4007 = vld [vmem:[%s3961 + $0x58] sm:%s3954]
                  %4008 = vst [vmem:[%s3962 + $0x98] sm:%s3954] %v4007
                  %v4009 = vld [vmem:[%s3961 + $0x5c] sm:%s3954]
                  %4010 = vst [vmem:[%s3962 + $0x9c] sm:%s3954] %v4009
                  %v4011 = vld [vmem:[%s3961 + $0x60] sm:%s3954]
                  %4012 = vst [vmem:[%s3962 + $0xa0] sm:%s3954] %v4011
                  %v4013 = vld [vmem:[%s3961 + $0x64] sm:%s3954]
                  %4014 = vst [vmem:[%s3962 + $0xa4] sm:%s3954] %v4013
                  %v4015 = vld [vmem:[%s3961 + $0x68] sm:%s3954]
                  %4016 = vst [vmem:[%s3962 + $0xa8] sm:%s3954] %v4015
                  %v4017 = vld [vmem:[%s3961 + $0x6c] sm:%s3954]
                  %4018 = vst [vmem:[%s3962 + $0xac] sm:%s3954] %v4017
                  %v4019 = vld [vmem:[%s3961 + $0x70] sm:%s3954]
                  %4020 = vst [vmem:[%s3962 + $0xb0] sm:%s3954] %v4019
                  %v4021 = vld [vmem:[%s3961 + $0x74] sm:%s3954]
                  %4022 = vst [vmem:[%s3962 + $0xb4] sm:%s3954] %v4021
                  %v4023 = vld [vmem:[%s3961 + $0x78] sm:%s3954]
                  %4024 = vst [vmem:[%s3962 + $0xb8] sm:%s3954] %v4023
                  %v4025 = vld [vmem:[%s3961 + $0x7c] sm:%s3954]
                  %4026 = vst [vmem:[%s3962 + $0xbc] sm:%s3954] %v4025
                  %v4027 = vld [vmem:[%s3961 + $0x80] sm:%s3954]
                  %4028 = vst [vmem:[%s3962 + $0x100] sm:%s3954] %v4027
                  %v4029 = vld [vmem:[%s3961 + $0x84] sm:%s3954]
                  %4030 = vst [vmem:[%s3962 + $0x104] sm:%s3954] %v4029
                  %v4031 = vld [vmem:[%s3961 + $0x88] sm:%s3954]
                  %4032 = vst [vmem:[%s3962 + $0x108] sm:%s3954] %v4031
                  %v4033 = vld [vmem:[%s3961 + $0x8c] sm:%s3954]
                  %4034 = vst [vmem:[%s3962 + $0x10c] sm:%s3954] %v4033
                  %v4035 = vld [vmem:[%s3961 + $0x90] sm:%s3954]
                  %4036 = vst [vmem:[%s3962 + $0x110] sm:%s3954] %v4035
                  %v4037 = vld [vmem:[%s3961 + $0x94] sm:%s3954]
                  %4038 = vst [vmem:[%s3962 + $0x114] sm:%s3954] %v4037
                  %v4039 = vld [vmem:[%s3961 + $0x98] sm:%s3954]
                  %4040 = vst [vmem:[%s3962 + $0x118] sm:%s3954] %v4039
                  %v4041 = vld [vmem:[%s3961 + $0x9c] sm:%s3954]
                  %4042 = vst [vmem:[%s3962 + $0x11c] sm:%s3954] %v4041
                  %v4043 = vld [vmem:[%s3961 + $0xa0] sm:%s3954]
                  %4044 = vst [vmem:[%s3962 + $0x120] sm:%s3954] %v4043
                  %v4045 = vld [vmem:[%s3961 + $0xa4] sm:%s3954]
                  %4046 = vst [vmem:[%s3962 + $0x124] sm:%s3954] %v4045
                  %v4047 = vld [vmem:[%s3961 + $0xa8] sm:%s3954]
                  %4048 = vst [vmem:[%s3962 + $0x128] sm:%s3954] %v4047
                  %v4049 = vld [vmem:[%s3961 + $0xac] sm:%s3954]
                  %4050 = vst [vmem:[%s3962 + $0x12c] sm:%s3954] %v4049
                  %v4051 = vld [vmem:[%s3961 + $0xb0] sm:%s3954]
                  %4052 = vst [vmem:[%s3962 + $0x130] sm:%s3954] %v4051
                  %v4053 = vld [vmem:[%s3961 + $0xb4] sm:%s3954]
                  %4054 = vst [vmem:[%s3962 + $0x134] sm:%s3954] %v4053
                  %v4055 = vld [vmem:[%s3961 + $0xb8] sm:%s3954]
                  %4056 = vst [vmem:[%s3962 + $0x138] sm:%s3954] %v4055
                  %v4057 = vld [vmem:[%s3961 + $0xbc] sm:%s3954]
                  %4058 = vst [vmem:[%s3962 + $0x13c] sm:%s3954] %v4057
                  %v4059 = vld [vmem:[%s3961 + $0xc0] sm:%s3954]
                  %4060 = vst [vmem:[%s3962 + $0x180] sm:%s3954] %v4059
                  %v4061 = vld [vmem:[%s3961 + $0xc4] sm:%s3954]
                  %4062 = vst [vmem:[%s3962 + $0x184] sm:%s3954] %v4061
                  %v4063 = vld [vmem:[%s3961 + $0xc8] sm:%s3954]
                  %4064 = vst [vmem:[%s3962 + $0x188] sm:%s3954] %v4063
                  %v4065 = vld [vmem:[%s3961 + $0xcc] sm:%s3954]
                  %4066 = vst [vmem:[%s3962 + $0x18c] sm:%s3954] %v4065
                  %v4067 = vld [vmem:[%s3961 + $0xd0] sm:%s3954]
                  %4068 = vst [vmem:[%s3962 + $0x190] sm:%s3954] %v4067
                  %v4069 = vld [vmem:[%s3961 + $0xd4] sm:%s3954]
                  %4070 = vst [vmem:[%s3962 + $0x194] sm:%s3954] %v4069
                  %v4071 = vld [vmem:[%s3961 + $0xd8] sm:%s3954]
                  %4072 = vst [vmem:[%s3962 + $0x198] sm:%s3954] %v4071
                  %v4073 = vld [vmem:[%s3961 + $0xdc] sm:%s3954]
                  %4074 = vst [vmem:[%s3962 + $0x19c] sm:%s3954] %v4073
                  %v4075 = vld [vmem:[%s3961 + $0xe0] sm:%s3954]
                  %4076 = vst [vmem:[%s3962 + $0x1a0] sm:%s3954] %v4075
                  %v4077 = vld [vmem:[%s3961 + $0xe4] sm:%s3954]
                  %4078 = vst [vmem:[%s3962 + $0x1a4] sm:%s3954] %v4077
                  %v4079 = vld [vmem:[%s3961 + $0xe8] sm:%s3954]
                  %4080 = vst [vmem:[%s3962 + $0x1a8] sm:%s3954] %v4079
                  %v4081 = vld [vmem:[%s3961 + $0xec] sm:%s3954]
                  %4082 = vst [vmem:[%s3962 + $0x1ac] sm:%s3954] %v4081
                  %v4083 = vld [vmem:[%s3961 + $0xf0] sm:%s3954]
                  %4084 = vst [vmem:[%s3962 + $0x1b0] sm:%s3954] %v4083
                  %v4085 = vld [vmem:[%s3961 + $0xf4] sm:%s3954]
                  %4086 = vst [vmem:[%s3962 + $0x1b4] sm:%s3954] %v4085
                  %v4087 = vld [vmem:[%s3961 + $0xf8] sm:%s3954]
                  %4088 = vst [vmem:[%s3962 + $0x1b8] sm:%s3954] %v4087
                  %v4089 = vld [vmem:[%s3961 + $0xfc] sm:%s3954]
                  %4090 = vst [vmem:[%s3962 + $0x1bc] sm:%s3954] %v4089
                $region71: #{deconv_module_forward.1} parent=58 // loop_footer
                  %s3960 = sadd.s32 1, %s3956
                $region72: #{deconv_module_forward.1} parent=58 // loop_footer_branch
                  %3955 = sbr.rel target = $region68
                $region73: #{deconv_module_forward.1} parent=58 // loop_exit
                  _
              $region59: #{deconv_module_forward.1} parent=43 // pred_fallthru
                _
            $region44: #{deconv_module_forward.1} parent=39 // pred_fallthru
              _
            // Predicated region
            $region45: #{deconv_module_forward.1} parent=39 // pred_check
              _
            $region46: #{deconv_module_forward.1} parent=39 // pred_check_branch
              %3804 = sbr.rel (0) target = $region48
            $region47: #{deconv_module_forward.1} parent=39 // pred_region
              %s3806 = ssub.s32 16, 1
              loop: start=0, step=1, limit=1
              $region49: #{deconv_module_forward.1} parent=47 // loop_pre_header
                _
              $region50: #{deconv_module_forward.1} parent=47 // loop_header
                %s3808 = sphi 0, %s3812
                %p3809 = scmp.ge.s32.totalorder %s3808, 1
                %s3813 = sphi %s3790, %s3790
                %s3814 = sphi %s3798, %s3798
              $region51: #{deconv_module_forward.1} parent=47 // loop_header_branch
                %3811 = sbr.rel (%p3809) target = $region55
              $region52: #{deconv_module_forward.1} parent=47 // loop_body
                %v3815 = vld [vmem:[%s3813] sm:%s3806]
                %3816 = vst [vmem:[%s3814] sm:%s3806] %v3815
                %v3817 = vld [vmem:[%s3813 + $0x4] sm:%s3806]
                %3818 = vst [vmem:[%s3814 + $0x4] sm:%s3806] %v3817
                %v3819 = vld [vmem:[%s3813 + $0x8] sm:%s3806]
                %3820 = vst [vmem:[%s3814 + $0x8] sm:%s3806] %v3819
                %v3821 = vld [vmem:[%s3813 + $0xc] sm:%s3806]
                %3822 = vst [vmem:[%s3814 + $0xc] sm:%s3806] %v3821
                %v3823 = vld [vmem:[%s3813 + $0x10] sm:%s3806]
                %3824 = vst [vmem:[%s3814 + $0x10] sm:%s3806] %v3823
                %v3825 = vld [vmem:[%s3813 + $0x14] sm:%s3806]
                %3826 = vst [vmem:[%s3814 + $0x14] sm:%s3806] %v3825
                %v3827 = vld [vmem:[%s3813 + $0x18] sm:%s3806]
                %3828 = vst [vmem:[%s3814 + $0x18] sm:%s3806] %v3827
                %v3829 = vld [vmem:[%s3813 + $0x1c] sm:%s3806]
                %3830 = vst [vmem:[%s3814 + $0x1c] sm:%s3806] %v3829
                %v3831 = vld [vmem:[%s3813 + $0x20] sm:%s3806]
                %3832 = vst [vmem:[%s3814 + $0x20] sm:%s3806] %v3831
                %v3833 = vld [vmem:[%s3813 + $0x24] sm:%s3806]
                %3834 = vst [vmem:[%s3814 + $0x24] sm:%s3806] %v3833
                %v3835 = vld [vmem:[%s3813 + $0x28] sm:%s3806]
                %3836 = vst [vmem:[%s3814 + $0x28] sm:%s3806] %v3835
                %v3837 = vld [vmem:[%s3813 + $0x2c] sm:%s3806]
                %3838 = vst [vmem:[%s3814 + $0x2c] sm:%s3806] %v3837
                %v3839 = vld [vmem:[%s3813 + $0x30] sm:%s3806]
                %3840 = vst [vmem:[%s3814 + $0x30] sm:%s3806] %v3839
                %v3841 = vld [vmem:[%s3813 + $0x34] sm:%s3806]
                %3842 = vst [vmem:[%s3814 + $0x34] sm:%s3806] %v3841
                %v3843 = vld [vmem:[%s3813 + $0x38] sm:%s3806]
                %3844 = vst [vmem:[%s3814 + $0x38] sm:%s3806] %v3843
                %v3845 = vld [vmem:[%s3813 + $0x3c] sm:%s3806]
                %3846 = vst [vmem:[%s3814 + $0x3c] sm:%s3806] %v3845
                %v3847 = vld [vmem:[%s3813 + $0x40] sm:%s3806]
                %3848 = vst [vmem:[%s3814 + $0x80] sm:%s3806] %v3847
                %v3849 = vld [vmem:[%s3813 + $0x44] sm:%s3806]
                %3850 = vst [vmem:[%s3814 + $0x84] sm:%s3806] %v3849
                %v3851 = vld [vmem:[%s3813 + $0x48] sm:%s3806]
                %3852 = vst [vmem:[%s3814 + $0x88] sm:%s3806] %v3851
                %v3853 = vld [vmem:[%s3813 + $0x4c] sm:%s3806]
                %3854 = vst [vmem:[%s3814 + $0x8c] sm:%s3806] %v3853
                %v3855 = vld [vmem:[%s3813 + $0x50] sm:%s3806]
                %3856 = vst [vmem:[%s3814 + $0x90] sm:%s3806] %v3855
                %v3857 = vld [vmem:[%s3813 + $0x54] sm:%s3806]
                %3858 = vst [vmem:[%s3814 + $0x94] sm:%s3806] %v3857
                %v3859 = vld [vmem:[%s3813 + $0x58] sm:%s3806]
                %3860 = vst [vmem:[%s3814 + $0x98] sm:%s3806] %v3859
                %v3861 = vld [vmem:[%s3813 + $0x5c] sm:%s3806]
                %3862 = vst [vmem:[%s3814 + $0x9c] sm:%s3806] %v3861
                %v3863 = vld [vmem:[%s3813 + $0x60] sm:%s3806]
                %3864 = vst [vmem:[%s3814 + $0xa0] sm:%s3806] %v3863
                %v3865 = vld [vmem:[%s3813 + $0x64] sm:%s3806]
                %3866 = vst [vmem:[%s3814 + $0xa4] sm:%s3806] %v3865
                %v3867 = vld [vmem:[%s3813 + $0x68] sm:%s3806]
                %3868 = vst [vmem:[%s3814 + $0xa8] sm:%s3806] %v3867
                %v3869 = vld [vmem:[%s3813 + $0x6c] sm:%s3806]
                %3870 = vst [vmem:[%s3814 + $0xac] sm:%s3806] %v3869
                %v3871 = vld [vmem:[%s3813 + $0x70] sm:%s3806]
                %3872 = vst [vmem:[%s3814 + $0xb0] sm:%s3806] %v3871
                %v3873 = vld [vmem:[%s3813 + $0x74] sm:%s3806]
                %3874 = vst [vmem:[%s3814 + $0xb4] sm:%s3806] %v3873
                %v3875 = vld [vmem:[%s3813 + $0x78] sm:%s3806]
                %3876 = vst [vmem:[%s3814 + $0xb8] sm:%s3806] %v3875
                %v3877 = vld [vmem:[%s3813 + $0x7c] sm:%s3806]
                %3878 = vst [vmem:[%s3814 + $0xbc] sm:%s3806] %v3877
                %v3879 = vld [vmem:[%s3813 + $0x80] sm:%s3806]
                %3880 = vst [vmem:[%s3814 + $0x100] sm:%s3806] %v3879
                %v3881 = vld [vmem:[%s3813 + $0x84] sm:%s3806]
                %3882 = vst [vmem:[%s3814 + $0x104] sm:%s3806] %v3881
                %v3883 = vld [vmem:[%s3813 + $0x88] sm:%s3806]
                %3884 = vst [vmem:[%s3814 + $0x108] sm:%s3806] %v3883
                %v3885 = vld [vmem:[%s3813 + $0x8c] sm:%s3806]
                %3886 = vst [vmem:[%s3814 + $0x10c] sm:%s3806] %v3885
                %v3887 = vld [vmem:[%s3813 + $0x90] sm:%s3806]
                %3888 = vst [vmem:[%s3814 + $0x110] sm:%s3806] %v3887
                %v3889 = vld [vmem:[%s3813 + $0x94] sm:%s3806]
                %3890 = vst [vmem:[%s3814 + $0x114] sm:%s3806] %v3889
                %v3891 = vld [vmem:[%s3813 + $0x98] sm:%s3806]
                %3892 = vst [vmem:[%s3814 + $0x118] sm:%s3806] %v3891
                %v3893 = vld [vmem:[%s3813 + $0x9c] sm:%s3806]
                %3894 = vst [vmem:[%s3814 + $0x11c] sm:%s3806] %v3893
                %v3895 = vld [vmem:[%s3813 + $0xa0] sm:%s3806]
                %3896 = vst [vmem:[%s3814 + $0x120] sm:%s3806] %v3895
                %v3897 = vld [vmem:[%s3813 + $0xa4] sm:%s3806]
                %3898 = vst [vmem:[%s3814 + $0x124] sm:%s3806] %v3897
                %v3899 = vld [vmem:[%s3813 + $0xa8] sm:%s3806]
                %3900 = vst [vmem:[%s3814 + $0x128] sm:%s3806] %v3899
                %v3901 = vld [vmem:[%s3813 + $0xac] sm:%s3806]
                %3902 = vst [vmem:[%s3814 + $0x12c] sm:%s3806] %v3901
                %v3903 = vld [vmem:[%s3813 + $0xb0] sm:%s3806]
                %3904 = vst [vmem:[%s3814 + $0x130] sm:%s3806] %v3903
                %v3905 = vld [vmem:[%s3813 + $0xb4] sm:%s3806]
                %3906 = vst [vmem:[%s3814 + $0x134] sm:%s3806] %v3905
                %v3907 = vld [vmem:[%s3813 + $0xb8] sm:%s3806]
                %3908 = vst [vmem:[%s3814 + $0x138] sm:%s3806] %v3907
                %v3909 = vld [vmem:[%s3813 + $0xbc] sm:%s3806]
                %3910 = vst [vmem:[%s3814 + $0x13c] sm:%s3806] %v3909
                %v3911 = vld [vmem:[%s3813 + $0xc0] sm:%s3806]
                %3912 = vst [vmem:[%s3814 + $0x180] sm:%s3806] %v3911
                %v3913 = vld [vmem:[%s3813 + $0xc4] sm:%s3806]
                %3914 = vst [vmem:[%s3814 + $0x184] sm:%s3806] %v3913
                %v3915 = vld [vmem:[%s3813 + $0xc8] sm:%s3806]
                %3916 = vst [vmem:[%s3814 + $0x188] sm:%s3806] %v3915
                %v3917 = vld [vmem:[%s3813 + $0xcc] sm:%s3806]
                %3918 = vst [vmem:[%s3814 + $0x18c] sm:%s3806] %v3917
                %v3919 = vld [vmem:[%s3813 + $0xd0] sm:%s3806]
                %3920 = vst [vmem:[%s3814 + $0x190] sm:%s3806] %v3919
                %v3921 = vld [vmem:[%s3813 + $0xd4] sm:%s3806]
                %3922 = vst [vmem:[%s3814 + $0x194] sm:%s3806] %v3921
                %v3923 = vld [vmem:[%s3813 + $0xd8] sm:%s3806]
                %3924 = vst [vmem:[%s3814 + $0x198] sm:%s3806] %v3923
                %v3925 = vld [vmem:[%s3813 + $0xdc] sm:%s3806]
                %3926 = vst [vmem:[%s3814 + $0x19c] sm:%s3806] %v3925
                %v3927 = vld [vmem:[%s3813 + $0xe0] sm:%s3806]
                %3928 = vst [vmem:[%s3814 + $0x1a0] sm:%s3806] %v3927
                %v3929 = vld [vmem:[%s3813 + $0xe4] sm:%s3806]
                %3930 = vst [vmem:[%s3814 + $0x1a4] sm:%s3806] %v3929
                %v3931 = vld [vmem:[%s3813 + $0xe8] sm:%s3806]
                %3932 = vst [vmem:[%s3814 + $0x1a8] sm:%s3806] %v3931
                %v3933 = vld [vmem:[%s3813 + $0xec] sm:%s3806]
                %3934 = vst [vmem:[%s3814 + $0x1ac] sm:%s3806] %v3933
                %v3935 = vld [vmem:[%s3813 + $0xf0] sm:%s3806]
                %3936 = vst [vmem:[%s3814 + $0x1b0] sm:%s3806] %v3935
                %v3937 = vld [vmem:[%s3813 + $0xf4] sm:%s3806]
                %3938 = vst [vmem:[%s3814 + $0x1b4] sm:%s3806] %v3937
                %v3939 = vld [vmem:[%s3813 + $0xf8] sm:%s3806]
                %3940 = vst [vmem:[%s3814 + $0x1b8] sm:%s3806] %v3939
                %v3941 = vld [vmem:[%s3813 + $0xfc] sm:%s3806]
                %3942 = vst [vmem:[%s3814 + $0x1bc] sm:%s3806] %v3941
              $region53: #{deconv_module_forward.1} parent=47 // loop_footer
                %s3812 = sadd.s32 1, %s3808
              $region54: #{deconv_module_forward.1} parent=47 // loop_footer_branch
                %3807 = sbr.rel target = $region50
              $region55: #{deconv_module_forward.1} parent=47 // loop_exit
                _
            $region48: #{deconv_module_forward.1} parent=39 // pred_fallthru
              _
          $region40: #{deconv_module_forward.1} parent=35 // pred_fallthru
            _
          %4091 = vnop
        $region36: #{deconv_module_forward.1} parent=31 // pred_fallthru
          _
      $region32: #{deconv_module_forward.1} parent=5 // pred_fallthru
        _
      %p4092 = scmp.le.s32.totalorder 2, %s9
      // Predicated region
      $region74: #{deconv_module_forward.1} parent=5 // pred_check
        %p4093 = pneg %p4092
      $region75: #{deconv_module_forward.1} parent=5 // pred_check_branch
        %4095 = sbr.rel (%p4093) target = $region77
      $region76: #{deconv_module_forward.1} parent=5 // pred_region
        %s4096 = ssub.s32 %s9, 2
        // Predicated region
        $region78: #{deconv_module_forward.1} parent=76 // pred_check
          %p4097 = pneg %p120
        $region79: #{deconv_module_forward.1} parent=76 // pred_check_branch
          %4099 = sbr.rel (%p4097) target = $region81
        $region80: #{deconv_module_forward.1} parent=76 // pred_region
          %s4100 = sand.u32 %s105, 1
          %s4101 = sand.u32 %s105, 1
          %s4102 = smul.addr %s4101, 256
          %s4103 = scalar_lea.vmem [#allocation2], %s4102
        $region81: #{deconv_module_forward.1} parent=76 // pred_fallthru
          _
      $region77: #{deconv_module_forward.1} parent=5 // pred_fallthru
        _
    $region6: #{deconv_module_forward.1} parent=1 // loop_footer
      %s13 = sadd.s32 1, %s9
    $region7: #{deconv_module_forward.1} parent=1 // loop_footer_branch
      %8 = sbr.rel target = $region3
    $region8: #{deconv_module_forward.1} parent=1 // loop_exit
      _

</llo_original>
